<compile_context>
chip_gen: v7x
topology: tpu7x:2x2x1
jax: 0.10.0
libtpu: 0.0.40
codegen_flags: <defaults>
</compile_context>

<pallas_src>
import functools

import numpy as np

import jax
import jax.numpy as jnp
from jax import lax
from jax.experimental import pallas as pl
from jax.experimental.pallas import tpu as pltpu


def _embed_dropout_kernel(*refs, p, scale, threshold, dropout_mode,
                          vocab_chunk):
    """One grid step: gather TB rows via one-hot MXU matmul, apply dropout.

    dropout_mode:
      "none"      -> refs = (ids_ref, table_ref, out_ref)
      "host_rand" -> refs = (ids_ref, table_ref, rand_ref, out_ref)
      "tpu_prng"  -> refs = (ids_ref, table_ref, seed_ref, out_ref)
    """
    if dropout_mode == "host_rand":
        ids_ref, table_ref, rand_ref, out_ref = refs
    elif dropout_mode == "tpu_prng":
        ids_ref, table_ref, seed_ref, out_ref = refs
    else:
        ids_ref, table_ref, out_ref = refs

    ids_col = ids_ref[0]                       # (TB, 1) int32, tokens on sublanes
    tb = ids_col.shape[0]
    v1p, d = table_ref.shape

    # Row gather on the MXU: one-hot(TB, V1p) @ table(V1p, D), vocab tiled in
    # <= vocab_chunk column chunks so the one-hot working set stays small.
    acc = jnp.zeros((tb, d), dtype=jnp.float32)
    for c0 in range(0, v1p, vocab_chunk):
        vc = min(vocab_chunk, v1p - c0)
        cols = lax.broadcasted_iota(jnp.int32, (tb, vc), 1) + c0
        onehot = (cols == ids_col).astype(table_ref.dtype)
        acc = acc + jnp.dot(onehot, table_ref[c0:c0 + vc, :],
                            preferred_element_type=jnp.float32,
                            precision=lax.Precision.HIGHEST)

    rows = acc
    if dropout_mode == "host_rand":
        keep = rand_ref[...] >= p              # uniforms generated outside
        rows = jnp.where(keep, rows * scale, 0.0)
    elif dropout_mode == "tpu_prng":
        # One seed + one bit draw per grid step; independent of execution
        # order so the "parallel" grid axis stays correct.
        pltpu.prng_seed(seed_ref[0] + pl.program_id(0))
        bits = pltpu.prng_random_bits(rows.shape)
        if jnp.issubdtype(bits.dtype, jnp.unsignedinteger):
            keep = bits >= np.uint32(threshold)
        else:
            keep = bits >= np.int32(threshold - 2 ** 31)
        rows = jnp.where(keep, rows * scale, 0.0)

    out_ref[...] = rows.astype(out_ref.dtype)


def _vmem_budget_bytes():
    """Per-core VMEM budget (generation aware)."""
    try:
        cap = int(pltpu.get_tpu_info().vmem_capacity_bytes)
        return max(int(cap * 0.85), 16 << 20)
    except Exception:
        # Unknown chip (or interpret/CPU run): be conservative enough to fit
        # v7x's 64 MiB per-TensorCore VMEM with headroom.
        return 48 << 20


def embed_layer_forward(token_ids, emb_weight, *, seed=0, dropout_p=0.25,
                        training=True, block_tokens=512, vocab_chunk=512):
    """Equivalent of Embed_Layer.forward: Dropout(p)(Embedding(x))."""
    B, S = token_ids.shape
    V1, D = emb_weight.shape
    T = B * S
    itemsize = jnp.dtype(emb_weight.dtype).itemsize

    TB = int(block_tokens)
    num_blocks = -(-T // TB)                       # ceil div
    T_pad = num_blocks * TB

    # Pad vocab axis to a multiple of 128 (MXU-friendly contraction dim).
    # Padded rows are never selected since ids < V1.
    V1p = -(-V1 // 128) * 128
    table_p = emb_weight if V1p == V1 else jnp.pad(
        emb_weight, ((0, V1p - V1), (0, 0)))
    vocab_chunk = int(min(vocab_chunk, V1p))

    # ids as (num_blocks, TB, 1): trailing block dims equal full array dims,
    # and the kernel gets a (TB, 1) column directly (no in-kernel relayout).
    flat_ids = token_ids.reshape(T).astype(jnp.int32)
    if T_pad != T:
        flat_ids = jnp.pad(flat_ids, (0, T_pad - T))   # pad with valid row 0
    ids3d = flat_ids.reshape(num_blocks, TB, 1)

    p = float(dropout_p)
    apply_dropout = bool(training) and p > 0.0
    scale = 1.0 / (1.0 - p) if p < 1.0 else 0.0
    threshold = min(int(round(p * (2 ** 32))), 2 ** 32 - 1)

    if not apply_dropout:
        dropout_mode = "none"
    elif jax.default_backend() == "tpu":
        dropout_mode = "tpu_prng"      # on-chip PRNG: no extra HBM traffic
    else:
        dropout_mode = "host_rand"     # interpret/CPU-safe fallback

    # ---- VMEM accounting: table single-buffered, blocks double-buffered ----
    table_bytes = V1p * D * itemsize
    block_bytes = 2 * (TB * D * itemsize)            # output block
    block_bytes += 2 * (TB * 128 * 4)                # ids block (lane-padded)
    if dropout_mode == "host_rand":
        block_bytes += 2 * (TB * D * 4)              # uniforms block
    scratch_bytes = TB * vocab_chunk * itemsize + TB * D * 4
    vmem_needed = table_bytes + block_bytes + scratch_bytes
    budget = _vmem_budget_bytes()
    if vmem_needed + (4 << 20) > budget:
        # TODO(synk): large-vocab path — keep the table in HBM
        # (memory_space=pl.ANY), gather only the touched rows with per-row
        # pltpu.make_async_copy into a multi-slot VMEM ring driven by
        # scalar-prefetched ids (moves T*D bytes instead of V1*D).
        raise NotImplementedError(
            "embedding table exceeds the per-core VMEM budget; HBM row-gather "
            "path not implemented")
    vmem_limit = int(min(max(vmem_needed + (4 << 20), 16 << 20), budget))

    # Grid-invariant table: single-buffer it (halves its VMEM footprint).
    try:
        table_spec = pl.BlockSpec((V1p, D), lambda i: (0, 0),
                                  pipeline_mode=pl.Buffered(1))
    except (AttributeError, TypeError):
        table_spec = pl.BlockSpec((V1p, D), lambda i: (0, 0))

    in_specs = [pl.BlockSpec((1, TB, 1), lambda i: (i, 0, 0)), table_spec]
    args = [ids3d, table_p]
    if dropout_mode == "host_rand":
        rand = jax.random.uniform(jax.random.PRNGKey(seed), (T_pad, D),
                                  dtype=jnp.float32)
        in_specs.append(pl.BlockSpec((TB, D), lambda i: (i, 0)))
        args.append(rand)
    elif dropout_mode == "tpu_prng":
        in_specs.append(pl.BlockSpec(memory_space=pltpu.MemorySpace.SMEM))
        args.append(jnp.array([seed], dtype=jnp.int32))

    kernel = functools.partial(
        _embed_dropout_kernel,
        p=p, scale=scale, threshold=threshold,
        dropout_mode=dropout_mode, vocab_chunk=vocab_chunk)

    out_flat = pl.pallas_call(
        kernel,
        out_shape=jax.ShapeDtypeStruct((T_pad, D), emb_weight.dtype),
        grid=(num_blocks,),
        in_specs=in_specs,
        out_specs=pl.BlockSpec((TB, D), lambda i: (i, 0)),
        compiler_params=pltpu.CompilerParams(
            # TODO(synk): on v7x, pltpu.CORE_PARALLEL on the token axis would
            # split the grid across the 2 TensorCores (each core then holds
            # its own table copy); "parallel" is the portable default.
            dimension_semantics=("parallel",),
            vmem_limit_bytes=vmem_limit),
    )(*args)

    return out_flat[:T].reshape(B, S, D)


if __name__ == "__main__":
    # Small, deterministic example shapes consistent with the module.
    vocab_size = 32
    embedding_dim = 128
    batch, seq = 2, 8

    key = jax.random.PRNGKey(0)
    k_w, k_ids = jax.random.split(key)

    # nn.Embedding(vocab_size + 1, embedding_dim) default init ~ N(0, 1).
    emb_weight = jax.random.normal(
        k_w, (vocab_size + 1, embedding_dim), dtype=jnp.float32)
    token_ids = jax.random.randint(
        k_ids, (batch, seq), minval=0, maxval=vocab_size + 1, dtype=jnp.int32)

    # Training path: dropout(embedding(x)).
    out = embed_layer_forward(token_ids, emb_weight, seed=0, dropout_p=0.25,
                              training=True)
    out = jax.block_until_ready(out)

    assert out.shape == (batch, seq, embedding_dim)
    assert out.dtype == jnp.float32

    ref_embed = np.asarray(emb_weight)[np.asarray(token_ids)]   # [B, S, D]

    # Surviving (nonzero) entries must equal embedded value * 1/(1-p).
    out_np = np.asarray(out)
    kept = out_np != 0.0
    expected = ref_embed * np.float32(1.0 / 0.75)
    np.testing.assert_allclose(out_np[kept], expected[kept],
                               rtol=1e-6, atol=1e-6)

    # Eval path (no dropout) must reproduce the gather.
    out_eval = embed_layer_forward(token_ids, emb_weight, training=False)
    out_eval = jax.block_until_ready(out_eval)
    np.testing.assert_allclose(np.asarray(out_eval), ref_embed,
                               rtol=1e-6, atol=1e-6)

    print("KERNEL_OK")
</pallas_src>

<mosaic_0001>
module attributes {stable_mosaic.version = 11 : i64} {
  func.func @_embed_dropout_kernel(%arg0: i32, %arg1: memref<1x512x1xi32, #tpu.memory_space<vmem>>, %arg2: memref<128x128xf32, #tpu.memory_space<vmem>>, %arg3: memref<512x128xf32, #tpu.memory_space<vmem>>, %arg4: memref<512x128xf32, #tpu.memory_space<vmem>>) attributes {dimension_semantics = [#tpu.dimension_semantics<parallel>], iteration_bounds = array<i64: 1>, scalar_prefetch = 0 : i64, scratch_operands = 0 : i64, tpu.core_type = #tpu.core_type<tc>, window_params = [{transform_indices = @transform_0, window_bounds = array<i64: 1, 512, 1>}, {pipeline_mode = #tpu.pipeline_mode<synchronous>, transform_indices = @transform_1, window_bounds = array<i64: 128, 128>}, {transform_indices = @transform_2, window_bounds = array<i64: 512, 128>}, {transform_indices = @transform_3, window_bounds = array<i64: 512, 128>}]} {
    %c0 = arith.constant 0 : index
    %c0_0 = arith.constant 0 : index
    %c0_1 = arith.constant 0 : index
    %0 = vector.load %arg1[%c0, %c0_0, %c0_1] : memref<1x512x1xi32, #tpu.memory_space<vmem>>, vector<1x512x1xi32>
    %1 = vector.shape_cast %0 : vector<1x512x1xi32> to vector<512x1xi32>
    %cst = arith.constant 0.000000e+00 : f32
    %2 = vector.broadcast %cst : f32 to vector<512x128xf32>
    %3 = tpu.iota {dimensions = array<i32: 1>} : vector<512x128xi32>
    %c0_i32 = arith.constant 0 : i32
    %4 = vector.broadcast %c0_i32 : i32 to vector<512x128xi32>
    %5 = arith.addi %3, %4 : vector<512x128xi32>
    %6 = vector.broadcast %1 : vector<512x1xi32> to vector<512x128xi32>
    %7 = arith.cmpi eq, %5, %6 : vector<512x128xi32>
    %8 = arith.extui %7 : vector<512x128xi1> to vector<512x128xi32>
    %9 = arith.sitofp %8 : vector<512x128xi32> to vector<512x128xf32>
    %c0_2 = arith.constant 0 : index
    %c0_3 = arith.constant 0 : index
    %10 = vector.load %arg2[%c0_2, %c0_3] : memref<128x128xf32, #tpu.memory_space<vmem>>, vector<128x128xf32>
    %cst_4 = arith.constant dense<0.000000e+00> : vector<512x128xf32>
    %11 = tpu.matmul %9, %10, %cst_4 {dimension_numbers = #tpu.dot_dimension_numbers<[1], [0], [0], [1], [0, 0, 1, 1], [], []>, precision = #tpu.contract_precision<fp32>} : vector<512x128xf32>, vector<128x128xf32>, vector<512x128xf32> -> vector<512x128xf32>
    %12 = arith.addf %2, %11 : vector<512x128xf32>
    %c0_5 = arith.constant 0 : index
    %c0_6 = arith.constant 0 : index
    %13 = vector.load %arg3[%c0_5, %c0_6] : memref<512x128xf32, #tpu.memory_space<vmem>>, vector<512x128xf32>
    %cst_7 = arith.constant 2.500000e-01 : f32
    %14 = vector.broadcast %cst_7 : f32 to vector<512x128xf32>
    %15 = arith.cmpf oge, %13, %14 : vector<512x128xf32>
    %cst_8 = arith.constant 1.33333337 : f32
    %16 = vector.broadcast %cst_8 : f32 to vector<512x128xf32>
    %17 = arith.mulf %12, %16 : vector<512x128xf32>
    %cst_9 = arith.constant 0.000000e+00 : f32
    %18 = vector.broadcast %cst_9 : f32 to vector<512x128xf32>
    %19 = arith.select %15, %17, %18 : vector<512x128xi1>, vector<512x128xf32>
    %c0_10 = arith.constant 0 : index
    %c0_11 = arith.constant 0 : index
    %20 = vector.load %arg4[%c0_10, %c0_11] : memref<512x128xf32, #tpu.memory_space<vmem>>, vector<512x128xf32>
    tpu.vector_store %arg4[%c0_10, %c0_11], %19 {strides = array<i32>} : memref<512x128xf32, #tpu.memory_space<vmem>>, vector<512x128xf32>,
    return
  }
  func.func @transform_0(%arg0: i32) -> (i32, i32, i32) {
    %c0_i32 = arith.constant 0 : i32
    %c0_i32_0 = arith.constant 0 : i32
    %c0_i32_1 = arith.constant 0 : i32
    return %arg0, %c0_i32, %c0_i32_0 : i32, i32, i32
  }
  func.func @transform_1(%arg0: i32) -> (i32, i32) {
    %c0_i32 = arith.constant 0 : i32
    %c0_i32_0 = arith.constant 0 : i32
    %c0_i32_1 = arith.constant 0 : i32
    return %c0_i32, %c0_i32_0 : i32, i32
  }
  func.func @transform_2(%arg0: i32) -> (i32, i32) {
    %c0_i32 = arith.constant 0 : i32
    %c0_i32_0 = arith.constant 0 : i32
    return %arg0, %c0_i32 : i32, i32
  }
  func.func @transform_3(%arg0: i32) -> (i32, i32) {
    %c0_i32 = arith.constant 0 : i32
    %c0_i32_0 = arith.constant 0 : i32
    return %arg0, %c0_i32 : i32, i32
  }
}

</mosaic_0001>

<llo_original>
// kernel: tpu_custom_call.1
$region0: #{tpu_custom_call.1}
  #allocation0 [shape = 'u32[]', space=smem, size = 0x4, offset = 0x4, fixed_abs, tag = 'smem constant byte address 0x4 - core index']
  #allocation1 [shape = 'u32[144,128]{1,0:T(1,128)}', space=vmem, size = 0x12000, scoped, tag = 'internal scratch']
  %s0 = inlined_call_operand.vmem [shape: s32[1,512,1], index: 0, kind: input, shape index: {}]
  %s1 = inlined_call_operand.hbm [shape: f32[128,128], index: 1, kind: input, shape index: {}]
  %s2 = inlined_call_operand.vmem [shape: f32[512,128], index: 2, kind: input, shape index: {}]
  %s3 = inlined_call_operand.hbm [shape: f32[512,128], index: 3, kind: output, shape index: {}]
  %s4 = sld [smem:[#allocation0]]
  $region26: #{tpu_custom_call.1} parent=0
    _
  %s6 = ssub.s32 1, %s4
  %s7 = scalar_select 0, %s6, %s4
  $region1: #{tpu_custom_call.1} parent=0
    #allocation2 [shape = 'u8[65536]{0}', space=vmem, size = 0x10000, scoped, tag = 'input window, operand 1, single buffered']
    #allocation3 [shape = 's32[1]{0}', space=sflag, size = 0x4, scoped, tag = 'scoped memory for tpu_custom_call.1']
    #allocation4 [shape = 's32[1]{0}', space=sflag, size = 0x4, scoped, tag = 'scoped memory for tpu_custom_call.1']
    #allocation5 [shape = 'u8[262144]{0}', space=vmem, size = 0x40000, scoped, tag = 'output window, operand 0, single buffered']
    %8 = vsyncpa [#allocation3], 0
    %9 = vsyncpa [#allocation4], 0
    // Predicated region
    $region2: #{tpu_custom_call.1} parent=1 // pred_check
      _
    $region3: #{tpu_custom_call.1} parent=1 // pred_check_branch
      %11 = sbr.rel (0) target = $region5
    $region4: #{tpu_custom_call.1} parent=1 // pred_region
      _
    $region5: #{tpu_custom_call.1} parent=1 // pred_fallthru
      _
    // Predicated region
    $region6: #{tpu_custom_call.1} parent=1 // pred_check
      _
    $region7: #{tpu_custom_call.1} parent=1 // pred_check_branch
      %13 = sbr.rel (0) target = $region9
    $region8: #{tpu_custom_call.1} parent=1 // pred_region
      %s15 = ssub.s32 2048, 2048
      %16 = vsyncadd [#allocation3], %s15
      %s17 = sshll.u32 [#allocation2], 4
      %s18 = int_to_ptr.vmem [resolvable:$true] %s17
      %23 = dma.hbm_to_vmem [thread:$0]  %s1, 2048, %s18, [#allocation3], 128, 128, 8
    $region9: #{tpu_custom_call.1} parent=1 // pred_fallthru
      _
    // Predicated region
    $region10: #{tpu_custom_call.1} parent=1 // pred_check
      _
    $region11: #{tpu_custom_call.1} parent=1 // pred_check_branch
      %25 = sbr.rel (0) target = $region13
    $region12: #{tpu_custom_call.1} parent=1 // pred_region
      _
    $region13: #{tpu_custom_call.1} parent=1 // pred_fallthru
      _
    // Predicated region
    $region14: #{tpu_custom_call.1} parent=1 // pred_check
      _
    $region15: #{tpu_custom_call.1} parent=1 // pred_check_branch
      %27 = sbr.rel (0) target = $region17
    $region16: #{tpu_custom_call.1} parent=1 // pred_region
      %28 = dma.done [#allocation3], 2048
    $region17: #{tpu_custom_call.1} parent=1 // pred_fallthru
      _
    %v29 = vld [vmem:[%s0] sm:$0xff]
    %v30 = vld [vmem:[%s0 + $0x8] sm:$0xff]
    %v31 = vld [vmem:[%s0 + $0x10] sm:$0xff]
    %v32 = vld [vmem:[%s0 + $0x18] sm:$0xff]
    %v33 = vld [vmem:[%s0 + $0x20] sm:$0xff]
    %v34 = vld [vmem:[%s0 + $0x28] sm:$0xff]
    %v35 = vld [vmem:[%s0 + $0x30] sm:$0xff]
    %v36 = vld [vmem:[%s0 + $0x38] sm:$0xff]
    %v37 = vld [vmem:[%s0 + $0x40] sm:$0xff]
    %v38 = vld [vmem:[%s0 + $0x48] sm:$0xff]
    %v39 = vld [vmem:[%s0 + $0x50] sm:$0xff]
    %v40 = vld [vmem:[%s0 + $0x58] sm:$0xff]
    %v41 = vld [vmem:[%s0 + $0x60] sm:$0xff]
    %v42 = vld [vmem:[%s0 + $0x68] sm:$0xff]
    %v43 = vld [vmem:[%s0 + $0x70] sm:$0xff]
    %v44 = vld [vmem:[%s0 + $0x78] sm:$0xff]
    %v45 = vld [vmem:[%s0 + $0x80] sm:$0xff]
    %v46 = vld [vmem:[%s0 + $0x88] sm:$0xff]
    %v47 = vld [vmem:[%s0 + $0x90] sm:$0xff]
    %v48 = vld [vmem:[%s0 + $0x98] sm:$0xff]
    %v49 = vld [vmem:[%s0 + $0xa0] sm:$0xff]
    %v50 = vld [vmem:[%s0 + $0xa8] sm:$0xff]
    %v51 = vld [vmem:[%s0 + $0xb0] sm:$0xff]
    %v52 = vld [vmem:[%s0 + $0xb8] sm:$0xff]
    %v53 = vld [vmem:[%s0 + $0xc0] sm:$0xff]
    %v54 = vld [vmem:[%s0 + $0xc8] sm:$0xff]
    %v55 = vld [vmem:[%s0 + $0xd0] sm:$0xff]
    %v56 = vld [vmem:[%s0 + $0xd8] sm:$0xff]
    %v57 = vld [vmem:[%s0 + $0xe0] sm:$0xff]
    %v58 = vld [vmem:[%s0 + $0xe8] sm:$0xff]
    %v59 = vld [vmem:[%s0 + $0xf0] sm:$0xff]
    %v60 = vld [vmem:[%s0 + $0xf8] sm:$0xff]
    %v61 = vld [vmem:[%s0 + $0x100] sm:$0xff]
    %v62 = vld [vmem:[%s0 + $0x108] sm:$0xff]
    %v63 = vld [vmem:[%s0 + $0x110] sm:$0xff]
    %v64 = vld [vmem:[%s0 + $0x118] sm:$0xff]
    %v65 = vld [vmem:[%s0 + $0x120] sm:$0xff]
    %v66 = vld [vmem:[%s0 + $0x128] sm:$0xff]
    %v67 = vld [vmem:[%s0 + $0x130] sm:$0xff]
    %v68 = vld [vmem:[%s0 + $0x138] sm:$0xff]
    %v69 = vld [vmem:[%s0 + $0x140] sm:$0xff]
    %v70 = vld [vmem:[%s0 + $0x148] sm:$0xff]
    %v71 = vld [vmem:[%s0 + $0x150] sm:$0xff]
    %v72 = vld [vmem:[%s0 + $0x158] sm:$0xff]
    %v73 = vld [vmem:[%s0 + $0x160] sm:$0xff]
    %v74 = vld [vmem:[%s0 + $0x168] sm:$0xff]
    %v75 = vld [vmem:[%s0 + $0x170] sm:$0xff]
    %v76 = vld [vmem:[%s0 + $0x178] sm:$0xff]
    %v77 = vld [vmem:[%s0 + $0x180] sm:$0xff]
    %v78 = vld [vmem:[%s0 + $0x188] sm:$0xff]
    %v79 = vld [vmem:[%s0 + $0x190] sm:$0xff]
    %v80 = vld [vmem:[%s0 + $0x198] sm:$0xff]
    %v81 = vld [vmem:[%s0 + $0x1a0] sm:$0xff]
    %v82 = vld [vmem:[%s0 + $0x1a8] sm:$0xff]
    %v83 = vld [vmem:[%s0 + $0x1b0] sm:$0xff]
    %v84 = vld [vmem:[%s0 + $0x1b8] sm:$0xff]
    %v85 = vld [vmem:[%s0 + $0x1c0] sm:$0xff]
    %v86 = vld [vmem:[%s0 + $0x1c8] sm:$0xff]
    %v87 = vld [vmem:[%s0 + $0x1d0] sm:$0xff]
    %v88 = vld [vmem:[%s0 + $0x1d8] sm:$0xff]
    %v89 = vld [vmem:[%s0 + $0x1e0] sm:$0xff]
    %v90 = vld [vmem:[%s0 + $0x1e8] sm:$0xff]
    %v91 = vld [vmem:[%s0 + $0x1f0] sm:$0xff]
    %v92 = vld [vmem:[%s0 + $0x1f8] sm:$0xff]
    %v93 = vlaneseq
    %v94 = vand.u32 %v93, 127
    %95 = vset.pattern.permute.xlu0 0
    %96 = vperm.xlu0 %95, %v29
    %v97 = vpop.permute.xlu0 %96
    %98 = vset.pattern.permute.xlu0 0
    %99 = vperm.xlu0 %98, %v30
    %v100 = vpop.permute.xlu0 %99
    %101 = vset.pattern.permute.xlu0 0
    %102 = vperm.xlu0 %101, %v31
    %v103 = vpop.permute.xlu0 %102
    %104 = vset.pattern.permute.xlu0 0
    %105 = vperm.xlu0 %104, %v32
    %v106 = vpop.permute.xlu0 %105
    %107 = vset.pattern.permute.xlu0 0
    %108 = vperm.xlu0 %107, %v33
    %v109 = vpop.permute.xlu0 %108
    %110 = vset.pattern.permute.xlu0 0
    %111 = vperm.xlu0 %110, %v34
    %v112 = vpop.permute.xlu0 %111
    %113 = vset.pattern.permute.xlu0 0
    %114 = vperm.xlu0 %113, %v35
    %v115 = vpop.permute.xlu0 %114
    %116 = vset.pattern.permute.xlu0 0
    %117 = vperm.xlu0 %116, %v36
    %v118 = vpop.permute.xlu0 %117
    %119 = vset.pattern.permute.xlu0 0
    %120 = vperm.xlu0 %119, %v37
    %v121 = vpop.permute.xlu0 %120
    %122 = vset.pattern.permute.xlu0 0
    %123 = vperm.xlu0 %122, %v38
    %v124 = vpop.permute.xlu0 %123
    %125 = vset.pattern.permute.xlu0 0
    %126 = vperm.xlu0 %125, %v39
    %v127 = vpop.permute.xlu0 %126
    %128 = vset.pattern.permute.xlu0 0
    %129 = vperm.xlu0 %128, %v40
    %v130 = vpop.permute.xlu0 %129
    %131 = vset.pattern.permute.xlu0 0
    %132 = vperm.xlu0 %131, %v41
    %v133 = vpop.permute.xlu0 %132
    %134 = vset.pattern.permute.xlu0 0
    %135 = vperm.xlu0 %134, %v42
    %v136 = vpop.permute.xlu0 %135
    %137 = vset.pattern.permute.xlu0 0
    %138 = vperm.xlu0 %137, %v43
    %v139 = vpop.permute.xlu0 %138
    %140 = vset.pattern.permute.xlu0 0
    %141 = vperm.xlu0 %140, %v44
    %v142 = vpop.permute.xlu0 %141
    %143 = vset.pattern.permute.xlu0 0
    %144 = vperm.xlu0 %143, %v45
    %v145 = vpop.permute.xlu0 %144
    %146 = vset.pattern.permute.xlu0 0
    %147 = vperm.xlu0 %146, %v46
    %v148 = vpop.permute.xlu0 %147
    %149 = vset.pattern.permute.xlu0 0
    %150 = vperm.xlu0 %149, %v47
    %v151 = vpop.permute.xlu0 %150
    %152 = vset.pattern.permute.xlu0 0
    %153 = vperm.xlu0 %152, %v48
    %v154 = vpop.permute.xlu0 %153
    %155 = vset.pattern.permute.xlu0 0
    %156 = vperm.xlu0 %155, %v49
    %v157 = vpop.permute.xlu0 %156
    %158 = vset.pattern.permute.xlu0 0
    %159 = vperm.xlu0 %158, %v50
    %v160 = vpop.permute.xlu0 %159
    %161 = vset.pattern.permute.xlu0 0
    %162 = vperm.xlu0 %161, %v51
    %v163 = vpop.permute.xlu0 %162
    %164 = vset.pattern.permute.xlu0 0
    %165 = vperm.xlu0 %164, %v52
    %v166 = vpop.permute.xlu0 %165
    %167 = vset.pattern.permute.xlu0 0
    %168 = vperm.xlu0 %167, %v53
    %v169 = vpop.permute.xlu0 %168
    %170 = vset.pattern.permute.xlu0 0
    %171 = vperm.xlu0 %170, %v54
    %v172 = vpop.permute.xlu0 %171
    %173 = vset.pattern.permute.xlu0 0
    %174 = vperm.xlu0 %173, %v55
    %v175 = vpop.permute.xlu0 %174
    %176 = vset.pattern.permute.xlu0 0
    %177 = vperm.xlu0 %176, %v56
    %v178 = vpop.permute.xlu0 %177
    %179 = vset.pattern.permute.xlu0 0
    %180 = vperm.xlu0 %179, %v57
    %v181 = vpop.permute.xlu0 %180
    %182 = vset.pattern.permute.xlu0 0
    %183 = vperm.xlu0 %182, %v58
    %v184 = vpop.permute.xlu0 %183
    %185 = vset.pattern.permute.xlu0 0
    %186 = vperm.xlu0 %185, %v59
    %v187 = vpop.permute.xlu0 %186
    %188 = vset.pattern.permute.xlu0 0
    %189 = vperm.xlu0 %188, %v60
    %v190 = vpop.permute.xlu0 %189
    %191 = vset.pattern.permute.xlu0 0
    %192 = vperm.xlu0 %191, %v61
    %v193 = vpop.permute.xlu0 %192
    %194 = vset.pattern.permute.xlu0 0
    %195 = vperm.xlu0 %194, %v62
    %v196 = vpop.permute.xlu0 %195
    %197 = vset.pattern.permute.xlu0 0
    %198 = vperm.xlu0 %197, %v63
    %v199 = vpop.permute.xlu0 %198
    %200 = vset.pattern.permute.xlu0 0
    %201 = vperm.xlu0 %200, %v64
    %v202 = vpop.permute.xlu0 %201
    %203 = vset.pattern.permute.xlu0 0
    %204 = vperm.xlu0 %203, %v65
    %v205 = vpop.permute.xlu0 %204
    %206 = vset.pattern.permute.xlu0 0
    %207 = vperm.xlu0 %206, %v66
    %v208 = vpop.permute.xlu0 %207
    %209 = vset.pattern.permute.xlu0 0
    %210 = vperm.xlu0 %209, %v67
    %v211 = vpop.permute.xlu0 %210
    %212 = vset.pattern.permute.xlu0 0
    %213 = vperm.xlu0 %212, %v68
    %v214 = vpop.permute.xlu0 %213
    %215 = vset.pattern.permute.xlu0 0
    %216 = vperm.xlu0 %215, %v69
    %v217 = vpop.permute.xlu0 %216
    %218 = vset.pattern.permute.xlu0 0
    %219 = vperm.xlu0 %218, %v70
    %v220 = vpop.permute.xlu0 %219
    %221 = vset.pattern.permute.xlu0 0
    %222 = vperm.xlu0 %221, %v71
    %v223 = vpop.permute.xlu0 %222
    %224 = vset.pattern.permute.xlu0 0
    %225 = vperm.xlu0 %224, %v72
    %v226 = vpop.permute.xlu0 %225
    %227 = vset.pattern.permute.xlu0 0
    %228 = vperm.xlu0 %227, %v73
    %v229 = vpop.permute.xlu0 %228
    %230 = vset.pattern.permute.xlu0 0
    %231 = vperm.xlu0 %230, %v74
    %v232 = vpop.permute.xlu0 %231
    %233 = vset.pattern.permute.xlu0 0
    %234 = vperm.xlu0 %233, %v75
    %v235 = vpop.permute.xlu0 %234
    %236 = vset.pattern.permute.xlu0 0
    %237 = vperm.xlu0 %236, %v76
    %v238 = vpop.permute.xlu0 %237
    %239 = vset.pattern.permute.xlu0 0
    %240 = vperm.xlu0 %239, %v77
    %v241 = vpop.permute.xlu0 %240
    %242 = vset.pattern.permute.xlu0 0
    %243 = vperm.xlu0 %242, %v78
    %v244 = vpop.permute.xlu0 %243
    %245 = vset.pattern.permute.xlu0 0
    %246 = vperm.xlu0 %245, %v79
    %v247 = vpop.permute.xlu0 %246
    %248 = vset.pattern.permute.xlu0 0
    %249 = vperm.xlu0 %248, %v80
    %v250 = vpop.permute.xlu0 %249
    %251 = vset.pattern.permute.xlu0 0
    %252 = vperm.xlu0 %251, %v81
    %v253 = vpop.permute.xlu0 %252
    %254 = vset.pattern.permute.xlu0 0
    %255 = vperm.xlu0 %254, %v82
    %v256 = vpop.permute.xlu0 %255
    %257 = vset.pattern.permute.xlu0 0
    %258 = vperm.xlu0 %257, %v83
    %v259 = vpop.permute.xlu0 %258
    %260 = vset.pattern.permute.xlu0 0
    %261 = vperm.xlu0 %260, %v84
    %v262 = vpop.permute.xlu0 %261
    %263 = vset.pattern.permute.xlu0 0
    %264 = vperm.xlu0 %263, %v85
    %v265 = vpop.permute.xlu0 %264
    %266 = vset.pattern.permute.xlu0 0
    %267 = vperm.xlu0 %266, %v86
    %v268 = vpop.permute.xlu0 %267
    %269 = vset.pattern.permute.xlu0 0
    %270 = vperm.xlu0 %269, %v87
    %v271 = vpop.permute.xlu0 %270
    %272 = vset.pattern.permute.xlu0 0
    %273 = vperm.xlu0 %272, %v88
    %v274 = vpop.permute.xlu0 %273
    %275 = vset.pattern.permute.xlu0 0
    %276 = vperm.xlu0 %275, %v89
    %v277 = vpop.permute.xlu0 %276
    %278 = vset.pattern.permute.xlu0 0
    %279 = vperm.xlu0 %278, %v90
    %v280 = vpop.permute.xlu0 %279
    %281 = vset.pattern.permute.xlu0 0
    %282 = vperm.xlu0 %281, %v91
    %v283 = vpop.permute.xlu0 %282
    %284 = vset.pattern.permute.xlu0 0
    %285 = vperm.xlu0 %284, %v92
    %v286 = vpop.permute.xlu0 %285
    %vm287 = vcmp.eq.s32.totalorder %v94, %v97
    %vm288 = vcmp.eq.s32.totalorder %v94, %v100
    %vm289 = vcmp.eq.s32.totalorder %v94, %v103
    %vm290 = vcmp.eq.s32.totalorder %v94, %v106
    %vm291 = vcmp.eq.s32.totalorder %v94, %v109
    %vm292 = vcmp.eq.s32.totalorder %v94, %v112
    %vm293 = vcmp.eq.s32.totalorder %v94, %v115
    %vm294 = vcmp.eq.s32.totalorder %v94, %v118
    %vm295 = vcmp.eq.s32.totalorder %v94, %v121
    %vm296 = vcmp.eq.s32.totalorder %v94, %v124
    %vm297 = vcmp.eq.s32.totalorder %v94, %v127
    %vm298 = vcmp.eq.s32.totalorder %v94, %v130
    %vm299 = vcmp.eq.s32.totalorder %v94, %v133
    %vm300 = vcmp.eq.s32.totalorder %v94, %v136
    %vm301 = vcmp.eq.s32.totalorder %v94, %v139
    %vm302 = vcmp.eq.s32.totalorder %v94, %v142
    %vm303 = vcmp.eq.s32.totalorder %v94, %v145
    %vm304 = vcmp.eq.s32.totalorder %v94, %v148
    %vm305 = vcmp.eq.s32.totalorder %v94, %v151
    %vm306 = vcmp.eq.s32.totalorder %v94, %v154
    %vm307 = vcmp.eq.s32.totalorder %v94, %v157
    %vm308 = vcmp.eq.s32.totalorder %v94, %v160
    %vm309 = vcmp.eq.s32.totalorder %v94, %v163
    %vm310 = vcmp.eq.s32.totalorder %v94, %v166
    %vm311 = vcmp.eq.s32.totalorder %v94, %v169
    %vm312 = vcmp.eq.s32.totalorder %v94, %v172
    %vm313 = vcmp.eq.s32.totalorder %v94, %v175
    %vm314 = vcmp.eq.s32.totalorder %v94, %v178
    %vm315 = vcmp.eq.s32.totalorder %v94, %v181
    %vm316 = vcmp.eq.s32.totalorder %v94, %v184
    %vm317 = vcmp.eq.s32.totalorder %v94, %v187
    %vm318 = vcmp.eq.s32.totalorder %v94, %v190
    %vm319 = vcmp.eq.s32.totalorder %v94, %v193
    %vm320 = vcmp.eq.s32.totalorder %v94, %v196
    %vm321 = vcmp.eq.s32.totalorder %v94, %v199
    %vm322 = vcmp.eq.s32.totalorder %v94, %v202
    %vm323 = vcmp.eq.s32.totalorder %v94, %v205
    %vm324 = vcmp.eq.s32.totalorder %v94, %v208
    %vm325 = vcmp.eq.s32.totalorder %v94, %v211
    %vm326 = vcmp.eq.s32.totalorder %v94, %v214
    %vm327 = vcmp.eq.s32.totalorder %v94, %v217
    %vm328 = vcmp.eq.s32.totalorder %v94, %v220
    %vm329 = vcmp.eq.s32.totalorder %v94, %v223
    %vm330 = vcmp.eq.s32.totalorder %v94, %v226
    %vm331 = vcmp.eq.s32.totalorder %v94, %v229
    %vm332 = vcmp.eq.s32.totalorder %v94, %v232
    %vm333 = vcmp.eq.s32.totalorder %v94, %v235
    %vm334 = vcmp.eq.s32.totalorder %v94, %v238
    %vm335 = vcmp.eq.s32.totalorder %v94, %v241
    %vm336 = vcmp.eq.s32.totalorder %v94, %v244
    %vm337 = vcmp.eq.s32.totalorder %v94, %v247
    %vm338 = vcmp.eq.s32.totalorder %v94, %v250
    %vm339 = vcmp.eq.s32.totalorder %v94, %v253
    %vm340 = vcmp.eq.s32.totalorder %v94, %v256
    %vm341 = vcmp.eq.s32.totalorder %v94, %v259
    %vm342 = vcmp.eq.s32.totalorder %v94, %v262
    %vm343 = vcmp.eq.s32.totalorder %v94, %v265
    %vm344 = vcmp.eq.s32.totalorder %v94, %v268
    %vm345 = vcmp.eq.s32.totalorder %v94, %v271
    %vm346 = vcmp.eq.s32.totalorder %v94, %v274
    %vm347 = vcmp.eq.s32.totalorder %v94, %v277
    %vm348 = vcmp.eq.s32.totalorder %v94, %v280
    %vm349 = vcmp.eq.s32.totalorder %v94, %v283
    %vm350 = vcmp.eq.s32.totalorder %v94, %v286
    %v351 = vsel %vm287, 1, 0
    %v352 = vsel %vm288, 1, 0
    %v353 = vsel %vm289, 1, 0
    %v354 = vsel %vm290, 1, 0
    %v355 = vsel %vm291, 1, 0
    %v356 = vsel %vm292, 1, 0
    %v357 = vsel %vm293, 1, 0
    %v358 = vsel %vm294, 1, 0
    %v359 = vsel %vm295, 1, 0
    %v360 = vsel %vm296, 1, 0
    %v361 = vsel %vm297, 1, 0
    %v362 = vsel %vm298, 1, 0
    %v363 = vsel %vm299, 1, 0
    %v364 = vsel %vm300, 1, 0
    %v365 = vsel %vm301, 1, 0
    %v366 = vsel %vm302, 1, 0
    %v367 = vsel %vm303, 1, 0
    %v368 = vsel %vm304, 1, 0
    %v369 = vsel %vm305, 1, 0
    %v370 = vsel %vm306, 1, 0
    %v371 = vsel %vm307, 1, 0
    %v372 = vsel %vm308, 1, 0
    %v373 = vsel %vm309, 1, 0
    %v374 = vsel %vm310, 1, 0
    %v375 = vsel %vm311, 1, 0
    %v376 = vsel %vm312, 1, 0
    %v377 = vsel %vm313, 1, 0
    %v378 = vsel %vm314, 1, 0
    %v379 = vsel %vm315, 1, 0
    %v380 = vsel %vm316, 1, 0
    %v381 = vsel %vm317, 1, 0
    %v382 = vsel %vm318, 1, 0
    %v383 = vsel %vm319, 1, 0
    %v384 = vsel %vm320, 1, 0
    %v385 = vsel %vm321, 1, 0
    %v386 = vsel %vm322, 1, 0
    %v387 = vsel %vm323, 1, 0
    %v388 = vsel %vm324, 1, 0
    %v389 = vsel %vm325, 1, 0
    %v390 = vsel %vm326, 1, 0
    %v391 = vsel %vm327, 1, 0
    %v392 = vsel %vm328, 1, 0
    %v393 = vsel %vm329, 1, 0
    %v394 = vsel %vm330, 1, 0
    %v395 = vsel %vm331, 1, 0
    %v396 = vsel %vm332, 1, 0
    %v397 = vsel %vm333, 1, 0
    %v398 = vsel %vm334, 1, 0
    %v399 = vsel %vm335, 1, 0
    %v400 = vsel %vm336, 1, 0
    %v401 = vsel %vm337, 1, 0
    %v402 = vsel %vm338, 1, 0
    %v403 = vsel %vm339, 1, 0
    %v404 = vsel %vm340, 1, 0
    %v405 = vsel %vm341, 1, 0
    %v406 = vsel %vm342, 1, 0
    %v407 = vsel %vm343, 1, 0
    %v408 = vsel %vm344, 1, 0
    %v409 = vsel %vm345, 1, 0
    %v410 = vsel %vm346, 1, 0
    %v411 = vsel %vm347, 1, 0
    %v412 = vsel %vm348, 1, 0
    %v413 = vsel %vm349, 1, 0
    %v414 = vsel %vm350, 1, 0
    %v415 = vcvt.s32.f32 %v351
    %v416 = vcvt.s32.f32 %v352
    %v417 = vcvt.s32.f32 %v353
    %v418 = vcvt.s32.f32 %v354
    %v419 = vcvt.s32.f32 %v355
    %v420 = vcvt.s32.f32 %v356
    %v421 = vcvt.s32.f32 %v357
    %v422 = vcvt.s32.f32 %v358
    %v423 = vcvt.s32.f32 %v359
    %v424 = vcvt.s32.f32 %v360
    %v425 = vcvt.s32.f32 %v361
    %v426 = vcvt.s32.f32 %v362
    %v427 = vcvt.s32.f32 %v363
    %v428 = vcvt.s32.f32 %v364
    %v429 = vcvt.s32.f32 %v365
    %v430 = vcvt.s32.f32 %v366
    %v431 = vcvt.s32.f32 %v367
    %v432 = vcvt.s32.f32 %v368
    %v433 = vcvt.s32.f32 %v369
    %v434 = vcvt.s32.f32 %v370
    %v435 = vcvt.s32.f32 %v371
    %v436 = vcvt.s32.f32 %v372
    %v437 = vcvt.s32.f32 %v373
    %v438 = vcvt.s32.f32 %v374
    %v439 = vcvt.s32.f32 %v375
    %v440 = vcvt.s32.f32 %v376
    %v441 = vcvt.s32.f32 %v377
    %v442 = vcvt.s32.f32 %v378
    %v443 = vcvt.s32.f32 %v379
    %v444 = vcvt.s32.f32 %v380
    %v445 = vcvt.s32.f32 %v381
    %v446 = vcvt.s32.f32 %v382
    %v447 = vcvt.s32.f32 %v383
    %v448 = vcvt.s32.f32 %v384
    %v449 = vcvt.s32.f32 %v385
    %v450 = vcvt.s32.f32 %v386
    %v451 = vcvt.s32.f32 %v387
    %v452 = vcvt.s32.f32 %v388
    %v453 = vcvt.s32.f32 %v389
    %v454 = vcvt.s32.f32 %v390
    %v455 = vcvt.s32.f32 %v391
    %v456 = vcvt.s32.f32 %v392
    %v457 = vcvt.s32.f32 %v393
    %v458 = vcvt.s32.f32 %v394
    %v459 = vcvt.s32.f32 %v395
    %v460 = vcvt.s32.f32 %v396
    %v461 = vcvt.s32.f32 %v397
    %v462 = vcvt.s32.f32 %v398
    %v463 = vcvt.s32.f32 %v399
    %v464 = vcvt.s32.f32 %v400
    %v465 = vcvt.s32.f32 %v401
    %v466 = vcvt.s32.f32 %v402
    %v467 = vcvt.s32.f32 %v403
    %v468 = vcvt.s32.f32 %v404
    %v469 = vcvt.s32.f32 %v405
    %v470 = vcvt.s32.f32 %v406
    %v471 = vcvt.s32.f32 %v407
    %v472 = vcvt.s32.f32 %v408
    %v473 = vcvt.s32.f32 %v409
    %v474 = vcvt.s32.f32 %v410
    %v475 = vcvt.s32.f32 %v411
    %v476 = vcvt.s32.f32 %v412
    %v477 = vcvt.s32.f32 %v413
    %v478 = vcvt.s32.f32 %v414
    %v479 = vld [vmem:[#allocation2] sm:$0xff]
    %v480 = vld [vmem:[#allocation2 + $0x8] sm:$0xff]
    %v481 = vld [vmem:[#allocation2 + $0x10] sm:$0xff]
    %v482 = vld [vmem:[#allocation2 + $0x18] sm:$0xff]
    %v483 = vld [vmem:[#allocation2 + $0x20] sm:$0xff]
    %v484 = vld [vmem:[#allocation2 + $0x28] sm:$0xff]
    %v485 = vld [vmem:[#allocation2 + $0x30] sm:$0xff]
    %v486 = vld [vmem:[#allocation2 + $0x38] sm:$0xff]
    %v487 = vld [vmem:[#allocation2 + $0x40] sm:$0xff]
    %v488 = vld [vmem:[#allocation2 + $0x48] sm:$0xff]
    %v489 = vld [vmem:[#allocation2 + $0x50] sm:$0xff]
    %v490 = vld [vmem:[#allocation2 + $0x58] sm:$0xff]
    %v491 = vld [vmem:[#allocation2 + $0x60] sm:$0xff]
    %v492 = vld [vmem:[#allocation2 + $0x68] sm:$0xff]
    %v493 = vld [vmem:[#allocation2 + $0x70] sm:$0xff]
    %v494 = vld [vmem:[#allocation2 + $0x78] sm:$0xff]
    %495 = vmatprep.subr.mxu0 0.0
    %v496 = vand.u32 %v479, 4294901760
    %497 = vmatpush1.msra.mxu0 %v496
    %498 = vmatprep.subr.mxu0 0.0
    %v499 = vand.u32 %v480, 4294901760
    %500 = vmatpush1.msra.mxu0 %v499
    %501 = vmatprep.subr.mxu0 0.0
    %v502 = vand.u32 %v481, 4294901760
    %503 = vmatpush1.msra.mxu0 %v502
    %504 = vmatprep.subr.mxu0 0.0
    %v505 = vand.u32 %v482, 4294901760
    %506 = vmatpush1.msra.mxu0 %v505
    %507 = vmatprep.subr.mxu0 0.0
    %v508 = vand.u32 %v483, 4294901760
    %509 = vmatpush1.msra.mxu0 %v508
    %510 = vmatprep.subr.mxu0 0.0
    %v511 = vand.u32 %v484, 4294901760
    %512 = vmatpush1.msra.mxu0 %v511
    %513 = vmatprep.subr.mxu0 0.0
    %v514 = vand.u32 %v485, 4294901760
    %515 = vmatpush1.msra.mxu0 %v514
    %516 = vmatprep.subr.mxu0 0.0
    %v517 = vand.u32 %v486, 4294901760
    %518 = vmatpush1.msra.mxu0 %v517
    %519 = vmatprep.subr.mxu0 0.0
    %v520 = vand.u32 %v487, 4294901760
    %521 = vmatpush1.msra.mxu0 %v520
    %522 = vmatprep.subr.mxu0 0.0
    %v523 = vand.u32 %v488, 4294901760
    %524 = vmatpush1.msra.mxu0 %v523
    %525 = vmatprep.subr.mxu0 0.0
    %v526 = vand.u32 %v489, 4294901760
    %527 = vmatpush1.msra.mxu0 %v526
    %528 = vmatprep.subr.mxu0 0.0
    %v529 = vand.u32 %v490, 4294901760
    %530 = vmatpush1.msra.mxu0 %v529
    %531 = vmatprep.subr.mxu0 0.0
    %v532 = vand.u32 %v491, 4294901760
    %533 = vmatpush1.msra.mxu0 %v532
    %534 = vmatprep.subr.mxu0 0.0
    %v535 = vand.u32 %v492, 4294901760
    %536 = vmatpush1.msra.mxu0 %v535
    %537 = vmatprep.subr.mxu0 0.0
    %v538 = vand.u32 %v493, 4294901760
    %539 = vmatpush1.msra.mxu0 %v538
    %540 = vmatprep.subr.mxu0 0.0
    %v541 = vand.u32 %v494, 4294901760
    %542 = vmatpush1.msra.mxu0 %v541
    %543 = vmatprep.subr.mxu0 0.0
    %544 = vmatpush1.msra.mxu0 0.0
    %545 = vmatprep.subr.mxu0 0.0
    %546 = vmatpush1.msra.mxu0 0.0
    %547 = vmatprep.subr.mxu0 0.0
    %548 = vmatpush1.msra.mxu0 0.0
    %549 = vmatprep.subr.mxu0 0.0
    %550 = vmatpush1.msra.mxu0 0.0
    %551 = vmatprep.subr.mxu0 0.0
    %552 = vmatpush1.msra.mxu0 0.0
    %553 = vmatprep.subr.mxu0 0.0
    %554 = vmatpush1.msra.mxu0 0.0
    %555 = vmatprep.subr.mxu0 0.0
    %556 = vmatpush1.msra.mxu0 0.0
    %557 = vmatprep.subr.mxu0 0.0
    %558 = vmatpush1.msra.mxu0 0.0
    %559 = vmatprep.subr.mxu0 0.0
    %560 = vmatpush1.msra.mxu0 0.0
    %561 = vmatprep.subr.mxu0 0.0
    %562 = vmatpush1.msra.mxu0 0.0
    %563 = vmatprep.subr.mxu0 0.0
    %564 = vmatpush1.msra.mxu0 0.0
    %565 = vmatprep.subr.mxu0 0.0
    %566 = vmatpush1.msra.mxu0 0.0
    %567 = vmatprep.subr.mxu0 0.0
    %568 = vmatpush1.msra.mxu0 0.0
    %569 = vmatprep.subr.mxu0 0.0
    %570 = vmatpush1.msra.mxu0 0.0
    %571 = vmatprep.subr.mxu0 0.0
    %572 = vmatpush1.msra.mxu0 0.0
    %573 = vmatprep.subr.mxu0 0.0
    %574 = vmatpush1.msra.mxu0 0.0
    %575 = vmatprep.mubr.f32.mxu0 0.0
    %v576 = vand.u32 %v415, 4294901760
    %v577 = vsub.f32 %v415, %v576
    %v578 = vand.u32 %v577, 4294901760
    %v579 = vsub.f32 %v577, %v578
    %v580 = vand.u32 %v579, 4294901760
    %581 = vmatmul.mubr.f32.gmra.mrb[0].mxu0 %v580
    %v582 = vpop.f32.mrb[0].mxu0
    %v583 = vadd.f32 0.0, %v582
    %v584 = vpop.f32.mrb[0].mxu0
    %585 = vmatprep.mubr.f32.mxu0 0.0
    %v586 = vand.u32 %v416, 4294901760
    %v587 = vsub.f32 %v416, %v586
    %v588 = vand.u32 %v587, 4294901760
    %v589 = vsub.f32 %v587, %v588
    %v590 = vand.u32 %v589, 4294901760
    %591 = vmatmul.mubr.f32.gmra.mrb[0].mxu0 %v590
    %v592 = vpop.f32.mrb[0].mxu0
    %v593 = vadd.f32 0.0, %v592
    %v594 = vpop.f32.mrb[0].mxu0
    %595 = vmatprep.mubr.f32.mxu0 0.0
    %v596 = vand.u32 %v417, 4294901760
    %v597 = vsub.f32 %v417, %v596
    %v598 = vand.u32 %v597, 4294901760
    %v599 = vsub.f32 %v597, %v598
    %v600 = vand.u32 %v599, 4294901760
    %601 = vmatmul.mubr.f32.gmra.mrb[0].mxu0 %v600
    %v602 = vpop.f32.mrb[0].mxu0
    %v603 = vadd.f32 0.0, %v602
    %v604 = vpop.f32.mrb[0].mxu0
    %605 = vmatprep.mubr.f32.mxu0 0.0
    %v606 = vand.u32 %v418, 4294901760
    %v607 = vsub.f32 %v418, %v606
    %v608 = vand.u32 %v607, 4294901760
    %v609 = vsub.f32 %v607, %v608
    %v610 = vand.u32 %v609, 4294901760
    %611 = vmatmul.mubr.f32.gmra.mrb[0].mxu0 %v610
    %v612 = vpop.f32.mrb[0].mxu0
    %v613 = vadd.f32 0.0, %v612
    %v614 = vpop.f32.mrb[0].mxu0
    %615 = vmatprep.mubr.f32.mxu0 0.0
    %v616 = vand.u32 %v419, 4294901760
    %v617 = vsub.f32 %v419, %v616
    %v618 = vand.u32 %v617, 4294901760
    %v619 = vsub.f32 %v617, %v618
    %v620 = vand.u32 %v619, 4294901760
    %621 = vmatmul.mubr.f32.gmra.mrb[0].mxu0 %v620
    %v622 = vpop.f32.mrb[0].mxu0
    %v623 = vadd.f32 0.0, %v622
    %v624 = vpop.f32.mrb[0].mxu0
    %625 = vmatprep.mubr.f32.mxu0 0.0
    %v626 = vand.u32 %v420, 4294901760
    %v627 = vsub.f32 %v420, %v626
    %v628 = vand.u32 %v627, 4294901760
    %v629 = vsub.f32 %v627, %v628
    %v630 = vand.u32 %v629, 4294901760
    %631 = vmatmul.mubr.f32.gmra.mrb[0].mxu0 %v630
    %v632 = vpop.f32.mrb[0].mxu0
    %v633 = vadd.f32 0.0, %v632
    %v634 = vpop.f32.mrb[0].mxu0
    %635 = vmatprep.mubr.f32.mxu0 0.0
    %v636 = vand.u32 %v421, 4294901760
    %v637 = vsub.f32 %v421, %v636
    %v638 = vand.u32 %v637, 4294901760
    %v639 = vsub.f32 %v637, %v638
    %v640 = vand.u32 %v639, 4294901760
    %641 = vmatmul.mubr.f32.gmra.mrb[0].mxu0 %v640
    %v642 = vpop.f32.mrb[0].mxu0
    %v643 = vadd.f32 0.0, %v642
    %v644 = vpop.f32.mrb[0].mxu0
    %645 = vmatprep.mubr.f32.mxu0 0.0
    %v646 = vand.u32 %v422, 4294901760
    %v647 = vsub.f32 %v422, %v646
    %v648 = vand.u32 %v647, 4294901760
    %v649 = vsub.f32 %v647, %v648
    %v650 = vand.u32 %v649, 4294901760
    %651 = vmatmul.mubr.f32.gmra.mrb[0].mxu0 %v650
    %v652 = vpop.f32.mrb[0].mxu0
    %v653 = vadd.f32 0.0, %v652
    %v654 = vpop.f32.mrb[0].mxu0
    %655 = vmatprep.mubr.f32.mxu0 0.0
    %v656 = vand.u32 %v423, 4294901760
    %v657 = vsub.f32 %v423, %v656
    %v658 = vand.u32 %v657, 4294901760
    %v659 = vsub.f32 %v657, %v658
    %v660 = vand.u32 %v659, 4294901760
    %661 = vmatmul.mubr.f32.gmra.mrb[0].mxu0 %v660
    %v662 = vpop.f32.mrb[0].mxu0
    %v663 = vadd.f32 0.0, %v662
    %v664 = vpop.f32.mrb[0].mxu0
    %665 = vmatprep.mubr.f32.mxu0 0.0
    %v666 = vand.u32 %v424, 4294901760
    %v667 = vsub.f32 %v424, %v666
    %v668 = vand.u32 %v667, 4294901760
    %v669 = vsub.f32 %v667, %v668
    %v670 = vand.u32 %v669, 4294901760
    %671 = vmatmul.mubr.f32.gmra.mrb[0].mxu0 %v670
    %v672 = vpop.f32.mrb[0].mxu0
    %v673 = vadd.f32 0.0, %v672
    %v674 = vpop.f32.mrb[0].mxu0
    %675 = vmatprep.mubr.f32.mxu0 0.0
    %v676 = vand.u32 %v425, 4294901760
    %v677 = vsub.f32 %v425, %v676
    %v678 = vand.u32 %v677, 4294901760
    %v679 = vsub.f32 %v677, %v678
    %v680 = vand.u32 %v679, 4294901760
    %681 = vmatmul.mubr.f32.gmra.mrb[0].mxu0 %v680
    %v682 = vpop.f32.mrb[0].mxu0
    %v683 = vadd.f32 0.0, %v682
    %v684 = vpop.f32.mrb[0].mxu0
    %685 = vmatprep.mubr.f32.mxu0 0.0
    %v686 = vand.u32 %v426, 4294901760
    %v687 = vsub.f32 %v426, %v686
    %v688 = vand.u32 %v687, 4294901760
    %v689 = vsub.f32 %v687, %v688
    %v690 = vand.u32 %v689, 4294901760
    %691 = vmatmul.mubr.f32.gmra.mrb[0].mxu0 %v690
    %v692 = vpop.f32.mrb[0].mxu0
    %v693 = vadd.f32 0.0, %v692
    %v694 = vpop.f32.mrb[0].mxu0
    %695 = vmatprep.mubr.f32.mxu0 0.0
    %v696 = vand.u32 %v427, 4294901760
    %v697 = vsub.f32 %v427, %v696
    %v698 = vand.u32 %v697, 4294901760
    %v699 = vsub.f32 %v697, %v698
    %v700 = vand.u32 %v699, 4294901760
    %701 = vmatmul.mubr.f32.gmra.mrb[0].mxu0 %v700
    %v702 = vpop.f32.mrb[0].mxu0
    %v703 = vadd.f32 0.0, %v702
    %v704 = vpop.f32.mrb[0].mxu0
    %705 = vmatprep.mubr.f32.mxu0 0.0
    %v706 = vand.u32 %v428, 4294901760
    %v707 = vsub.f32 %v428, %v706
    %v708 = vand.u32 %v707, 4294901760
    %v709 = vsub.f32 %v707, %v708
    %v710 = vand.u32 %v709, 4294901760
    %711 = vmatmul.mubr.f32.gmra.mrb[0].mxu0 %v710
    %v712 = vpop.f32.mrb[0].mxu0
    %v713 = vadd.f32 0.0, %v712
    %v714 = vpop.f32.mrb[0].mxu0
    %715 = vmatprep.mubr.f32.mxu0 0.0
    %v716 = vand.u32 %v429, 4294901760
    %v717 = vsub.f32 %v429, %v716
    %v718 = vand.u32 %v717, 4294901760
    %v719 = vsub.f32 %v717, %v718
    %v720 = vand.u32 %v719, 4294901760
    %721 = vmatmul.mubr.f32.gmra.mrb[0].mxu0 %v720
    %v722 = vpop.f32.mrb[0].mxu0
    %v723 = vadd.f32 0.0, %v722
    %v724 = vpop.f32.mrb[0].mxu0
    %725 = vmatprep.mubr.f32.mxu0 0.0
    %v726 = vand.u32 %v430, 4294901760
    %v727 = vsub.f32 %v430, %v726
    %v728 = vand.u32 %v727, 4294901760
    %v729 = vsub.f32 %v727, %v728
    %v730 = vand.u32 %v729, 4294901760
    %731 = vmatmul.mubr.f32.gmra.mrb[0].mxu0 %v730
    %v732 = vpop.f32.mrb[0].mxu0
    %v733 = vadd.f32 0.0, %v732
    %v734 = vpop.f32.mrb[0].mxu0
    %735 = vmatprep.mubr.f32.mxu0 0.0
    %v736 = vand.u32 %v431, 4294901760
    %v737 = vsub.f32 %v431, %v736
    %v738 = vand.u32 %v737, 4294901760
    %v739 = vsub.f32 %v737, %v738
    %v740 = vand.u32 %v739, 4294901760
    %741 = vmatmul.mubr.f32.gmra.mrb[0].mxu0 %v740
    %v742 = vpop.f32.mrb[0].mxu0
    %v743 = vadd.f32 0.0, %v742
    %v744 = vpop.f32.mrb[0].mxu0
    %745 = vmatprep.mubr.f32.mxu0 0.0
    %v746 = vand.u32 %v432, 4294901760
    %v747 = vsub.f32 %v432, %v746
    %v748 = vand.u32 %v747, 4294901760
    %v749 = vsub.f32 %v747, %v748
    %v750 = vand.u32 %v749, 4294901760
    %751 = vmatmul.mubr.f32.gmra.mrb[0].mxu0 %v750
    %v752 = vpop.f32.mrb[0].mxu0
    %v753 = vadd.f32 0.0, %v752
    %v754 = vpop.f32.mrb[0].mxu0
    %755 = vmatprep.mubr.f32.mxu0 0.0
    %v756 = vand.u32 %v433, 4294901760
    %v757 = vsub.f32 %v433, %v756
    %v758 = vand.u32 %v757, 4294901760
    %v759 = vsub.f32 %v757, %v758
    %v760 = vand.u32 %v759, 4294901760
    %761 = vmatmul.mubr.f32.gmra.mrb[0].mxu0 %v760
    %v762 = vpop.f32.mrb[0].mxu0
    %v763 = vadd.f32 0.0, %v762
    %v764 = vpop.f32.mrb[0].mxu0
    %765 = vmatprep.mubr.f32.mxu0 0.0
    %v766 = vand.u32 %v434, 4294901760
    %v767 = vsub.f32 %v434, %v766
    %v768 = vand.u32 %v767, 4294901760
    %v769 = vsub.f32 %v767, %v768
    %v770 = vand.u32 %v769, 4294901760
    %771 = vmatmul.mubr.f32.gmra.mrb[0].mxu0 %v770
    %v772 = vpop.f32.mrb[0].mxu0
    %v773 = vadd.f32 0.0, %v772
    %v774 = vpop.f32.mrb[0].mxu0
    %775 = vmatprep.mubr.f32.mxu0 0.0
    %v776 = vand.u32 %v435, 4294901760
    %v777 = vsub.f32 %v435, %v776
    %v778 = vand.u32 %v777, 4294901760
    %v779 = vsub.f32 %v777, %v778
    %v780 = vand.u32 %v779, 4294901760
    %781 = vmatmul.mubr.f32.gmra.mrb[0].mxu0 %v780
    %v782 = vpop.f32.mrb[0].mxu0
    %v783 = vadd.f32 0.0, %v782
    %v784 = vpop.f32.mrb[0].mxu0
    %785 = vmatprep.mubr.f32.mxu0 0.0
    %v786 = vand.u32 %v436, 4294901760
    %v787 = vsub.f32 %v436, %v786
    %v788 = vand.u32 %v787, 4294901760
    %v789 = vsub.f32 %v787, %v788
    %v790 = vand.u32 %v789, 4294901760
    %791 = vmatmul.mubr.f32.gmra.mrb[0].mxu0 %v790
    %v792 = vpop.f32.mrb[0].mxu0
    %v793 = vadd.f32 0.0, %v792
    %v794 = vpop.f32.mrb[0].mxu0
    %795 = vmatprep.mubr.f32.mxu0 0.0
    %v796 = vand.u32 %v437, 4294901760
    %v797 = vsub.f32 %v437, %v796
    %v798 = vand.u32 %v797, 4294901760
    %v799 = vsub.f32 %v797, %v798
    %v800 = vand.u32 %v799, 4294901760
    %801 = vmatmul.mubr.f32.gmra.mrb[0].mxu0 %v800
    %v802 = vpop.f32.mrb[0].mxu0
    %v803 = vadd.f32 0.0, %v802
    %v804 = vpop.f32.mrb[0].mxu0
    %805 = vmatprep.mubr.f32.mxu0 0.0
    %v806 = vand.u32 %v438, 4294901760
    %v807 = vsub.f32 %v438, %v806
    %v808 = vand.u32 %v807, 4294901760
    %v809 = vsub.f32 %v807, %v808
    %v810 = vand.u32 %v809, 4294901760
    %811 = vmatmul.mubr.f32.gmra.mrb[0].mxu0 %v810
    %v812 = vpop.f32.mrb[0].mxu0
    %v813 = vadd.f32 0.0, %v812
    %v814 = vpop.f32.mrb[0].mxu0
    %815 = vmatprep.mubr.f32.mxu0 0.0
    %v816 = vand.u32 %v439, 4294901760
    %v817 = vsub.f32 %v439, %v816
    %v818 = vand.u32 %v817, 4294901760
    %v819 = vsub.f32 %v817, %v818
    %v820 = vand.u32 %v819, 4294901760
    %821 = vmatmul.mubr.f32.gmra.mrb[0].mxu0 %v820
    %v822 = vpop.f32.mrb[0].mxu0
    %v823 = vadd.f32 0.0, %v822
    %v824 = vpop.f32.mrb[0].mxu0
    %825 = vmatprep.mubr.f32.mxu0 0.0
    %v826 = vand.u32 %v440, 4294901760
    %v827 = vsub.f32 %v440, %v826
    %v828 = vand.u32 %v827, 4294901760
    %v829 = vsub.f32 %v827, %v828
    %v830 = vand.u32 %v829, 4294901760
    %831 = vmatmul.mubr.f32.gmra.mrb[0].mxu0 %v830
    %v832 = vpop.f32.mrb[0].mxu0
    %v833 = vadd.f32 0.0, %v832
    %v834 = vpop.f32.mrb[0].mxu0
    %835 = vmatprep.mubr.f32.mxu0 0.0
    %v836 = vand.u32 %v441, 4294901760
    %v837 = vsub.f32 %v441, %v836
    %v838 = vand.u32 %v837, 4294901760
    %v839 = vsub.f32 %v837, %v838
    %v840 = vand.u32 %v839, 4294901760
    %841 = vmatmul.mubr.f32.gmra.mrb[0].mxu0 %v840
    %v842 = vpop.f32.mrb[0].mxu0
    %v843 = vadd.f32 0.0, %v842
    %v844 = vpop.f32.mrb[0].mxu0
    %845 = vmatprep.mubr.f32.mxu0 0.0
    %v846 = vand.u32 %v442, 4294901760
    %v847 = vsub.f32 %v442, %v846
    %v848 = vand.u32 %v847, 4294901760
    %v849 = vsub.f32 %v847, %v848
    %v850 = vand.u32 %v849, 4294901760
    %851 = vmatmul.mubr.f32.gmra.mrb[0].mxu0 %v850
    %v852 = vpop.f32.mrb[0].mxu0
    %v853 = vadd.f32 0.0, %v852
    %v854 = vpop.f32.mrb[0].mxu0
    %855 = vmatprep.mubr.f32.mxu0 0.0
    %v856 = vand.u32 %v443, 4294901760
    %v857 = vsub.f32 %v443, %v856
    %v858 = vand.u32 %v857, 4294901760
    %v859 = vsub.f32 %v857, %v858
    %v860 = vand.u32 %v859, 4294901760
    %861 = vmatmul.mubr.f32.gmra.mrb[0].mxu0 %v860
    %v862 = vpop.f32.mrb[0].mxu0
    %v863 = vadd.f32 0.0, %v862
    %v864 = vpop.f32.mrb[0].mxu0
    %865 = vmatprep.mubr.f32.mxu0 0.0
    %v866 = vand.u32 %v444, 4294901760
    %v867 = vsub.f32 %v444, %v866
    %v868 = vand.u32 %v867, 4294901760
    %v869 = vsub.f32 %v867, %v868
    %v870 = vand.u32 %v869, 4294901760
    %871 = vmatmul.mubr.f32.gmra.mrb[0].mxu0 %v870
    %v872 = vpop.f32.mrb[0].mxu0
    %v873 = vadd.f32 0.0, %v872
    %v874 = vpop.f32.mrb[0].mxu0
    %875 = vmatprep.mubr.f32.mxu0 0.0
    %v876 = vand.u32 %v445, 4294901760
    %v877 = vsub.f32 %v445, %v876
    %v878 = vand.u32 %v877, 4294901760
    %v879 = vsub.f32 %v877, %v878
    %v880 = vand.u32 %v879, 4294901760
    %881 = vmatmul.mubr.f32.gmra.mrb[0].mxu0 %v880
    %v882 = vpop.f32.mrb[0].mxu0
    %v883 = vadd.f32 0.0, %v882
    %v884 = vpop.f32.mrb[0].mxu0
    %885 = vmatprep.mubr.f32.mxu0 0.0
    %v886 = vand.u32 %v446, 4294901760
    %v887 = vsub.f32 %v446, %v886
    %v888 = vand.u32 %v887, 4294901760
    %v889 = vsub.f32 %v887, %v888
    %v890 = vand.u32 %v889, 4294901760
    %891 = vmatmul.mubr.f32.gmra.mrb[0].mxu0 %v890
    %v892 = vpop.f32.mrb[0].mxu0
    %v893 = vadd.f32 0.0, %v892
    %v894 = vpop.f32.mrb[0].mxu0
    %895 = vmatprep.mubr.f32.mxu0 0.0
    %v896 = vand.u32 %v447, 4294901760
    %v897 = vsub.f32 %v447, %v896
    %v898 = vand.u32 %v897, 4294901760
    %v899 = vsub.f32 %v897, %v898
    %v900 = vand.u32 %v899, 4294901760
    %901 = vmatmul.mubr.f32.gmra.mrb[0].mxu0 %v900
    %v902 = vpop.f32.mrb[0].mxu0
    %v903 = vadd.f32 0.0, %v902
    %v904 = vpop.f32.mrb[0].mxu0
    %905 = vmatprep.mubr.f32.mxu0 0.0
    %v906 = vand.u32 %v448, 4294901760
    %v907 = vsub.f32 %v448, %v906
    %v908 = vand.u32 %v907, 4294901760
    %v909 = vsub.f32 %v907, %v908
    %v910 = vand.u32 %v909, 4294901760
    %911 = vmatmul.mubr.f32.gmra.mrb[0].mxu0 %v910
    %v912 = vpop.f32.mrb[0].mxu0
    %v913 = vadd.f32 0.0, %v912
    %v914 = vpop.f32.mrb[0].mxu0
    %915 = vmatprep.mubr.f32.mxu0 0.0
    %v916 = vand.u32 %v449, 4294901760
    %v917 = vsub.f32 %v449, %v916
    %v918 = vand.u32 %v917, 4294901760
    %v919 = vsub.f32 %v917, %v918
    %v920 = vand.u32 %v919, 4294901760
    %921 = vmatmul.mubr.f32.gmra.mrb[0].mxu0 %v920
    %v922 = vpop.f32.mrb[0].mxu0
    %v923 = vadd.f32 0.0, %v922
    %v924 = vpop.f32.mrb[0].mxu0
    %925 = vmatprep.mubr.f32.mxu0 0.0
    %v926 = vand.u32 %v450, 4294901760
    %v927 = vsub.f32 %v450, %v926
    %v928 = vand.u32 %v927, 4294901760
    %v929 = vsub.f32 %v927, %v928
    %v930 = vand.u32 %v929, 4294901760
    %931 = vmatmul.mubr.f32.gmra.mrb[0].mxu0 %v930
    %v932 = vpop.f32.mrb[0].mxu0
    %v933 = vadd.f32 0.0, %v932
    %v934 = vpop.f32.mrb[0].mxu0
    %935 = vmatprep.mubr.f32.mxu0 0.0
    %v936 = vand.u32 %v451, 4294901760
    %v937 = vsub.f32 %v451, %v936
    %v938 = vand.u32 %v937, 4294901760
    %v939 = vsub.f32 %v937, %v938
    %v940 = vand.u32 %v939, 4294901760
    %941 = vmatmul.mubr.f32.gmra.mrb[0].mxu0 %v940
    %v942 = vpop.f32.mrb[0].mxu0
    %v943 = vadd.f32 0.0, %v942
    %v944 = vpop.f32.mrb[0].mxu0
    %945 = vmatprep.mubr.f32.mxu0 0.0
    %v946 = vand.u32 %v452, 4294901760
    %v947 = vsub.f32 %v452, %v946
    %v948 = vand.u32 %v947, 4294901760
    %v949 = vsub.f32 %v947, %v948
    %v950 = vand.u32 %v949, 4294901760
    %951 = vmatmul.mubr.f32.gmra.mrb[0].mxu0 %v950
    %v952 = vpop.f32.mrb[0].mxu0
    %v953 = vadd.f32 0.0, %v952
    %v954 = vpop.f32.mrb[0].mxu0
    %955 = vmatprep.mubr.f32.mxu0 0.0
    %v956 = vand.u32 %v453, 4294901760
    %v957 = vsub.f32 %v453, %v956
    %v958 = vand.u32 %v957, 4294901760
    %v959 = vsub.f32 %v957, %v958
    %v960 = vand.u32 %v959, 4294901760
    %961 = vmatmul.mubr.f32.gmra.mrb[0].mxu0 %v960
    %v962 = vpop.f32.mrb[0].mxu0
    %v963 = vadd.f32 0.0, %v962
    %v964 = vpop.f32.mrb[0].mxu0
    %965 = vmatprep.mubr.f32.mxu0 0.0
    %v966 = vand.u32 %v454, 4294901760
    %v967 = vsub.f32 %v454, %v966
    %v968 = vand.u32 %v967, 4294901760
    %v969 = vsub.f32 %v967, %v968
    %v970 = vand.u32 %v969, 4294901760
    %971 = vmatmul.mubr.f32.gmra.mrb[0].mxu0 %v970
    %v972 = vpop.f32.mrb[0].mxu0
    %v973 = vadd.f32 0.0, %v972
    %v974 = vpop.f32.mrb[0].mxu0
    %975 = vmatprep.mubr.f32.mxu0 0.0
    %v976 = vand.u32 %v455, 4294901760
    %v977 = vsub.f32 %v455, %v976
    %v978 = vand.u32 %v977, 4294901760
    %v979 = vsub.f32 %v977, %v978
    %v980 = vand.u32 %v979, 4294901760
    %981 = vmatmul.mubr.f32.gmra.mrb[0].mxu0 %v980
    %v982 = vpop.f32.mrb[0].mxu0
    %v983 = vadd.f32 0.0, %v982
    %v984 = vpop.f32.mrb[0].mxu0
    %985 = vmatprep.mubr.f32.mxu0 0.0
    %v986 = vand.u32 %v456, 4294901760
    %v987 = vsub.f32 %v456, %v986
    %v988 = vand.u32 %v987, 4294901760
    %v989 = vsub.f32 %v987, %v988
    %v990 = vand.u32 %v989, 4294901760
    %991 = vmatmul.mubr.f32.gmra.mrb[0].mxu0 %v990
    %v992 = vpop.f32.mrb[0].mxu0
    %v993 = vadd.f32 0.0, %v992
    %v994 = vpop.f32.mrb[0].mxu0
    %995 = vmatprep.mubr.f32.mxu0 0.0
    %v996 = vand.u32 %v457, 4294901760
    %v997 = vsub.f32 %v457, %v996
    %v998 = vand.u32 %v997, 4294901760
    %v999 = vsub.f32 %v997, %v998
    %v1000 = vand.u32 %v999, 4294901760
    %1001 = vmatmul.mubr.f32.gmra.mrb[0].mxu0 %v1000
    %v1002 = vpop.f32.mrb[0].mxu0
    %v1003 = vadd.f32 0.0, %v1002
    %v1004 = vpop.f32.mrb[0].mxu0
    %1005 = vmatprep.mubr.f32.mxu0 0.0
    %v1006 = vand.u32 %v458, 4294901760
    %v1007 = vsub.f32 %v458, %v1006
    %v1008 = vand.u32 %v1007, 4294901760
    %v1009 = vsub.f32 %v1007, %v1008
    %v1010 = vand.u32 %v1009, 4294901760
    %1011 = vmatmul.mubr.f32.gmra.mrb[0].mxu0 %v1010
    %v1012 = vpop.f32.mrb[0].mxu0
    %v1013 = vadd.f32 0.0, %v1012
    %v1014 = vpop.f32.mrb[0].mxu0
    %1015 = vmatprep.mubr.f32.mxu0 0.0
    %v1016 = vand.u32 %v459, 4294901760
    %v1017 = vsub.f32 %v459, %v1016
    %v1018 = vand.u32 %v1017, 4294901760
    %v1019 = vsub.f32 %v1017, %v1018
    %v1020 = vand.u32 %v1019, 4294901760
    %1021 = vmatmul.mubr.f32.gmra.mrb[0].mxu0 %v1020
    %v1022 = vpop.f32.mrb[0].mxu0
    %v1023 = vadd.f32 0.0, %v1022
    %v1024 = vpop.f32.mrb[0].mxu0
    %1025 = vmatprep.mubr.f32.mxu0 0.0
    %v1026 = vand.u32 %v460, 4294901760
    %v1027 = vsub.f32 %v460, %v1026
    %v1028 = vand.u32 %v1027, 4294901760
    %v1029 = vsub.f32 %v1027, %v1028
    %v1030 = vand.u32 %v1029, 4294901760
    %1031 = vmatmul.mubr.f32.gmra.mrb[0].mxu0 %v1030
    %v1032 = vpop.f32.mrb[0].mxu0
    %v1033 = vadd.f32 0.0, %v1032
    %v1034 = vpop.f32.mrb[0].mxu0
    %1035 = vmatprep.mubr.f32.mxu0 0.0
    %v1036 = vand.u32 %v461, 4294901760
    %v1037 = vsub.f32 %v461, %v1036
    %v1038 = vand.u32 %v1037, 4294901760
    %v1039 = vsub.f32 %v1037, %v1038
    %v1040 = vand.u32 %v1039, 4294901760
    %1041 = vmatmul.mubr.f32.gmra.mrb[0].mxu0 %v1040
    %v1042 = vpop.f32.mrb[0].mxu0
    %v1043 = vadd.f32 0.0, %v1042
    %v1044 = vpop.f32.mrb[0].mxu0
    %1045 = vmatprep.mubr.f32.mxu0 0.0
    %v1046 = vand.u32 %v462, 4294901760
    %v1047 = vsub.f32 %v462, %v1046
    %v1048 = vand.u32 %v1047, 4294901760
    %v1049 = vsub.f32 %v1047, %v1048
    %v1050 = vand.u32 %v1049, 4294901760
    %1051 = vmatmul.mubr.f32.gmra.mrb[0].mxu0 %v1050
    %v1052 = vpop.f32.mrb[0].mxu0
    %v1053 = vadd.f32 0.0, %v1052
    %v1054 = vpop.f32.mrb[0].mxu0
    %1055 = vmatprep.mubr.f32.mxu0 0.0
    %v1056 = vand.u32 %v463, 4294901760
    %v1057 = vsub.f32 %v463, %v1056
    %v1058 = vand.u32 %v1057, 4294901760
    %v1059 = vsub.f32 %v1057, %v1058
    %v1060 = vand.u32 %v1059, 4294901760
    %1061 = vmatmul.mubr.f32.gmra.mrb[0].mxu0 %v1060
    %v1062 = vpop.f32.mrb[0].mxu0
    %v1063 = vadd.f32 0.0, %v1062
    %v1064 = vpop.f32.mrb[0].mxu0
    %1065 = vmatprep.mubr.f32.mxu0 0.0
    %v1066 = vand.u32 %v464, 4294901760
    %v1067 = vsub.f32 %v464, %v1066
    %v1068 = vand.u32 %v1067, 4294901760
    %v1069 = vsub.f32 %v1067, %v1068
    %v1070 = vand.u32 %v1069, 4294901760
    %1071 = vmatmul.mubr.f32.gmra.mrb[0].mxu0 %v1070
    %v1072 = vpop.f32.mrb[0].mxu0
    %v1073 = vadd.f32 0.0, %v1072
    %v1074 = vpop.f32.mrb[0].mxu0
    %1075 = vmatprep.mubr.f32.mxu0 0.0
    %v1076 = vand.u32 %v465, 4294901760
    %v1077 = vsub.f32 %v465, %v1076
    %v1078 = vand.u32 %v1077, 4294901760
    %v1079 = vsub.f32 %v1077, %v1078
    %v1080 = vand.u32 %v1079, 4294901760
    %1081 = vmatmul.mubr.f32.gmra.mrb[0].mxu0 %v1080
    %v1082 = vpop.f32.mrb[0].mxu0
    %v1083 = vadd.f32 0.0, %v1082
    %v1084 = vpop.f32.mrb[0].mxu0
    %1085 = vmatprep.mubr.f32.mxu0 0.0
    %v1086 = vand.u32 %v466, 4294901760
    %v1087 = vsub.f32 %v466, %v1086
    %v1088 = vand.u32 %v1087, 4294901760
    %v1089 = vsub.f32 %v1087, %v1088
    %v1090 = vand.u32 %v1089, 4294901760
    %1091 = vmatmul.mubr.f32.gmra.mrb[0].mxu0 %v1090
    %v1092 = vpop.f32.mrb[0].mxu0
    %v1093 = vadd.f32 0.0, %v1092
    %v1094 = vpop.f32.mrb[0].mxu0
    %1095 = vmatprep.mubr.f32.mxu0 0.0
    %v1096 = vand.u32 %v467, 4294901760
    %v1097 = vsub.f32 %v467, %v1096
    %v1098 = vand.u32 %v1097, 4294901760
    %v1099 = vsub.f32 %v1097, %v1098
    %v1100 = vand.u32 %v1099, 4294901760
    %1101 = vmatmul.mubr.f32.gmra.mrb[0].mxu0 %v1100
    %v1102 = vpop.f32.mrb[0].mxu0
    %v1103 = vadd.f32 0.0, %v1102
    %v1104 = vpop.f32.mrb[0].mxu0
    %1105 = vmatprep.mubr.f32.mxu0 0.0
    %v1106 = vand.u32 %v468, 4294901760
    %v1107 = vsub.f32 %v468, %v1106
    %v1108 = vand.u32 %v1107, 4294901760
    %v1109 = vsub.f32 %v1107, %v1108
    %v1110 = vand.u32 %v1109, 4294901760
    %1111 = vmatmul.mubr.f32.gmra.mrb[0].mxu0 %v1110
    %v1112 = vpop.f32.mrb[0].mxu0
    %v1113 = vadd.f32 0.0, %v1112
    %v1114 = vpop.f32.mrb[0].mxu0
    %1115 = vmatprep.mubr.f32.mxu0 0.0
    %v1116 = vand.u32 %v469, 4294901760
    %v1117 = vsub.f32 %v469, %v1116
    %v1118 = vand.u32 %v1117, 4294901760
    %v1119 = vsub.f32 %v1117, %v1118
    %v1120 = vand.u32 %v1119, 4294901760
    %1121 = vmatmul.mubr.f32.gmra.mrb[0].mxu0 %v1120
    %v1122 = vpop.f32.mrb[0].mxu0
    %v1123 = vadd.f32 0.0, %v1122
    %v1124 = vpop.f32.mrb[0].mxu0
    %1125 = vmatprep.mubr.f32.mxu0 0.0
    %v1126 = vand.u32 %v470, 4294901760
    %v1127 = vsub.f32 %v470, %v1126
    %v1128 = vand.u32 %v1127, 4294901760
    %v1129 = vsub.f32 %v1127, %v1128
    %v1130 = vand.u32 %v1129, 4294901760
    %1131 = vmatmul.mubr.f32.gmra.mrb[0].mxu0 %v1130
    %v1132 = vpop.f32.mrb[0].mxu0
    %v1133 = vadd.f32 0.0, %v1132
    %v1134 = vpop.f32.mrb[0].mxu0
    %1135 = vmatprep.mubr.f32.mxu0 0.0
    %v1136 = vand.u32 %v471, 4294901760
    %v1137 = vsub.f32 %v471, %v1136
    %v1138 = vand.u32 %v1137, 4294901760
    %v1139 = vsub.f32 %v1137, %v1138
    %v1140 = vand.u32 %v1139, 4294901760
    %1141 = vmatmul.mubr.f32.gmra.mrb[0].mxu0 %v1140
    %v1142 = vpop.f32.mrb[0].mxu0
    %v1143 = vadd.f32 0.0, %v1142
    %v1144 = vpop.f32.mrb[0].mxu0
    %1145 = vmatprep.mubr.f32.mxu0 0.0
    %v1146 = vand.u32 %v472, 4294901760
    %v1147 = vsub.f32 %v472, %v1146
    %v1148 = vand.u32 %v1147, 4294901760
    %v1149 = vsub.f32 %v1147, %v1148
    %v1150 = vand.u32 %v1149, 4294901760
    %1151 = vmatmul.mubr.f32.gmra.mrb[0].mxu0 %v1150
    %v1152 = vpop.f32.mrb[0].mxu0
    %v1153 = vadd.f32 0.0, %v1152
    %v1154 = vpop.f32.mrb[0].mxu0
    %1155 = vmatprep.mubr.f32.mxu0 0.0
    %v1156 = vand.u32 %v473, 4294901760
    %v1157 = vsub.f32 %v473, %v1156
    %v1158 = vand.u32 %v1157, 4294901760
    %v1159 = vsub.f32 %v1157, %v1158
    %v1160 = vand.u32 %v1159, 4294901760
    %1161 = vmatmul.mubr.f32.gmra.mrb[0].mxu0 %v1160
    %v1162 = vpop.f32.mrb[0].mxu0
    %v1163 = vadd.f32 0.0, %v1162
    %v1164 = vpop.f32.mrb[0].mxu0
    %1165 = vmatprep.mubr.f32.mxu0 0.0
    %v1166 = vand.u32 %v474, 4294901760
    %v1167 = vsub.f32 %v474, %v1166
    %v1168 = vand.u32 %v1167, 4294901760
    %v1169 = vsub.f32 %v1167, %v1168
    %v1170 = vand.u32 %v1169, 4294901760
    %1171 = vmatmul.mubr.f32.gmra.mrb[0].mxu0 %v1170
    %v1172 = vpop.f32.mrb[0].mxu0
    %v1173 = vadd.f32 0.0, %v1172
    %v1174 = vpop.f32.mrb[0].mxu0
    %1175 = vmatprep.mubr.f32.mxu0 0.0
    %v1176 = vand.u32 %v475, 4294901760
    %v1177 = vsub.f32 %v475, %v1176
    %v1178 = vand.u32 %v1177, 4294901760
    %v1179 = vsub.f32 %v1177, %v1178
    %v1180 = vand.u32 %v1179, 4294901760
    %1181 = vmatmul.mubr.f32.gmra.mrb[0].mxu0 %v1180
    %v1182 = vpop.f32.mrb[0].mxu0
    %v1183 = vadd.f32 0.0, %v1182
    %v1184 = vpop.f32.mrb[0].mxu0
    %1185 = vmatprep.mubr.f32.mxu0 0.0
    %v1186 = vand.u32 %v476, 4294901760
    %v1187 = vsub.f32 %v476, %v1186
    %v1188 = vand.u32 %v1187, 4294901760
    %v1189 = vsub.f32 %v1187, %v1188
    %v1190 = vand.u32 %v1189, 4294901760
    %1191 = vmatmul.mubr.f32.gmra.mrb[0].mxu0 %v1190
    %v1192 = vpop.f32.mrb[0].mxu0
    %v1193 = vadd.f32 0.0, %v1192
    %v1194 = vpop.f32.mrb[0].mxu0
    %1195 = vmatprep.mubr.f32.mxu0 0.0
    %v1196 = vand.u32 %v477, 4294901760
    %v1197 = vsub.f32 %v477, %v1196
    %v1198 = vand.u32 %v1197, 4294901760
    %v1199 = vsub.f32 %v1197, %v1198
    %v1200 = vand.u32 %v1199, 4294901760
    %1201 = vmatmul.mubr.f32.gmra.mrb[0].mxu0 %v1200
    %v1202 = vpop.f32.mrb[0].mxu0
    %v1203 = vadd.f32 0.0, %v1202
    %v1204 = vpop.f32.mrb[0].mxu0
    %1205 = vmatprep.mubr.f32.mxu0 0.0
    %v1206 = vand.u32 %v478, 4294901760
    %v1207 = vsub.f32 %v478, %v1206
    %v1208 = vand.u32 %v1207, 4294901760
    %v1209 = vsub.f32 %v1207, %v1208
    %v1210 = vand.u32 %v1209, 4294901760
    %1211 = vmatmul.mubr.f32.gmra.mrb[0].mxu0 %v1210
    %v1212 = vpop.f32.mrb[0].mxu0
    %v1213 = vadd.f32 0.0, %v1212
    %v1214 = vpop.f32.mrb[0].mxu0
    %1215 = vdwg.mxu0
    %1216 = vmatprep.subr.mxu0 0.0
    %v1217 = vand.u32 %v479, 4294901760
    %v1218 = vsub.f32 %v479, %v1217
    %v1219 = vand.u32 %v1218, 4294901760
    %v1220 = vsub.f32 %v1218, %v1219
    %v1221 = vand.u32 %v1220, 4294901760
    %1222 = vmatpush1.msra.mxu0 %v1221
    %1223 = vmatprep.subr.mxu0 0.0
    %v1224 = vand.u32 %v480, 4294901760
    %v1225 = vsub.f32 %v480, %v1224
    %v1226 = vand.u32 %v1225, 4294901760
    %v1227 = vsub.f32 %v1225, %v1226
    %v1228 = vand.u32 %v1227, 4294901760
    %1229 = vmatpush1.msra.mxu0 %v1228
    %1230 = vmatprep.subr.mxu0 0.0
    %v1231 = vand.u32 %v481, 4294901760
    %v1232 = vsub.f32 %v481, %v1231
    %v1233 = vand.u32 %v1232, 4294901760
    %v1234 = vsub.f32 %v1232, %v1233
    %v1235 = vand.u32 %v1234, 4294901760
    %1236 = vmatpush1.msra.mxu0 %v1235
    %1237 = vmatprep.subr.mxu0 0.0
    %v1238 = vand.u32 %v482, 4294901760
    %v1239 = vsub.f32 %v482, %v1238
    %v1240 = vand.u32 %v1239, 4294901760
    %v1241 = vsub.f32 %v1239, %v1240
    %v1242 = vand.u32 %v1241, 4294901760
    %1243 = vmatpush1.msra.mxu0 %v1242
    %1244 = vmatprep.subr.mxu0 0.0
    %v1245 = vand.u32 %v483, 4294901760
    %v1246 = vsub.f32 %v483, %v1245
    %v1247 = vand.u32 %v1246, 4294901760
    %v1248 = vsub.f32 %v1246, %v1247
    %v1249 = vand.u32 %v1248, 4294901760
    %1250 = vmatpush1.msra.mxu0 %v1249
    %1251 = vmatprep.subr.mxu0 0.0
    %v1252 = vand.u32 %v484, 4294901760
    %v1253 = vsub.f32 %v484, %v1252
    %v1254 = vand.u32 %v1253, 4294901760
    %v1255 = vsub.f32 %v1253, %v1254
    %v1256 = vand.u32 %v1255, 4294901760
    %1257 = vmatpush1.msra.mxu0 %v1256
    %1258 = vmatprep.subr.mxu0 0.0
    %v1259 = vand.u32 %v485, 4294901760
    %v1260 = vsub.f32 %v485, %v1259
    %v1261 = vand.u32 %v1260, 4294901760
    %v1262 = vsub.f32 %v1260, %v1261
    %v1263 = vand.u32 %v1262, 4294901760
    %1264 = vmatpush1.msra.mxu0 %v1263
    %1265 = vmatprep.subr.mxu0 0.0
    %v1266 = vand.u32 %v486, 4294901760
    %v1267 = vsub.f32 %v486, %v1266
    %v1268 = vand.u32 %v1267, 4294901760
    %v1269 = vsub.f32 %v1267, %v1268
    %v1270 = vand.u32 %v1269, 4294901760
    %1271 = vmatpush1.msra.mxu0 %v1270
    %1272 = vmatprep.subr.mxu0 0.0
    %v1273 = vand.u32 %v487, 4294901760
    %v1274 = vsub.f32 %v487, %v1273
    %v1275 = vand.u32 %v1274, 4294901760
    %v1276 = vsub.f32 %v1274, %v1275
    %v1277 = vand.u32 %v1276, 4294901760
    %1278 = vmatpush1.msra.mxu0 %v1277
    %1279 = vmatprep.subr.mxu0 0.0
    %v1280 = vand.u32 %v488, 4294901760
    %v1281 = vsub.f32 %v488, %v1280
    %v1282 = vand.u32 %v1281, 4294901760
    %v1283 = vsub.f32 %v1281, %v1282
    %v1284 = vand.u32 %v1283, 4294901760
    %1285 = vmatpush1.msra.mxu0 %v1284
    %1286 = vmatprep.subr.mxu0 0.0
    %v1287 = vand.u32 %v489, 4294901760
    %v1288 = vsub.f32 %v489, %v1287
    %v1289 = vand.u32 %v1288, 4294901760
    %v1290 = vsub.f32 %v1288, %v1289
    %v1291 = vand.u32 %v1290, 4294901760
    %1292 = vmatpush1.msra.mxu0 %v1291
    %1293 = vmatprep.subr.mxu0 0.0
    %v1294 = vand.u32 %v490, 4294901760
    %v1295 = vsub.f32 %v490, %v1294
    %v1296 = vand.u32 %v1295, 4294901760
    %v1297 = vsub.f32 %v1295, %v1296
    %v1298 = vand.u32 %v1297, 4294901760
    %1299 = vmatpush1.msra.mxu0 %v1298
    %1300 = vmatprep.subr.mxu0 0.0
    %v1301 = vand.u32 %v491, 4294901760
    %v1302 = vsub.f32 %v491, %v1301
    %v1303 = vand.u32 %v1302, 4294901760
    %v1304 = vsub.f32 %v1302, %v1303
    %v1305 = vand.u32 %v1304, 4294901760
    %1306 = vmatpush1.msra.mxu0 %v1305
    %1307 = vmatprep.subr.mxu0 0.0
    %v1308 = vand.u32 %v492, 4294901760
    %v1309 = vsub.f32 %v492, %v1308
    %v1310 = vand.u32 %v1309, 4294901760
    %v1311 = vsub.f32 %v1309, %v1310
    %v1312 = vand.u32 %v1311, 4294901760
    %1313 = vmatpush1.msra.mxu0 %v1312
    %1314 = vmatprep.subr.mxu0 0.0
    %v1315 = vand.u32 %v493, 4294901760
    %v1316 = vsub.f32 %v493, %v1315
    %v1317 = vand.u32 %v1316, 4294901760
    %v1318 = vsub.f32 %v1316, %v1317
    %v1319 = vand.u32 %v1318, 4294901760
    %1320 = vmatpush1.msra.mxu0 %v1319
    %1321 = vmatprep.subr.mxu0 0.0
    %v1322 = vand.u32 %v494, 4294901760
    %v1323 = vsub.f32 %v494, %v1322
    %v1324 = vand.u32 %v1323, 4294901760
    %v1325 = vsub.f32 %v1323, %v1324
    %v1326 = vand.u32 %v1325, 4294901760
    %1327 = vmatpush1.msra.mxu0 %v1326
    %1328 = vmatprep.subr.mxu0 0.0
    %1329 = vmatpush1.msra.mxu0 0.0
    %1330 = vmatprep.subr.mxu0 0.0
    %1331 = vmatpush1.msra.mxu0 0.0
    %1332 = vmatprep.subr.mxu0 0.0
    %1333 = vmatpush1.msra.mxu0 0.0
    %1334 = vmatprep.subr.mxu0 0.0
    %1335 = vmatpush1.msra.mxu0 0.0
    %1336 = vmatprep.subr.mxu0 0.0
    %1337 = vmatpush1.msra.mxu0 0.0
    %1338 = vmatprep.subr.mxu0 0.0
    %1339 = vmatpush1.msra.mxu0 0.0
    %1340 = vmatprep.subr.mxu0 0.0
    %1341 = vmatpush1.msra.mxu0 0.0
    %1342 = vmatprep.subr.mxu0 0.0
    %1343 = vmatpush1.msra.mxu0 0.0
    %1344 = vmatprep.subr.mxu0 0.0
    %1345 = vmatpush1.msra.mxu0 0.0
    %1346 = vmatprep.subr.mxu0 0.0
    %1347 = vmatpush1.msra.mxu0 0.0
    %1348 = vmatprep.subr.mxu0 0.0
    %1349 = vmatpush1.msra.mxu0 0.0
    %1350 = vmatprep.subr.mxu0 0.0
    %1351 = vmatpush1.msra.mxu0 0.0
    %1352 = vmatprep.subr.mxu0 0.0
    %1353 = vmatpush1.msra.mxu0 0.0
    %1354 = vmatprep.subr.mxu0 0.0
    %1355 = vmatpush1.msra.mxu0 0.0
    %1356 = vmatprep.subr.mxu0 0.0
    %1357 = vmatpush1.msra.mxu0 0.0
    %1358 = vmatprep.subr.mxu0 0.0
    %1359 = vmatpush1.msra.mxu0 0.0
    %1360 = vmatprep.mubr.f32.mxu0 0.0
    %v1361 = vand.u32 %v415, 4294901760
    %1362 = vmatmul.mubr.f32.gmra.mrb[0].mxu0 %v1361
    %v1363 = vpop.f32.mrb[0].mxu0
    %v1364 = vadd.f32 %v583, %v1363
    %v1365 = vpop.f32.mrb[0].mxu0
    %1366 = vmatprep.mubr.f32.mxu0 0.0
    %v1367 = vand.u32 %v416, 4294901760
    %1368 = vmatmul.mubr.f32.gmra.mrb[0].mxu0 %v1367
    %v1369 = vpop.f32.mrb[0].mxu0
    %v1370 = vadd.f32 %v593, %v1369
    %v1371 = vpop.f32.mrb[0].mxu0
    %1372 = vmatprep.mubr.f32.mxu0 0.0
    %v1373 = vand.u32 %v417, 4294901760
    %1374 = vmatmul.mubr.f32.gmra.mrb[0].mxu0 %v1373
    %v1375 = vpop.f32.mrb[0].mxu0
    %v1376 = vadd.f32 %v603, %v1375
    %v1377 = vpop.f32.mrb[0].mxu0
    %1378 = vmatprep.mubr.f32.mxu0 0.0
    %v1379 = vand.u32 %v418, 4294901760
    %1380 = vmatmul.mubr.f32.gmra.mrb[0].mxu0 %v1379
    %v1381 = vpop.f32.mrb[0].mxu0
    %v1382 = vadd.f32 %v613, %v1381
    %v1383 = vpop.f32.mrb[0].mxu0
    %1384 = vmatprep.mubr.f32.mxu0 0.0
    %v1385 = vand.u32 %v419, 4294901760
    %1386 = vmatmul.mubr.f32.gmra.mrb[0].mxu0 %v1385
    %v1387 = vpop.f32.mrb[0].mxu0
    %v1388 = vadd.f32 %v623, %v1387
    %v1389 = vpop.f32.mrb[0].mxu0
    %1390 = vmatprep.mubr.f32.mxu0 0.0
    %v1391 = vand.u32 %v420, 4294901760
    %1392 = vmatmul.mubr.f32.gmra.mrb[0].mxu0 %v1391
    %v1393 = vpop.f32.mrb[0].mxu0
    %v1394 = vadd.f32 %v633, %v1393
    %v1395 = vpop.f32.mrb[0].mxu0
    %1396 = vmatprep.mubr.f32.mxu0 0.0
    %v1397 = vand.u32 %v421, 4294901760
    %1398 = vmatmul.mubr.f32.gmra.mrb[0].mxu0 %v1397
    %v1399 = vpop.f32.mrb[0].mxu0
    %v1400 = vadd.f32 %v643, %v1399
    %v1401 = vpop.f32.mrb[0].mxu0
    %1402 = vmatprep.mubr.f32.mxu0 0.0
    %v1403 = vand.u32 %v422, 4294901760
    %1404 = vmatmul.mubr.f32.gmra.mrb[0].mxu0 %v1403
    %v1405 = vpop.f32.mrb[0].mxu0
    %v1406 = vadd.f32 %v653, %v1405
    %v1407 = vpop.f32.mrb[0].mxu0
    %1408 = vmatprep.mubr.f32.mxu0 0.0
    %v1409 = vand.u32 %v423, 4294901760
    %1410 = vmatmul.mubr.f32.gmra.mrb[0].mxu0 %v1409
    %v1411 = vpop.f32.mrb[0].mxu0
    %v1412 = vadd.f32 %v663, %v1411
    %v1413 = vpop.f32.mrb[0].mxu0
    %1414 = vmatprep.mubr.f32.mxu0 0.0
    %v1415 = vand.u32 %v424, 4294901760
    %1416 = vmatmul.mubr.f32.gmra.mrb[0].mxu0 %v1415
    %v1417 = vpop.f32.mrb[0].mxu0
    %v1418 = vadd.f32 %v673, %v1417
    %v1419 = vpop.f32.mrb[0].mxu0
    %1420 = vmatprep.mubr.f32.mxu0 0.0
    %v1421 = vand.u32 %v425, 4294901760
    %1422 = vmatmul.mubr.f32.gmra.mrb[0].mxu0 %v1421
    %v1423 = vpop.f32.mrb[0].mxu0
    %v1424 = vadd.f32 %v683, %v1423
    %v1425 = vpop.f32.mrb[0].mxu0
    %1426 = vmatprep.mubr.f32.mxu0 0.0
    %v1427 = vand.u32 %v426, 4294901760
    %1428 = vmatmul.mubr.f32.gmra.mrb[0].mxu0 %v1427
    %v1429 = vpop.f32.mrb[0].mxu0
    %v1430 = vadd.f32 %v693, %v1429
    %v1431 = vpop.f32.mrb[0].mxu0
    %1432 = vmatprep.mubr.f32.mxu0 0.0
    %v1433 = vand.u32 %v427, 4294901760
    %1434 = vmatmul.mubr.f32.gmra.mrb[0].mxu0 %v1433
    %v1435 = vpop.f32.mrb[0].mxu0
    %v1436 = vadd.f32 %v703, %v1435
    %v1437 = vpop.f32.mrb[0].mxu0
    %1438 = vmatprep.mubr.f32.mxu0 0.0
    %v1439 = vand.u32 %v428, 4294901760
    %1440 = vmatmul.mubr.f32.gmra.mrb[0].mxu0 %v1439
    %v1441 = vpop.f32.mrb[0].mxu0
    %v1442 = vadd.f32 %v713, %v1441
    %v1443 = vpop.f32.mrb[0].mxu0
    %1444 = vmatprep.mubr.f32.mxu0 0.0
    %v1445 = vand.u32 %v429, 4294901760
    %1446 = vmatmul.mubr.f32.gmra.mrb[0].mxu0 %v1445
    %v1447 = vpop.f32.mrb[0].mxu0
    %v1448 = vadd.f32 %v723, %v1447
    %v1449 = vpop.f32.mrb[0].mxu0
    %1450 = vmatprep.mubr.f32.mxu0 0.0
    %v1451 = vand.u32 %v430, 4294901760
    %1452 = vmatmul.mubr.f32.gmra.mrb[0].mxu0 %v1451
    %v1453 = vpop.f32.mrb[0].mxu0
    %v1454 = vadd.f32 %v733, %v1453
    %v1455 = vpop.f32.mrb[0].mxu0
    %1456 = vmatprep.mubr.f32.mxu0 0.0
    %v1457 = vand.u32 %v431, 4294901760
    %1458 = vmatmul.mubr.f32.gmra.mrb[0].mxu0 %v1457
    %v1459 = vpop.f32.mrb[0].mxu0
    %v1460 = vadd.f32 %v743, %v1459
    %v1461 = vpop.f32.mrb[0].mxu0
    %1462 = vmatprep.mubr.f32.mxu0 0.0
    %v1463 = vand.u32 %v432, 4294901760
    %1464 = vmatmul.mubr.f32.gmra.mrb[0].mxu0 %v1463
    %v1465 = vpop.f32.mrb[0].mxu0
    %v1466 = vadd.f32 %v753, %v1465
    %v1467 = vpop.f32.mrb[0].mxu0
    %1468 = vmatprep.mubr.f32.mxu0 0.0
    %v1469 = vand.u32 %v433, 4294901760
    %1470 = vmatmul.mubr.f32.gmra.mrb[0].mxu0 %v1469
    %v1471 = vpop.f32.mrb[0].mxu0
    %v1472 = vadd.f32 %v763, %v1471
    %v1473 = vpop.f32.mrb[0].mxu0
    %1474 = vmatprep.mubr.f32.mxu0 0.0
    %v1475 = vand.u32 %v434, 4294901760
    %1476 = vmatmul.mubr.f32.gmra.mrb[0].mxu0 %v1475
    %v1477 = vpop.f32.mrb[0].mxu0
    %v1478 = vadd.f32 %v773, %v1477
    %v1479 = vpop.f32.mrb[0].mxu0
    %1480 = vmatprep.mubr.f32.mxu0 0.0
    %v1481 = vand.u32 %v435, 4294901760
    %1482 = vmatmul.mubr.f32.gmra.mrb[0].mxu0 %v1481
    %v1483 = vpop.f32.mrb[0].mxu0
    %v1484 = vadd.f32 %v783, %v1483
    %v1485 = vpop.f32.mrb[0].mxu0
    %1486 = vmatprep.mubr.f32.mxu0 0.0
    %v1487 = vand.u32 %v436, 4294901760
    %1488 = vmatmul.mubr.f32.gmra.mrb[0].mxu0 %v1487
    %v1489 = vpop.f32.mrb[0].mxu0
    %v1490 = vadd.f32 %v793, %v1489
    %v1491 = vpop.f32.mrb[0].mxu0
    %1492 = vmatprep.mubr.f32.mxu0 0.0
    %v1493 = vand.u32 %v437, 4294901760
    %1494 = vmatmul.mubr.f32.gmra.mrb[0].mxu0 %v1493
    %v1495 = vpop.f32.mrb[0].mxu0
    %v1496 = vadd.f32 %v803, %v1495
    %v1497 = vpop.f32.mrb[0].mxu0
    %1498 = vmatprep.mubr.f32.mxu0 0.0
    %v1499 = vand.u32 %v438, 4294901760
    %1500 = vmatmul.mubr.f32.gmra.mrb[0].mxu0 %v1499
    %v1501 = vpop.f32.mrb[0].mxu0
    %v1502 = vadd.f32 %v813, %v1501
    %v1503 = vpop.f32.mrb[0].mxu0
    %1504 = vmatprep.mubr.f32.mxu0 0.0
    %v1505 = vand.u32 %v439, 4294901760
    %1506 = vmatmul.mubr.f32.gmra.mrb[0].mxu0 %v1505
    %v1507 = vpop.f32.mrb[0].mxu0
    %v1508 = vadd.f32 %v823, %v1507
    %v1509 = vpop.f32.mrb[0].mxu0
    %1510 = vmatprep.mubr.f32.mxu0 0.0
    %v1511 = vand.u32 %v440, 4294901760
    %1512 = vmatmul.mubr.f32.gmra.mrb[0].mxu0 %v1511
    %v1513 = vpop.f32.mrb[0].mxu0
    %v1514 = vadd.f32 %v833, %v1513
    %v1515 = vpop.f32.mrb[0].mxu0
    %1516 = vmatprep.mubr.f32.mxu0 0.0
    %v1517 = vand.u32 %v441, 4294901760
    %1518 = vmatmul.mubr.f32.gmra.mrb[0].mxu0 %v1517
    %v1519 = vpop.f32.mrb[0].mxu0
    %v1520 = vadd.f32 %v843, %v1519
    %v1521 = vpop.f32.mrb[0].mxu0
    %1522 = vmatprep.mubr.f32.mxu0 0.0
    %v1523 = vand.u32 %v442, 4294901760
    %1524 = vmatmul.mubr.f32.gmra.mrb[0].mxu0 %v1523
    %v1525 = vpop.f32.mrb[0].mxu0
    %v1526 = vadd.f32 %v853, %v1525
    %v1527 = vpop.f32.mrb[0].mxu0
    %1528 = vmatprep.mubr.f32.mxu0 0.0
    %v1529 = vand.u32 %v443, 4294901760
    %1530 = vmatmul.mubr.f32.gmra.mrb[0].mxu0 %v1529
    %v1531 = vpop.f32.mrb[0].mxu0
    %v1532 = vadd.f32 %v863, %v1531
    %v1533 = vpop.f32.mrb[0].mxu0
    %1534 = vmatprep.mubr.f32.mxu0 0.0
    %v1535 = vand.u32 %v444, 4294901760
    %1536 = vmatmul.mubr.f32.gmra.mrb[0].mxu0 %v1535
    %v1537 = vpop.f32.mrb[0].mxu0
    %v1538 = vadd.f32 %v873, %v1537
    %v1539 = vpop.f32.mrb[0].mxu0
    %1540 = vmatprep.mubr.f32.mxu0 0.0
    %v1541 = vand.u32 %v445, 4294901760
    %1542 = vmatmul.mubr.f32.gmra.mrb[0].mxu0 %v1541
    %v1543 = vpop.f32.mrb[0].mxu0
    %v1544 = vadd.f32 %v883, %v1543
    %v1545 = vpop.f32.mrb[0].mxu0
    %1546 = vmatprep.mubr.f32.mxu0 0.0
    %v1547 = vand.u32 %v446, 4294901760
    %1548 = vmatmul.mubr.f32.gmra.mrb[0].mxu0 %v1547
    %v1549 = vpop.f32.mrb[0].mxu0
    %v1550 = vadd.f32 %v893, %v1549
    %v1551 = vpop.f32.mrb[0].mxu0
    %1552 = vmatprep.mubr.f32.mxu0 0.0
    %v1553 = vand.u32 %v447, 4294901760
    %1554 = vmatmul.mubr.f32.gmra.mrb[0].mxu0 %v1553
    %v1555 = vpop.f32.mrb[0].mxu0
    %v1556 = vadd.f32 %v903, %v1555
    %v1557 = vpop.f32.mrb[0].mxu0
    %1558 = vmatprep.mubr.f32.mxu0 0.0
    %v1559 = vand.u32 %v448, 4294901760
    %1560 = vmatmul.mubr.f32.gmra.mrb[0].mxu0 %v1559
    %v1561 = vpop.f32.mrb[0].mxu0
    %v1562 = vadd.f32 %v913, %v1561
    %v1563 = vpop.f32.mrb[0].mxu0
    %1564 = vmatprep.mubr.f32.mxu0 0.0
    %v1565 = vand.u32 %v449, 4294901760
    %1566 = vmatmul.mubr.f32.gmra.mrb[0].mxu0 %v1565
    %v1567 = vpop.f32.mrb[0].mxu0
    %v1568 = vadd.f32 %v923, %v1567
    %v1569 = vpop.f32.mrb[0].mxu0
    %1570 = vmatprep.mubr.f32.mxu0 0.0
    %v1571 = vand.u32 %v450, 4294901760
    %1572 = vmatmul.mubr.f32.gmra.mrb[0].mxu0 %v1571
    %v1573 = vpop.f32.mrb[0].mxu0
    %v1574 = vadd.f32 %v933, %v1573
    %v1575 = vpop.f32.mrb[0].mxu0
    %1576 = vmatprep.mubr.f32.mxu0 0.0
    %v1577 = vand.u32 %v451, 4294901760
    %1578 = vmatmul.mubr.f32.gmra.mrb[0].mxu0 %v1577
    %v1579 = vpop.f32.mrb[0].mxu0
    %v1580 = vadd.f32 %v943, %v1579
    %v1581 = vpop.f32.mrb[0].mxu0
    %1582 = vmatprep.mubr.f32.mxu0 0.0
    %v1583 = vand.u32 %v452, 4294901760
    %1584 = vmatmul.mubr.f32.gmra.mrb[0].mxu0 %v1583
    %v1585 = vpop.f32.mrb[0].mxu0
    %v1586 = vadd.f32 %v953, %v1585
    %v1587 = vpop.f32.mrb[0].mxu0
    %1588 = vmatprep.mubr.f32.mxu0 0.0
    %v1589 = vand.u32 %v453, 4294901760
    %1590 = vmatmul.mubr.f32.gmra.mrb[0].mxu0 %v1589
    %v1591 = vpop.f32.mrb[0].mxu0
    %v1592 = vadd.f32 %v963, %v1591
    %v1593 = vpop.f32.mrb[0].mxu0
    %1594 = vmatprep.mubr.f32.mxu0 0.0
    %v1595 = vand.u32 %v454, 4294901760
    %1596 = vmatmul.mubr.f32.gmra.mrb[0].mxu0 %v1595
    %v1597 = vpop.f32.mrb[0].mxu0
    %v1598 = vadd.f32 %v973, %v1597
    %v1599 = vpop.f32.mrb[0].mxu0
    %1600 = vmatprep.mubr.f32.mxu0 0.0
    %v1601 = vand.u32 %v455, 4294901760
    %1602 = vmatmul.mubr.f32.gmra.mrb[0].mxu0 %v1601
    %v1603 = vpop.f32.mrb[0].mxu0
    %v1604 = vadd.f32 %v983, %v1603
    %v1605 = vpop.f32.mrb[0].mxu0
    %1606 = vmatprep.mubr.f32.mxu0 0.0
    %v1607 = vand.u32 %v456, 4294901760
    %1608 = vmatmul.mubr.f32.gmra.mrb[0].mxu0 %v1607
    %v1609 = vpop.f32.mrb[0].mxu0
    %v1610 = vadd.f32 %v993, %v1609
    %v1611 = vpop.f32.mrb[0].mxu0
    %1612 = vmatprep.mubr.f32.mxu0 0.0
    %v1613 = vand.u32 %v457, 4294901760
    %1614 = vmatmul.mubr.f32.gmra.mrb[0].mxu0 %v1613
    %v1615 = vpop.f32.mrb[0].mxu0
    %v1616 = vadd.f32 %v1003, %v1615
    %v1617 = vpop.f32.mrb[0].mxu0
    %1618 = vmatprep.mubr.f32.mxu0 0.0
    %v1619 = vand.u32 %v458, 4294901760
    %1620 = vmatmul.mubr.f32.gmra.mrb[0].mxu0 %v1619
    %v1621 = vpop.f32.mrb[0].mxu0
    %v1622 = vadd.f32 %v1013, %v1621
    %v1623 = vpop.f32.mrb[0].mxu0
    %1624 = vmatprep.mubr.f32.mxu0 0.0
    %v1625 = vand.u32 %v459, 4294901760
    %1626 = vmatmul.mubr.f32.gmra.mrb[0].mxu0 %v1625
    %v1627 = vpop.f32.mrb[0].mxu0
    %v1628 = vadd.f32 %v1023, %v1627
    %v1629 = vpop.f32.mrb[0].mxu0
    %1630 = vmatprep.mubr.f32.mxu0 0.0
    %v1631 = vand.u32 %v460, 4294901760
    %1632 = vmatmul.mubr.f32.gmra.mrb[0].mxu0 %v1631
    %v1633 = vpop.f32.mrb[0].mxu0
    %v1634 = vadd.f32 %v1033, %v1633
    %v1635 = vpop.f32.mrb[0].mxu0
    %1636 = vmatprep.mubr.f32.mxu0 0.0
    %v1637 = vand.u32 %v461, 4294901760
    %1638 = vmatmul.mubr.f32.gmra.mrb[0].mxu0 %v1637
    %v1639 = vpop.f32.mrb[0].mxu0
    %v1640 = vadd.f32 %v1043, %v1639
    %v1641 = vpop.f32.mrb[0].mxu0
    %1642 = vmatprep.mubr.f32.mxu0 0.0
    %v1643 = vand.u32 %v462, 4294901760
    %1644 = vmatmul.mubr.f32.gmra.mrb[0].mxu0 %v1643
    %v1645 = vpop.f32.mrb[0].mxu0
    %v1646 = vadd.f32 %v1053, %v1645
    %v1647 = vpop.f32.mrb[0].mxu0
    %1648 = vmatprep.mubr.f32.mxu0 0.0
    %v1649 = vand.u32 %v463, 4294901760
    %1650 = vmatmul.mubr.f32.gmra.mrb[0].mxu0 %v1649
    %v1651 = vpop.f32.mrb[0].mxu0
    %v1652 = vadd.f32 %v1063, %v1651
    %v1653 = vpop.f32.mrb[0].mxu0
    %1654 = vmatprep.mubr.f32.mxu0 0.0
    %v1655 = vand.u32 %v464, 4294901760
    %1656 = vmatmul.mubr.f32.gmra.mrb[0].mxu0 %v1655
    %v1657 = vpop.f32.mrb[0].mxu0
    %v1658 = vadd.f32 %v1073, %v1657
    %v1659 = vpop.f32.mrb[0].mxu0
    %1660 = vmatprep.mubr.f32.mxu0 0.0
    %v1661 = vand.u32 %v465, 4294901760
    %1662 = vmatmul.mubr.f32.gmra.mrb[0].mxu0 %v1661
    %v1663 = vpop.f32.mrb[0].mxu0
    %v1664 = vadd.f32 %v1083, %v1663
    %v1665 = vpop.f32.mrb[0].mxu0
    %1666 = vmatprep.mubr.f32.mxu0 0.0
    %v1667 = vand.u32 %v466, 4294901760
    %1668 = vmatmul.mubr.f32.gmra.mrb[0].mxu0 %v1667
    %v1669 = vpop.f32.mrb[0].mxu0
    %v1670 = vadd.f32 %v1093, %v1669
    %v1671 = vpop.f32.mrb[0].mxu0
    %1672 = vmatprep.mubr.f32.mxu0 0.0
    %v1673 = vand.u32 %v467, 4294901760
    %1674 = vmatmul.mubr.f32.gmra.mrb[0].mxu0 %v1673
    %v1675 = vpop.f32.mrb[0].mxu0
    %v1676 = vadd.f32 %v1103, %v1675
    %v1677 = vpop.f32.mrb[0].mxu0
    %1678 = vmatprep.mubr.f32.mxu0 0.0
    %v1679 = vand.u32 %v468, 4294901760
    %1680 = vmatmul.mubr.f32.gmra.mrb[0].mxu0 %v1679
    %v1681 = vpop.f32.mrb[0].mxu0
    %v1682 = vadd.f32 %v1113, %v1681
    %v1683 = vpop.f32.mrb[0].mxu0
    %1684 = vmatprep.mubr.f32.mxu0 0.0
    %v1685 = vand.u32 %v469, 4294901760
    %1686 = vmatmul.mubr.f32.gmra.mrb[0].mxu0 %v1685
    %v1687 = vpop.f32.mrb[0].mxu0
    %v1688 = vadd.f32 %v1123, %v1687
    %v1689 = vpop.f32.mrb[0].mxu0
    %1690 = vmatprep.mubr.f32.mxu0 0.0
    %v1691 = vand.u32 %v470, 4294901760
    %1692 = vmatmul.mubr.f32.gmra.mrb[0].mxu0 %v1691
    %v1693 = vpop.f32.mrb[0].mxu0
    %v1694 = vadd.f32 %v1133, %v1693
    %v1695 = vpop.f32.mrb[0].mxu0
    %1696 = vmatprep.mubr.f32.mxu0 0.0
    %v1697 = vand.u32 %v471, 4294901760
    %1698 = vmatmul.mubr.f32.gmra.mrb[0].mxu0 %v1697
    %v1699 = vpop.f32.mrb[0].mxu0
    %v1700 = vadd.f32 %v1143, %v1699
    %v1701 = vpop.f32.mrb[0].mxu0
    %1702 = vmatprep.mubr.f32.mxu0 0.0
    %v1703 = vand.u32 %v472, 4294901760
    %1704 = vmatmul.mubr.f32.gmra.mrb[0].mxu0 %v1703
    %v1705 = vpop.f32.mrb[0].mxu0
    %v1706 = vadd.f32 %v1153, %v1705
    %v1707 = vpop.f32.mrb[0].mxu0
    %1708 = vmatprep.mubr.f32.mxu0 0.0
    %v1709 = vand.u32 %v473, 4294901760
    %1710 = vmatmul.mubr.f32.gmra.mrb[0].mxu0 %v1709
    %v1711 = vpop.f32.mrb[0].mxu0
    %v1712 = vadd.f32 %v1163, %v1711
    %v1713 = vpop.f32.mrb[0].mxu0
    %1714 = vmatprep.mubr.f32.mxu0 0.0
    %v1715 = vand.u32 %v474, 4294901760
    %1716 = vmatmul.mubr.f32.gmra.mrb[0].mxu0 %v1715
    %v1717 = vpop.f32.mrb[0].mxu0
    %v1718 = vadd.f32 %v1173, %v1717
    %v1719 = vpop.f32.mrb[0].mxu0
    %1720 = vmatprep.mubr.f32.mxu0 0.0
    %v1721 = vand.u32 %v475, 4294901760
    %1722 = vmatmul.mubr.f32.gmra.mrb[0].mxu0 %v1721
    %v1723 = vpop.f32.mrb[0].mxu0
    %v1724 = vadd.f32 %v1183, %v1723
    %v1725 = vpop.f32.mrb[0].mxu0
    %1726 = vmatprep.mubr.f32.mxu0 0.0
    %v1727 = vand.u32 %v476, 4294901760
    %1728 = vmatmul.mubr.f32.gmra.mrb[0].mxu0 %v1727
    %v1729 = vpop.f32.mrb[0].mxu0
    %v1730 = vadd.f32 %v1193, %v1729
    %v1731 = vpop.f32.mrb[0].mxu0
    %1732 = vmatprep.mubr.f32.mxu0 0.0
    %v1733 = vand.u32 %v477, 4294901760
    %1734 = vmatmul.mubr.f32.gmra.mrb[0].mxu0 %v1733
    %v1735 = vpop.f32.mrb[0].mxu0
    %v1736 = vadd.f32 %v1203, %v1735
    %v1737 = vpop.f32.mrb[0].mxu0
    %1738 = vmatprep.mubr.f32.mxu0 0.0
    %v1739 = vand.u32 %v478, 4294901760
    %1740 = vmatmul.mubr.f32.gmra.mrb[0].mxu0 %v1739
    %v1741 = vpop.f32.mrb[0].mxu0
    %v1742 = vadd.f32 %v1213, %v1741
    %v1743 = vpop.f32.mrb[0].mxu0
    %1744 = vdwg.mxu0
    %1745 = vmatprep.subr.mxu0 0.0
    %v1746 = vand.u32 %v479, 4294901760
    %v1747 = vsub.f32 %v479, %v1746
    %1748 = vmatpush1.msra.mxu0 %v1747
    %1749 = vmatprep.subr.mxu0 0.0
    %v1750 = vand.u32 %v480, 4294901760
    %v1751 = vsub.f32 %v480, %v1750
    %1752 = vmatpush1.msra.mxu0 %v1751
    %1753 = vmatprep.subr.mxu0 0.0
    %v1754 = vand.u32 %v481, 4294901760
    %v1755 = vsub.f32 %v481, %v1754
    %1756 = vmatpush1.msra.mxu0 %v1755
    %1757 = vmatprep.subr.mxu0 0.0
    %v1758 = vand.u32 %v482, 4294901760
    %v1759 = vsub.f32 %v482, %v1758
    %1760 = vmatpush1.msra.mxu0 %v1759
    %1761 = vmatprep.subr.mxu0 0.0
    %v1762 = vand.u32 %v483, 4294901760
    %v1763 = vsub.f32 %v483, %v1762
    %1764 = vmatpush1.msra.mxu0 %v1763
    %1765 = vmatprep.subr.mxu0 0.0
    %v1766 = vand.u32 %v484, 4294901760
    %v1767 = vsub.f32 %v484, %v1766
    %1768 = vmatpush1.msra.mxu0 %v1767
    %1769 = vmatprep.subr.mxu0 0.0
    %v1770 = vand.u32 %v485, 4294901760
    %v1771 = vsub.f32 %v485, %v1770
    %1772 = vmatpush1.msra.mxu0 %v1771
    %1773 = vmatprep.subr.mxu0 0.0
    %v1774 = vand.u32 %v486, 4294901760
    %v1775 = vsub.f32 %v486, %v1774
    %1776 = vmatpush1.msra.mxu0 %v1775
    %1777 = vmatprep.subr.mxu0 0.0
    %v1778 = vand.u32 %v487, 4294901760
    %v1779 = vsub.f32 %v487, %v1778
    %1780 = vmatpush1.msra.mxu0 %v1779
    %1781 = vmatprep.subr.mxu0 0.0
    %v1782 = vand.u32 %v488, 4294901760
    %v1783 = vsub.f32 %v488, %v1782
    %1784 = vmatpush1.msra.mxu0 %v1783
    %1785 = vmatprep.subr.mxu0 0.0
    %v1786 = vand.u32 %v489, 4294901760
    %v1787 = vsub.f32 %v489, %v1786
    %1788 = vmatpush1.msra.mxu0 %v1787
    %1789 = vmatprep.subr.mxu0 0.0
    %v1790 = vand.u32 %v490, 4294901760
    %v1791 = vsub.f32 %v490, %v1790
    %1792 = vmatpush1.msra.mxu0 %v1791
    %1793 = vmatprep.subr.mxu0 0.0
    %v1794 = vand.u32 %v491, 4294901760
    %v1795 = vsub.f32 %v491, %v1794
    %1796 = vmatpush1.msra.mxu0 %v1795
    %1797 = vmatprep.subr.mxu0 0.0
    %v1798 = vand.u32 %v492, 4294901760
    %v1799 = vsub.f32 %v492, %v1798
    %1800 = vmatpush1.msra.mxu0 %v1799
    %1801 = vmatprep.subr.mxu0 0.0
    %v1802 = vand.u32 %v493, 4294901760
    %v1803 = vsub.f32 %v493, %v1802
    %1804 = vmatpush1.msra.mxu0 %v1803
    %1805 = vmatprep.subr.mxu0 0.0
    %v1806 = vand.u32 %v494, 4294901760
    %v1807 = vsub.f32 %v494, %v1806
    %1808 = vmatpush1.msra.mxu0 %v1807
    %1809 = vmatprep.subr.mxu0 0.0
    %1810 = vmatpush1.msra.mxu0 0.0
    %1811 = vmatprep.subr.mxu0 0.0
    %1812 = vmatpush1.msra.mxu0 0.0
    %1813 = vmatprep.subr.mxu0 0.0
    %1814 = vmatpush1.msra.mxu0 0.0
    %1815 = vmatprep.subr.mxu0 0.0
    %1816 = vmatpush1.msra.mxu0 0.0
    %1817 = vmatprep.subr.mxu0 0.0
    %1818 = vmatpush1.msra.mxu0 0.0
    %1819 = vmatprep.subr.mxu0 0.0
    %1820 = vmatpush1.msra.mxu0 0.0
    %1821 = vmatprep.subr.mxu0 0.0
    %1822 = vmatpush1.msra.mxu0 0.0
    %1823 = vmatprep.subr.mxu0 0.0
    %1824 = vmatpush1.msra.mxu0 0.0
    %1825 = vmatprep.subr.mxu0 0.0
    %1826 = vmatpush1.msra.mxu0 0.0
    %1827 = vmatprep.subr.mxu0 0.0
    %1828 = vmatpush1.msra.mxu0 0.0
    %1829 = vmatprep.subr.mxu0 0.0
    %1830 = vmatpush1.msra.mxu0 0.0
    %1831 = vmatprep.subr.mxu0 0.0
    %1832 = vmatpush1.msra.mxu0 0.0
    %1833 = vmatprep.subr.mxu0 0.0
    %1834 = vmatpush1.msra.mxu0 0.0
    %1835 = vmatprep.subr.mxu0 0.0
    %1836 = vmatpush1.msra.mxu0 0.0
    %1837 = vmatprep.subr.mxu0 0.0
    %1838 = vmatpush1.msra.mxu0 0.0
    %1839 = vmatprep.subr.mxu0 0.0
    %1840 = vmatpush1.msra.mxu0 0.0
    %1841 = vmatprep.mubr.f32.mxu0 0.0
    %v1842 = vand.u32 %v415, 4294901760
    %v1843 = vsub.f32 %v415, %v1842
    %1844 = vmatmul.mubr.f32.gmra.mrb[0].mxu0 %v1843
    %v1845 = vpop.f32.mrb[0].mxu0
    %v1846 = vadd.f32 %v1364, %v1845
    %v1847 = vpop.f32.mrb[0].mxu0
    %1848 = vmatprep.mubr.f32.mxu0 0.0
    %v1849 = vand.u32 %v416, 4294901760
    %v1850 = vsub.f32 %v416, %v1849
    %1851 = vmatmul.mubr.f32.gmra.mrb[0].mxu0 %v1850
    %v1852 = vpop.f32.mrb[0].mxu0
    %v1853 = vadd.f32 %v1370, %v1852
    %v1854 = vpop.f32.mrb[0].mxu0
    %1855 = vmatprep.mubr.f32.mxu0 0.0
    %v1856 = vand.u32 %v417, 4294901760
    %v1857 = vsub.f32 %v417, %v1856
    %1858 = vmatmul.mubr.f32.gmra.mrb[0].mxu0 %v1857
    %v1859 = vpop.f32.mrb[0].mxu0
    %v1860 = vadd.f32 %v1376, %v1859
    %v1861 = vpop.f32.mrb[0].mxu0
    %1862 = vmatprep.mubr.f32.mxu0 0.0
    %v1863 = vand.u32 %v418, 4294901760
    %v1864 = vsub.f32 %v418, %v1863
    %1865 = vmatmul.mubr.f32.gmra.mrb[0].mxu0 %v1864
    %v1866 = vpop.f32.mrb[0].mxu0
    %v1867 = vadd.f32 %v1382, %v1866
    %v1868 = vpop.f32.mrb[0].mxu0
    %1869 = vmatprep.mubr.f32.mxu0 0.0
    %v1870 = vand.u32 %v419, 4294901760
    %v1871 = vsub.f32 %v419, %v1870
    %1872 = vmatmul.mubr.f32.gmra.mrb[0].mxu0 %v1871
    %v1873 = vpop.f32.mrb[0].mxu0
    %v1874 = vadd.f32 %v1388, %v1873
    %v1875 = vpop.f32.mrb[0].mxu0
    %1876 = vmatprep.mubr.f32.mxu0 0.0
    %v1877 = vand.u32 %v420, 4294901760
    %v1878 = vsub.f32 %v420, %v1877
    %1879 = vmatmul.mubr.f32.gmra.mrb[0].mxu0 %v1878
    %v1880 = vpop.f32.mrb[0].mxu0
    %v1881 = vadd.f32 %v1394, %v1880
    %v1882 = vpop.f32.mrb[0].mxu0
    %1883 = vmatprep.mubr.f32.mxu0 0.0
    %v1884 = vand.u32 %v421, 4294901760
    %v1885 = vsub.f32 %v421, %v1884
    %1886 = vmatmul.mubr.f32.gmra.mrb[0].mxu0 %v1885
    %v1887 = vpop.f32.mrb[0].mxu0
    %v1888 = vadd.f32 %v1400, %v1887
    %v1889 = vpop.f32.mrb[0].mxu0
    %1890 = vmatprep.mubr.f32.mxu0 0.0
    %v1891 = vand.u32 %v422, 4294901760
    %v1892 = vsub.f32 %v422, %v1891
    %1893 = vmatmul.mubr.f32.gmra.mrb[0].mxu0 %v1892
    %v1894 = vpop.f32.mrb[0].mxu0
    %v1895 = vadd.f32 %v1406, %v1894
    %v1896 = vpop.f32.mrb[0].mxu0
    %1897 = vmatprep.mubr.f32.mxu0 0.0
    %v1898 = vand.u32 %v423, 4294901760
    %v1899 = vsub.f32 %v423, %v1898
    %1900 = vmatmul.mubr.f32.gmra.mrb[0].mxu0 %v1899
    %v1901 = vpop.f32.mrb[0].mxu0
    %v1902 = vadd.f32 %v1412, %v1901
    %v1903 = vpop.f32.mrb[0].mxu0
    %1904 = vmatprep.mubr.f32.mxu0 0.0
    %v1905 = vand.u32 %v424, 4294901760
    %v1906 = vsub.f32 %v424, %v1905
    %1907 = vmatmul.mubr.f32.gmra.mrb[0].mxu0 %v1906
    %v1908 = vpop.f32.mrb[0].mxu0
    %v1909 = vadd.f32 %v1418, %v1908
    %v1910 = vpop.f32.mrb[0].mxu0
    %1911 = vmatprep.mubr.f32.mxu0 0.0
    %v1912 = vand.u32 %v425, 4294901760
    %v1913 = vsub.f32 %v425, %v1912
    %1914 = vmatmul.mubr.f32.gmra.mrb[0].mxu0 %v1913
    %v1915 = vpop.f32.mrb[0].mxu0
    %v1916 = vadd.f32 %v1424, %v1915
    %v1917 = vpop.f32.mrb[0].mxu0
    %1918 = vmatprep.mubr.f32.mxu0 0.0
    %v1919 = vand.u32 %v426, 4294901760
    %v1920 = vsub.f32 %v426, %v1919
    %1921 = vmatmul.mubr.f32.gmra.mrb[0].mxu0 %v1920
    %v1922 = vpop.f32.mrb[0].mxu0
    %v1923 = vadd.f32 %v1430, %v1922
    %v1924 = vpop.f32.mrb[0].mxu0
    %1925 = vmatprep.mubr.f32.mxu0 0.0
    %v1926 = vand.u32 %v427, 4294901760
    %v1927 = vsub.f32 %v427, %v1926
    %1928 = vmatmul.mubr.f32.gmra.mrb[0].mxu0 %v1927
    %v1929 = vpop.f32.mrb[0].mxu0
    %v1930 = vadd.f32 %v1436, %v1929
    %v1931 = vpop.f32.mrb[0].mxu0
    %1932 = vmatprep.mubr.f32.mxu0 0.0
    %v1933 = vand.u32 %v428, 4294901760
    %v1934 = vsub.f32 %v428, %v1933
    %1935 = vmatmul.mubr.f32.gmra.mrb[0].mxu0 %v1934
    %v1936 = vpop.f32.mrb[0].mxu0
    %v1937 = vadd.f32 %v1442, %v1936
    %v1938 = vpop.f32.mrb[0].mxu0
    %1939 = vmatprep.mubr.f32.mxu0 0.0
    %v1940 = vand.u32 %v429, 4294901760
    %v1941 = vsub.f32 %v429, %v1940
    %1942 = vmatmul.mubr.f32.gmra.mrb[0].mxu0 %v1941
    %v1943 = vpop.f32.mrb[0].mxu0
    %v1944 = vadd.f32 %v1448, %v1943
    %v1945 = vpop.f32.mrb[0].mxu0
    %1946 = vmatprep.mubr.f32.mxu0 0.0
    %v1947 = vand.u32 %v430, 4294901760
    %v1948 = vsub.f32 %v430, %v1947
    %1949 = vmatmul.mubr.f32.gmra.mrb[0].mxu0 %v1948
    %v1950 = vpop.f32.mrb[0].mxu0
    %v1951 = vadd.f32 %v1454, %v1950
    %v1952 = vpop.f32.mrb[0].mxu0
    %1953 = vmatprep.mubr.f32.mxu0 0.0
    %v1954 = vand.u32 %v431, 4294901760
    %v1955 = vsub.f32 %v431, %v1954
    %1956 = vmatmul.mubr.f32.gmra.mrb[0].mxu0 %v1955
    %v1957 = vpop.f32.mrb[0].mxu0
    %v1958 = vadd.f32 %v1460, %v1957
    %v1959 = vpop.f32.mrb[0].mxu0
    %1960 = vmatprep.mubr.f32.mxu0 0.0
    %v1961 = vand.u32 %v432, 4294901760
    %v1962 = vsub.f32 %v432, %v1961
    %1963 = vmatmul.mubr.f32.gmra.mrb[0].mxu0 %v1962
    %v1964 = vpop.f32.mrb[0].mxu0
    %v1965 = vadd.f32 %v1466, %v1964
    %v1966 = vpop.f32.mrb[0].mxu0
    %1967 = vmatprep.mubr.f32.mxu0 0.0
    %v1968 = vand.u32 %v433, 4294901760
    %v1969 = vsub.f32 %v433, %v1968
    %1970 = vmatmul.mubr.f32.gmra.mrb[0].mxu0 %v1969
    %v1971 = vpop.f32.mrb[0].mxu0
    %v1972 = vadd.f32 %v1472, %v1971
    %v1973 = vpop.f32.mrb[0].mxu0
    %1974 = vmatprep.mubr.f32.mxu0 0.0
    %v1975 = vand.u32 %v434, 4294901760
    %v1976 = vsub.f32 %v434, %v1975
    %1977 = vmatmul.mubr.f32.gmra.mrb[0].mxu0 %v1976
    %v1978 = vpop.f32.mrb[0].mxu0
    %v1979 = vadd.f32 %v1478, %v1978
    %v1980 = vpop.f32.mrb[0].mxu0
    %1981 = vmatprep.mubr.f32.mxu0 0.0
    %v1982 = vand.u32 %v435, 4294901760
    %v1983 = vsub.f32 %v435, %v1982
    %1984 = vmatmul.mubr.f32.gmra.mrb[0].mxu0 %v1983
    %v1985 = vpop.f32.mrb[0].mxu0
    %v1986 = vadd.f32 %v1484, %v1985
    %v1987 = vpop.f32.mrb[0].mxu0
    %1988 = vmatprep.mubr.f32.mxu0 0.0
    %v1989 = vand.u32 %v436, 4294901760
    %v1990 = vsub.f32 %v436, %v1989
    %1991 = vmatmul.mubr.f32.gmra.mrb[0].mxu0 %v1990
    %v1992 = vpop.f32.mrb[0].mxu0
    %v1993 = vadd.f32 %v1490, %v1992
    %v1994 = vpop.f32.mrb[0].mxu0
    %1995 = vmatprep.mubr.f32.mxu0 0.0
    %v1996 = vand.u32 %v437, 4294901760
    %v1997 = vsub.f32 %v437, %v1996
    %1998 = vmatmul.mubr.f32.gmra.mrb[0].mxu0 %v1997
    %v1999 = vpop.f32.mrb[0].mxu0
    %v2000 = vadd.f32 %v1496, %v1999
    %v2001 = vpop.f32.mrb[0].mxu0
    %2002 = vmatprep.mubr.f32.mxu0 0.0
    %v2003 = vand.u32 %v438, 4294901760
    %v2004 = vsub.f32 %v438, %v2003
    %2005 = vmatmul.mubr.f32.gmra.mrb[0].mxu0 %v2004
    %v2006 = vpop.f32.mrb[0].mxu0
    %v2007 = vadd.f32 %v1502, %v2006
    %v2008 = vpop.f32.mrb[0].mxu0
    %2009 = vmatprep.mubr.f32.mxu0 0.0
    %v2010 = vand.u32 %v439, 4294901760
    %v2011 = vsub.f32 %v439, %v2010
    %2012 = vmatmul.mubr.f32.gmra.mrb[0].mxu0 %v2011
    %v2013 = vpop.f32.mrb[0].mxu0
    %v2014 = vadd.f32 %v1508, %v2013
    %v2015 = vpop.f32.mrb[0].mxu0
    %2016 = vmatprep.mubr.f32.mxu0 0.0
    %v2017 = vand.u32 %v440, 4294901760
    %v2018 = vsub.f32 %v440, %v2017
    %2019 = vmatmul.mubr.f32.gmra.mrb[0].mxu0 %v2018
    %v2020 = vpop.f32.mrb[0].mxu0
    %v2021 = vadd.f32 %v1514, %v2020
    %v2022 = vpop.f32.mrb[0].mxu0
    %2023 = vmatprep.mubr.f32.mxu0 0.0
    %v2024 = vand.u32 %v441, 4294901760
    %v2025 = vsub.f32 %v441, %v2024
    %2026 = vmatmul.mubr.f32.gmra.mrb[0].mxu0 %v2025
    %v2027 = vpop.f32.mrb[0].mxu0
    %v2028 = vadd.f32 %v1520, %v2027
    %v2029 = vpop.f32.mrb[0].mxu0
    %2030 = vmatprep.mubr.f32.mxu0 0.0
    %v2031 = vand.u32 %v442, 4294901760
    %v2032 = vsub.f32 %v442, %v2031
    %2033 = vmatmul.mubr.f32.gmra.mrb[0].mxu0 %v2032
    %v2034 = vpop.f32.mrb[0].mxu0
    %v2035 = vadd.f32 %v1526, %v2034
    %v2036 = vpop.f32.mrb[0].mxu0
    %2037 = vmatprep.mubr.f32.mxu0 0.0
    %v2038 = vand.u32 %v443, 4294901760
    %v2039 = vsub.f32 %v443, %v2038
    %2040 = vmatmul.mubr.f32.gmra.mrb[0].mxu0 %v2039
    %v2041 = vpop.f32.mrb[0].mxu0
    %v2042 = vadd.f32 %v1532, %v2041
    %v2043 = vpop.f32.mrb[0].mxu0
    %2044 = vmatprep.mubr.f32.mxu0 0.0
    %v2045 = vand.u32 %v444, 4294901760
    %v2046 = vsub.f32 %v444, %v2045
    %2047 = vmatmul.mubr.f32.gmra.mrb[0].mxu0 %v2046
    %v2048 = vpop.f32.mrb[0].mxu0
    %v2049 = vadd.f32 %v1538, %v2048
    %v2050 = vpop.f32.mrb[0].mxu0
    %2051 = vmatprep.mubr.f32.mxu0 0.0
    %v2052 = vand.u32 %v445, 4294901760
    %v2053 = vsub.f32 %v445, %v2052
    %2054 = vmatmul.mubr.f32.gmra.mrb[0].mxu0 %v2053
    %v2055 = vpop.f32.mrb[0].mxu0
    %v2056 = vadd.f32 %v1544, %v2055
    %v2057 = vpop.f32.mrb[0].mxu0
    %2058 = vmatprep.mubr.f32.mxu0 0.0
    %v2059 = vand.u32 %v446, 4294901760
    %v2060 = vsub.f32 %v446, %v2059
    %2061 = vmatmul.mubr.f32.gmra.mrb[0].mxu0 %v2060
    %v2062 = vpop.f32.mrb[0].mxu0
    %v2063 = vadd.f32 %v1550, %v2062
    %v2064 = vpop.f32.mrb[0].mxu0
    %2065 = vmatprep.mubr.f32.mxu0 0.0
    %v2066 = vand.u32 %v447, 4294901760
    %v2067 = vsub.f32 %v447, %v2066
    %2068 = vmatmul.mubr.f32.gmra.mrb[0].mxu0 %v2067
    %v2069 = vpop.f32.mrb[0].mxu0
    %v2070 = vadd.f32 %v1556, %v2069
    %v2071 = vpop.f32.mrb[0].mxu0
    %2072 = vmatprep.mubr.f32.mxu0 0.0
    %v2073 = vand.u32 %v448, 4294901760
    %v2074 = vsub.f32 %v448, %v2073
    %2075 = vmatmul.mubr.f32.gmra.mrb[0].mxu0 %v2074
    %v2076 = vpop.f32.mrb[0].mxu0
    %v2077 = vadd.f32 %v1562, %v2076
    %v2078 = vpop.f32.mrb[0].mxu0
    %2079 = vmatprep.mubr.f32.mxu0 0.0
    %v2080 = vand.u32 %v449, 4294901760
    %v2081 = vsub.f32 %v449, %v2080
    %2082 = vmatmul.mubr.f32.gmra.mrb[0].mxu0 %v2081
    %v2083 = vpop.f32.mrb[0].mxu0
    %v2084 = vadd.f32 %v1568, %v2083
    %v2085 = vpop.f32.mrb[0].mxu0
    %2086 = vmatprep.mubr.f32.mxu0 0.0
    %v2087 = vand.u32 %v450, 4294901760
    %v2088 = vsub.f32 %v450, %v2087
    %2089 = vmatmul.mubr.f32.gmra.mrb[0].mxu0 %v2088
    %v2090 = vpop.f32.mrb[0].mxu0
    %v2091 = vadd.f32 %v1574, %v2090
    %v2092 = vpop.f32.mrb[0].mxu0
    %2093 = vmatprep.mubr.f32.mxu0 0.0
    %v2094 = vand.u32 %v451, 4294901760
    %v2095 = vsub.f32 %v451, %v2094
    %2096 = vmatmul.mubr.f32.gmra.mrb[0].mxu0 %v2095
    %v2097 = vpop.f32.mrb[0].mxu0
    %v2098 = vadd.f32 %v1580, %v2097
    %v2099 = vpop.f32.mrb[0].mxu0
    %2100 = vmatprep.mubr.f32.mxu0 0.0
    %v2101 = vand.u32 %v452, 4294901760
    %v2102 = vsub.f32 %v452, %v2101
    %2103 = vmatmul.mubr.f32.gmra.mrb[0].mxu0 %v2102
    %v2104 = vpop.f32.mrb[0].mxu0
    %v2105 = vadd.f32 %v1586, %v2104
    %v2106 = vpop.f32.mrb[0].mxu0
    %2107 = vmatprep.mubr.f32.mxu0 0.0
    %v2108 = vand.u32 %v453, 4294901760
    %v2109 = vsub.f32 %v453, %v2108
    %2110 = vmatmul.mubr.f32.gmra.mrb[0].mxu0 %v2109
    %v2111 = vpop.f32.mrb[0].mxu0
    %v2112 = vadd.f32 %v1592, %v2111
    %v2113 = vpop.f32.mrb[0].mxu0
    %2114 = vmatprep.mubr.f32.mxu0 0.0
    %v2115 = vand.u32 %v454, 4294901760
    %v2116 = vsub.f32 %v454, %v2115
    %2117 = vmatmul.mubr.f32.gmra.mrb[0].mxu0 %v2116
    %v2118 = vpop.f32.mrb[0].mxu0
    %v2119 = vadd.f32 %v1598, %v2118
    %v2120 = vpop.f32.mrb[0].mxu0
    %2121 = vmatprep.mubr.f32.mxu0 0.0
    %v2122 = vand.u32 %v455, 4294901760
    %v2123 = vsub.f32 %v455, %v2122
    %2124 = vmatmul.mubr.f32.gmra.mrb[0].mxu0 %v2123
    %v2125 = vpop.f32.mrb[0].mxu0
    %v2126 = vadd.f32 %v1604, %v2125
    %v2127 = vpop.f32.mrb[0].mxu0
    %2128 = vmatprep.mubr.f32.mxu0 0.0
    %v2129 = vand.u32 %v456, 4294901760
    %v2130 = vsub.f32 %v456, %v2129
    %2131 = vmatmul.mubr.f32.gmra.mrb[0].mxu0 %v2130
    %v2132 = vpop.f32.mrb[0].mxu0
    %v2133 = vadd.f32 %v1610, %v2132
    %v2134 = vpop.f32.mrb[0].mxu0
    %2135 = vmatprep.mubr.f32.mxu0 0.0
    %v2136 = vand.u32 %v457, 4294901760
    %v2137 = vsub.f32 %v457, %v2136
    %2138 = vmatmul.mubr.f32.gmra.mrb[0].mxu0 %v2137
    %v2139 = vpop.f32.mrb[0].mxu0
    %v2140 = vadd.f32 %v1616, %v2139
    %v2141 = vpop.f32.mrb[0].mxu0
    %2142 = vmatprep.mubr.f32.mxu0 0.0
    %v2143 = vand.u32 %v458, 4294901760
    %v2144 = vsub.f32 %v458, %v2143
    %2145 = vmatmul.mubr.f32.gmra.mrb[0].mxu0 %v2144
    %v2146 = vpop.f32.mrb[0].mxu0
    %v2147 = vadd.f32 %v1622, %v2146
    %v2148 = vpop.f32.mrb[0].mxu0
    %2149 = vmatprep.mubr.f32.mxu0 0.0
    %v2150 = vand.u32 %v459, 4294901760
    %v2151 = vsub.f32 %v459, %v2150
    %2152 = vmatmul.mubr.f32.gmra.mrb[0].mxu0 %v2151
    %v2153 = vpop.f32.mrb[0].mxu0
    %v2154 = vadd.f32 %v1628, %v2153
    %v2155 = vpop.f32.mrb[0].mxu0
    %2156 = vmatprep.mubr.f32.mxu0 0.0
    %v2157 = vand.u32 %v460, 4294901760
    %v2158 = vsub.f32 %v460, %v2157
    %2159 = vmatmul.mubr.f32.gmra.mrb[0].mxu0 %v2158
    %v2160 = vpop.f32.mrb[0].mxu0
    %v2161 = vadd.f32 %v1634, %v2160
    %v2162 = vpop.f32.mrb[0].mxu0
    %2163 = vmatprep.mubr.f32.mxu0 0.0
    %v2164 = vand.u32 %v461, 4294901760
    %v2165 = vsub.f32 %v461, %v2164
    %2166 = vmatmul.mubr.f32.gmra.mrb[0].mxu0 %v2165
    %v2167 = vpop.f32.mrb[0].mxu0
    %v2168 = vadd.f32 %v1640, %v2167
    %v2169 = vpop.f32.mrb[0].mxu0
    %2170 = vmatprep.mubr.f32.mxu0 0.0
    %v2171 = vand.u32 %v462, 4294901760
    %v2172 = vsub.f32 %v462, %v2171
    %2173 = vmatmul.mubr.f32.gmra.mrb[0].mxu0 %v2172
    %v2174 = vpop.f32.mrb[0].mxu0
    %v2175 = vadd.f32 %v1646, %v2174
    %v2176 = vpop.f32.mrb[0].mxu0
    %2177 = vmatprep.mubr.f32.mxu0 0.0
    %v2178 = vand.u32 %v463, 4294901760
    %v2179 = vsub.f32 %v463, %v2178
    %2180 = vmatmul.mubr.f32.gmra.mrb[0].mxu0 %v2179
    %v2181 = vpop.f32.mrb[0].mxu0
    %v2182 = vadd.f32 %v1652, %v2181
    %v2183 = vpop.f32.mrb[0].mxu0
    %2184 = vmatprep.mubr.f32.mxu0 0.0
    %v2185 = vand.u32 %v464, 4294901760
    %v2186 = vsub.f32 %v464, %v2185
    %2187 = vmatmul.mubr.f32.gmra.mrb[0].mxu0 %v2186
    %v2188 = vpop.f32.mrb[0].mxu0
    %v2189 = vadd.f32 %v1658, %v2188
    %v2190 = vpop.f32.mrb[0].mxu0
    %2191 = vmatprep.mubr.f32.mxu0 0.0
    %v2192 = vand.u32 %v465, 4294901760
    %v2193 = vsub.f32 %v465, %v2192
    %2194 = vmatmul.mubr.f32.gmra.mrb[0].mxu0 %v2193
    %v2195 = vpop.f32.mrb[0].mxu0
    %v2196 = vadd.f32 %v1664, %v2195
    %v2197 = vpop.f32.mrb[0].mxu0
    %2198 = vmatprep.mubr.f32.mxu0 0.0
    %v2199 = vand.u32 %v466, 4294901760
    %v2200 = vsub.f32 %v466, %v2199
    %2201 = vmatmul.mubr.f32.gmra.mrb[0].mxu0 %v2200
    %v2202 = vpop.f32.mrb[0].mxu0
    %v2203 = vadd.f32 %v1670, %v2202
    %v2204 = vpop.f32.mrb[0].mxu0
    %2205 = vmatprep.mubr.f32.mxu0 0.0
    %v2206 = vand.u32 %v467, 4294901760
    %v2207 = vsub.f32 %v467, %v2206
    %2208 = vmatmul.mubr.f32.gmra.mrb[0].mxu0 %v2207
    %v2209 = vpop.f32.mrb[0].mxu0
    %v2210 = vadd.f32 %v1676, %v2209
    %v2211 = vpop.f32.mrb[0].mxu0
    %2212 = vmatprep.mubr.f32.mxu0 0.0
    %v2213 = vand.u32 %v468, 4294901760
    %v2214 = vsub.f32 %v468, %v2213
    %2215 = vmatmul.mubr.f32.gmra.mrb[0].mxu0 %v2214
    %v2216 = vpop.f32.mrb[0].mxu0
    %v2217 = vadd.f32 %v1682, %v2216
    %v2218 = vpop.f32.mrb[0].mxu0
    %2219 = vmatprep.mubr.f32.mxu0 0.0
    %v2220 = vand.u32 %v469, 4294901760
    %v2221 = vsub.f32 %v469, %v2220
    %2222 = vmatmul.mubr.f32.gmra.mrb[0].mxu0 %v2221
    %v2223 = vpop.f32.mrb[0].mxu0
    %v2224 = vadd.f32 %v1688, %v2223
    %v2225 = vpop.f32.mrb[0].mxu0
    %2226 = vmatprep.mubr.f32.mxu0 0.0
    %v2227 = vand.u32 %v470, 4294901760
    %v2228 = vsub.f32 %v470, %v2227
    %2229 = vmatmul.mubr.f32.gmra.mrb[0].mxu0 %v2228
    %v2230 = vpop.f32.mrb[0].mxu0
    %v2231 = vadd.f32 %v1694, %v2230
    %v2232 = vpop.f32.mrb[0].mxu0
    %2233 = vmatprep.mubr.f32.mxu0 0.0
    %v2234 = vand.u32 %v471, 4294901760
    %v2235 = vsub.f32 %v471, %v2234
    %2236 = vmatmul.mubr.f32.gmra.mrb[0].mxu0 %v2235
    %v2237 = vpop.f32.mrb[0].mxu0
    %v2238 = vadd.f32 %v1700, %v2237
    %v2239 = vpop.f32.mrb[0].mxu0
    %2240 = vmatprep.mubr.f32.mxu0 0.0
    %v2241 = vand.u32 %v472, 4294901760
    %v2242 = vsub.f32 %v472, %v2241
    %2243 = vmatmul.mubr.f32.gmra.mrb[0].mxu0 %v2242
    %v2244 = vpop.f32.mrb[0].mxu0
    %v2245 = vadd.f32 %v1706, %v2244
    %v2246 = vpop.f32.mrb[0].mxu0
    %2247 = vmatprep.mubr.f32.mxu0 0.0
    %v2248 = vand.u32 %v473, 4294901760
    %v2249 = vsub.f32 %v473, %v2248
    %2250 = vmatmul.mubr.f32.gmra.mrb[0].mxu0 %v2249
    %v2251 = vpop.f32.mrb[0].mxu0
    %v2252 = vadd.f32 %v1712, %v2251
    %v2253 = vpop.f32.mrb[0].mxu0
    %2254 = vmatprep.mubr.f32.mxu0 0.0
    %v2255 = vand.u32 %v474, 4294901760
    %v2256 = vsub.f32 %v474, %v2255
    %2257 = vmatmul.mubr.f32.gmra.mrb[0].mxu0 %v2256
    %v2258 = vpop.f32.mrb[0].mxu0
    %v2259 = vadd.f32 %v1718, %v2258
    %v2260 = vpop.f32.mrb[0].mxu0
    %2261 = vmatprep.mubr.f32.mxu0 0.0
    %v2262 = vand.u32 %v475, 4294901760
    %v2263 = vsub.f32 %v475, %v2262
    %2264 = vmatmul.mubr.f32.gmra.mrb[0].mxu0 %v2263
    %v2265 = vpop.f32.mrb[0].mxu0
    %v2266 = vadd.f32 %v1724, %v2265
    %v2267 = vpop.f32.mrb[0].mxu0
    %2268 = vmatprep.mubr.f32.mxu0 0.0
    %v2269 = vand.u32 %v476, 4294901760
    %v2270 = vsub.f32 %v476, %v2269
    %2271 = vmatmul.mubr.f32.gmra.mrb[0].mxu0 %v2270
    %v2272 = vpop.f32.mrb[0].mxu0
    %v2273 = vadd.f32 %v1730, %v2272
    %v2274 = vpop.f32.mrb[0].mxu0
    %2275 = vmatprep.mubr.f32.mxu0 0.0
    %v2276 = vand.u32 %v477, 4294901760
    %v2277 = vsub.f32 %v477, %v2276
    %2278 = vmatmul.mubr.f32.gmra.mrb[0].mxu0 %v2277
    %v2279 = vpop.f32.mrb[0].mxu0
    %v2280 = vadd.f32 %v1736, %v2279
    %v2281 = vpop.f32.mrb[0].mxu0
    %2282 = vmatprep.mubr.f32.mxu0 0.0
    %v2283 = vand.u32 %v478, 4294901760
    %v2284 = vsub.f32 %v478, %v2283
    %2285 = vmatmul.mubr.f32.gmra.mrb[0].mxu0 %v2284
    %v2286 = vpop.f32.mrb[0].mxu0
    %v2287 = vadd.f32 %v1742, %v2286
    %v2288 = vpop.f32.mrb[0].mxu0
    %2289 = vdwg.mxu0
    %2290 = vmatprep.subr.mxu0 0.0
    %v2291 = vand.u32 %v479, 4294901760
    %2292 = vmatpush1.msra.mxu0 %v2291
    %2293 = vmatprep.subr.mxu0 0.0
    %v2294 = vand.u32 %v480, 4294901760
    %2295 = vmatpush1.msra.mxu0 %v2294
    %2296 = vmatprep.subr.mxu0 0.0
    %v2297 = vand.u32 %v481, 4294901760
    %2298 = vmatpush1.msra.mxu0 %v2297
    %2299 = vmatprep.subr.mxu0 0.0
    %v2300 = vand.u32 %v482, 4294901760
    %2301 = vmatpush1.msra.mxu0 %v2300
    %2302 = vmatprep.subr.mxu0 0.0
    %v2303 = vand.u32 %v483, 4294901760
    %2304 = vmatpush1.msra.mxu0 %v2303
    %2305 = vmatprep.subr.mxu0 0.0
    %v2306 = vand.u32 %v484, 4294901760
    %2307 = vmatpush1.msra.mxu0 %v2306
    %2308 = vmatprep.subr.mxu0 0.0
    %v2309 = vand.u32 %v485, 4294901760
    %2310 = vmatpush1.msra.mxu0 %v2309
    %2311 = vmatprep.subr.mxu0 0.0
    %v2312 = vand.u32 %v486, 4294901760
    %2313 = vmatpush1.msra.mxu0 %v2312
    %2314 = vmatprep.subr.mxu0 0.0
    %v2315 = vand.u32 %v487, 4294901760
    %2316 = vmatpush1.msra.mxu0 %v2315
    %2317 = vmatprep.subr.mxu0 0.0
    %v2318 = vand.u32 %v488, 4294901760
    %2319 = vmatpush1.msra.mxu0 %v2318
    %2320 = vmatprep.subr.mxu0 0.0
    %v2321 = vand.u32 %v489, 4294901760
    %2322 = vmatpush1.msra.mxu0 %v2321
    %2323 = vmatprep.subr.mxu0 0.0
    %v2324 = vand.u32 %v490, 4294901760
    %2325 = vmatpush1.msra.mxu0 %v2324
    %2326 = vmatprep.subr.mxu0 0.0
    %v2327 = vand.u32 %v491, 4294901760
    %2328 = vmatpush1.msra.mxu0 %v2327
    %2329 = vmatprep.subr.mxu0 0.0
    %v2330 = vand.u32 %v492, 4294901760
    %2331 = vmatpush1.msra.mxu0 %v2330
    %2332 = vmatprep.subr.mxu0 0.0
    %v2333 = vand.u32 %v493, 4294901760
    %2334 = vmatpush1.msra.mxu0 %v2333
    %2335 = vmatprep.subr.mxu0 0.0
    %v2336 = vand.u32 %v494, 4294901760
    %2337 = vmatpush1.msra.mxu0 %v2336
    %2338 = vmatprep.subr.mxu0 0.0
    %2339 = vmatpush1.msra.mxu0 0.0
    %2340 = vmatprep.subr.mxu0 0.0
    %2341 = vmatpush1.msra.mxu0 0.0
    %2342 = vmatprep.subr.mxu0 0.0
    %2343 = vmatpush1.msra.mxu0 0.0
    %2344 = vmatprep.subr.mxu0 0.0
    %2345 = vmatpush1.msra.mxu0 0.0
    %2346 = vmatprep.subr.mxu0 0.0
    %2347 = vmatpush1.msra.mxu0 0.0
    %2348 = vmatprep.subr.mxu0 0.0
    %2349 = vmatpush1.msra.mxu0 0.0
    %2350 = vmatprep.subr.mxu0 0.0
    %2351 = vmatpush1.msra.mxu0 0.0
    %2352 = vmatprep.subr.mxu0 0.0
    %2353 = vmatpush1.msra.mxu0 0.0
    %2354 = vmatprep.subr.mxu0 0.0
    %2355 = vmatpush1.msra.mxu0 0.0
    %2356 = vmatprep.subr.mxu0 0.0
    %2357 = vmatpush1.msra.mxu0 0.0
    %2358 = vmatprep.subr.mxu0 0.0
    %2359 = vmatpush1.msra.mxu0 0.0
    %2360 = vmatprep.subr.mxu0 0.0
    %2361 = vmatpush1.msra.mxu0 0.0
    %2362 = vmatprep.subr.mxu0 0.0
    %2363 = vmatpush1.msra.mxu0 0.0
    %2364 = vmatprep.subr.mxu0 0.0
    %2365 = vmatpush1.msra.mxu0 0.0
    %2366 = vmatprep.subr.mxu0 0.0
    %2367 = vmatpush1.msra.mxu0 0.0
    %2368 = vmatprep.subr.mxu0 0.0
    %2369 = vmatpush1.msra.mxu0 0.0
    %2370 = vmatprep.mubr.f32.mxu0 0.0
    %v2371 = vand.u32 %v415, 4294901760
    %v2372 = vsub.f32 %v415, %v2371
    %v2373 = vand.u32 %v2372, 4294901760
    %2374 = vmatmul.mubr.f32.gmra.mrb[0].mxu0 %v2373
    %v2375 = vpop.f32.mrb[0].mxu0
    %v2376 = vadd.f32 %v1846, %v2375
    %v2377 = vpop.f32.mrb[0].mxu0
    %2378 = vmatprep.mubr.f32.mxu0 0.0
    %v2379 = vand.u32 %v416, 4294901760
    %v2380 = vsub.f32 %v416, %v2379
    %v2381 = vand.u32 %v2380, 4294901760
    %2382 = vmatmul.mubr.f32.gmra.mrb[0].mxu0 %v2381
    %v2383 = vpop.f32.mrb[0].mxu0
    %v2384 = vadd.f32 %v1853, %v2383
    %v2385 = vpop.f32.mrb[0].mxu0
    %2386 = vmatprep.mubr.f32.mxu0 0.0
    %v2387 = vand.u32 %v417, 4294901760
    %v2388 = vsub.f32 %v417, %v2387
    %v2389 = vand.u32 %v2388, 4294901760
    %2390 = vmatmul.mubr.f32.gmra.mrb[0].mxu0 %v2389
    %v2391 = vpop.f32.mrb[0].mxu0
    %v2392 = vadd.f32 %v1860, %v2391
    %v2393 = vpop.f32.mrb[0].mxu0
    %2394 = vmatprep.mubr.f32.mxu0 0.0
    %v2395 = vand.u32 %v418, 4294901760
    %v2396 = vsub.f32 %v418, %v2395
    %v2397 = vand.u32 %v2396, 4294901760
    %2398 = vmatmul.mubr.f32.gmra.mrb[0].mxu0 %v2397
    %v2399 = vpop.f32.mrb[0].mxu0
    %v2400 = vadd.f32 %v1867, %v2399
    %v2401 = vpop.f32.mrb[0].mxu0
    %2402 = vmatprep.mubr.f32.mxu0 0.0
    %v2403 = vand.u32 %v419, 4294901760
    %v2404 = vsub.f32 %v419, %v2403
    %v2405 = vand.u32 %v2404, 4294901760
    %2406 = vmatmul.mubr.f32.gmra.mrb[0].mxu0 %v2405
    %v2407 = vpop.f32.mrb[0].mxu0
    %v2408 = vadd.f32 %v1874, %v2407
    %v2409 = vpop.f32.mrb[0].mxu0
    %2410 = vmatprep.mubr.f32.mxu0 0.0
    %v2411 = vand.u32 %v420, 4294901760
    %v2412 = vsub.f32 %v420, %v2411
    %v2413 = vand.u32 %v2412, 4294901760
    %2414 = vmatmul.mubr.f32.gmra.mrb[0].mxu0 %v2413
    %v2415 = vpop.f32.mrb[0].mxu0
    %v2416 = vadd.f32 %v1881, %v2415
    %v2417 = vpop.f32.mrb[0].mxu0
    %2418 = vmatprep.mubr.f32.mxu0 0.0
    %v2419 = vand.u32 %v421, 4294901760
    %v2420 = vsub.f32 %v421, %v2419
    %v2421 = vand.u32 %v2420, 4294901760
    %2422 = vmatmul.mubr.f32.gmra.mrb[0].mxu0 %v2421
    %v2423 = vpop.f32.mrb[0].mxu0
    %v2424 = vadd.f32 %v1888, %v2423
    %v2425 = vpop.f32.mrb[0].mxu0
    %2426 = vmatprep.mubr.f32.mxu0 0.0
    %v2427 = vand.u32 %v422, 4294901760
    %v2428 = vsub.f32 %v422, %v2427
    %v2429 = vand.u32 %v2428, 4294901760
    %2430 = vmatmul.mubr.f32.gmra.mrb[0].mxu0 %v2429
    %v2431 = vpop.f32.mrb[0].mxu0
    %v2432 = vadd.f32 %v1895, %v2431
    %v2433 = vpop.f32.mrb[0].mxu0
    %2434 = vmatprep.mubr.f32.mxu0 0.0
    %v2435 = vand.u32 %v423, 4294901760
    %v2436 = vsub.f32 %v423, %v2435
    %v2437 = vand.u32 %v2436, 4294901760
    %2438 = vmatmul.mubr.f32.gmra.mrb[0].mxu0 %v2437
    %v2439 = vpop.f32.mrb[0].mxu0
    %v2440 = vadd.f32 %v1902, %v2439
    %v2441 = vpop.f32.mrb[0].mxu0
    %2442 = vmatprep.mubr.f32.mxu0 0.0
    %v2443 = vand.u32 %v424, 4294901760
    %v2444 = vsub.f32 %v424, %v2443
    %v2445 = vand.u32 %v2444, 4294901760
    %2446 = vmatmul.mubr.f32.gmra.mrb[0].mxu0 %v2445
    %v2447 = vpop.f32.mrb[0].mxu0
    %v2448 = vadd.f32 %v1909, %v2447
    %v2449 = vpop.f32.mrb[0].mxu0
    %2450 = vmatprep.mubr.f32.mxu0 0.0
    %v2451 = vand.u32 %v425, 4294901760
    %v2452 = vsub.f32 %v425, %v2451
    %v2453 = vand.u32 %v2452, 4294901760
    %2454 = vmatmul.mubr.f32.gmra.mrb[0].mxu0 %v2453
    %v2455 = vpop.f32.mrb[0].mxu0
    %v2456 = vadd.f32 %v1916, %v2455
    %v2457 = vpop.f32.mrb[0].mxu0
    %2458 = vmatprep.mubr.f32.mxu0 0.0
    %v2459 = vand.u32 %v426, 4294901760
    %v2460 = vsub.f32 %v426, %v2459
    %v2461 = vand.u32 %v2460, 4294901760
    %2462 = vmatmul.mubr.f32.gmra.mrb[0].mxu0 %v2461
    %v2463 = vpop.f32.mrb[0].mxu0
    %v2464 = vadd.f32 %v1923, %v2463
    %v2465 = vpop.f32.mrb[0].mxu0
    %2466 = vmatprep.mubr.f32.mxu0 0.0
    %v2467 = vand.u32 %v427, 4294901760
    %v2468 = vsub.f32 %v427, %v2467
    %v2469 = vand.u32 %v2468, 4294901760
    %2470 = vmatmul.mubr.f32.gmra.mrb[0].mxu0 %v2469
    %v2471 = vpop.f32.mrb[0].mxu0
    %v2472 = vadd.f32 %v1930, %v2471
    %v2473 = vpop.f32.mrb[0].mxu0
    %2474 = vmatprep.mubr.f32.mxu0 0.0
    %v2475 = vand.u32 %v428, 4294901760
    %v2476 = vsub.f32 %v428, %v2475
    %v2477 = vand.u32 %v2476, 4294901760
    %2478 = vmatmul.mubr.f32.gmra.mrb[0].mxu0 %v2477
    %v2479 = vpop.f32.mrb[0].mxu0
    %v2480 = vadd.f32 %v1937, %v2479
    %v2481 = vpop.f32.mrb[0].mxu0
    %2482 = vmatprep.mubr.f32.mxu0 0.0
    %v2483 = vand.u32 %v429, 4294901760
    %v2484 = vsub.f32 %v429, %v2483
    %v2485 = vand.u32 %v2484, 4294901760
    %2486 = vmatmul.mubr.f32.gmra.mrb[0].mxu0 %v2485
    %v2487 = vpop.f32.mrb[0].mxu0
    %v2488 = vadd.f32 %v1944, %v2487
    %v2489 = vpop.f32.mrb[0].mxu0
    %2490 = vmatprep.mubr.f32.mxu0 0.0
    %v2491 = vand.u32 %v430, 4294901760
    %v2492 = vsub.f32 %v430, %v2491
    %v2493 = vand.u32 %v2492, 4294901760
    %2494 = vmatmul.mubr.f32.gmra.mrb[0].mxu0 %v2493
    %v2495 = vpop.f32.mrb[0].mxu0
    %v2496 = vadd.f32 %v1951, %v2495
    %v2497 = vpop.f32.mrb[0].mxu0
    %2498 = vmatprep.mubr.f32.mxu0 0.0
    %v2499 = vand.u32 %v431, 4294901760
    %v2500 = vsub.f32 %v431, %v2499
    %v2501 = vand.u32 %v2500, 4294901760
    %2502 = vmatmul.mubr.f32.gmra.mrb[0].mxu0 %v2501
    %v2503 = vpop.f32.mrb[0].mxu0
    %v2504 = vadd.f32 %v1958, %v2503
    %v2505 = vpop.f32.mrb[0].mxu0
    %2506 = vmatprep.mubr.f32.mxu0 0.0
    %v2507 = vand.u32 %v432, 4294901760
    %v2508 = vsub.f32 %v432, %v2507
    %v2509 = vand.u32 %v2508, 4294901760
    %2510 = vmatmul.mubr.f32.gmra.mrb[0].mxu0 %v2509
    %v2511 = vpop.f32.mrb[0].mxu0
    %v2512 = vadd.f32 %v1965, %v2511
    %v2513 = vpop.f32.mrb[0].mxu0
    %2514 = vmatprep.mubr.f32.mxu0 0.0
    %v2515 = vand.u32 %v433, 4294901760
    %v2516 = vsub.f32 %v433, %v2515
    %v2517 = vand.u32 %v2516, 4294901760
    %2518 = vmatmul.mubr.f32.gmra.mrb[0].mxu0 %v2517
    %v2519 = vpop.f32.mrb[0].mxu0
    %v2520 = vadd.f32 %v1972, %v2519
    %v2521 = vpop.f32.mrb[0].mxu0
    %2522 = vmatprep.mubr.f32.mxu0 0.0
    %v2523 = vand.u32 %v434, 4294901760
    %v2524 = vsub.f32 %v434, %v2523
    %v2525 = vand.u32 %v2524, 4294901760
    %2526 = vmatmul.mubr.f32.gmra.mrb[0].mxu0 %v2525
    %v2527 = vpop.f32.mrb[0].mxu0
    %v2528 = vadd.f32 %v1979, %v2527
    %v2529 = vpop.f32.mrb[0].mxu0
    %2530 = vmatprep.mubr.f32.mxu0 0.0
    %v2531 = vand.u32 %v435, 4294901760
    %v2532 = vsub.f32 %v435, %v2531
    %v2533 = vand.u32 %v2532, 4294901760
    %2534 = vmatmul.mubr.f32.gmra.mrb[0].mxu0 %v2533
    %v2535 = vpop.f32.mrb[0].mxu0
    %v2536 = vadd.f32 %v1986, %v2535
    %v2537 = vpop.f32.mrb[0].mxu0
    %2538 = vmatprep.mubr.f32.mxu0 0.0
    %v2539 = vand.u32 %v436, 4294901760
    %v2540 = vsub.f32 %v436, %v2539
    %v2541 = vand.u32 %v2540, 4294901760
    %2542 = vmatmul.mubr.f32.gmra.mrb[0].mxu0 %v2541
    %v2543 = vpop.f32.mrb[0].mxu0
    %v2544 = vadd.f32 %v1993, %v2543
    %v2545 = vpop.f32.mrb[0].mxu0
    %2546 = vmatprep.mubr.f32.mxu0 0.0
    %v2547 = vand.u32 %v437, 4294901760
    %v2548 = vsub.f32 %v437, %v2547
    %v2549 = vand.u32 %v2548, 4294901760
    %2550 = vmatmul.mubr.f32.gmra.mrb[0].mxu0 %v2549
    %v2551 = vpop.f32.mrb[0].mxu0
    %v2552 = vadd.f32 %v2000, %v2551
    %v2553 = vpop.f32.mrb[0].mxu0
    %2554 = vmatprep.mubr.f32.mxu0 0.0
    %v2555 = vand.u32 %v438, 4294901760
    %v2556 = vsub.f32 %v438, %v2555
    %v2557 = vand.u32 %v2556, 4294901760
    %2558 = vmatmul.mubr.f32.gmra.mrb[0].mxu0 %v2557
    %v2559 = vpop.f32.mrb[0].mxu0
    %v2560 = vadd.f32 %v2007, %v2559
    %v2561 = vpop.f32.mrb[0].mxu0
    %2562 = vmatprep.mubr.f32.mxu0 0.0
    %v2563 = vand.u32 %v439, 4294901760
    %v2564 = vsub.f32 %v439, %v2563
    %v2565 = vand.u32 %v2564, 4294901760
    %2566 = vmatmul.mubr.f32.gmra.mrb[0].mxu0 %v2565
    %v2567 = vpop.f32.mrb[0].mxu0
    %v2568 = vadd.f32 %v2014, %v2567
    %v2569 = vpop.f32.mrb[0].mxu0
    %2570 = vmatprep.mubr.f32.mxu0 0.0
    %v2571 = vand.u32 %v440, 4294901760
    %v2572 = vsub.f32 %v440, %v2571
    %v2573 = vand.u32 %v2572, 4294901760
    %2574 = vmatmul.mubr.f32.gmra.mrb[0].mxu0 %v2573
    %v2575 = vpop.f32.mrb[0].mxu0
    %v2576 = vadd.f32 %v2021, %v2575
    %v2577 = vpop.f32.mrb[0].mxu0
    %2578 = vmatprep.mubr.f32.mxu0 0.0
    %v2579 = vand.u32 %v441, 4294901760
    %v2580 = vsub.f32 %v441, %v2579
    %v2581 = vand.u32 %v2580, 4294901760
    %2582 = vmatmul.mubr.f32.gmra.mrb[0].mxu0 %v2581
    %v2583 = vpop.f32.mrb[0].mxu0
    %v2584 = vadd.f32 %v2028, %v2583
    %v2585 = vpop.f32.mrb[0].mxu0
    %2586 = vmatprep.mubr.f32.mxu0 0.0
    %v2587 = vand.u32 %v442, 4294901760
    %v2588 = vsub.f32 %v442, %v2587
    %v2589 = vand.u32 %v2588, 4294901760
    %2590 = vmatmul.mubr.f32.gmra.mrb[0].mxu0 %v2589
    %v2591 = vpop.f32.mrb[0].mxu0
    %v2592 = vadd.f32 %v2035, %v2591
    %v2593 = vpop.f32.mrb[0].mxu0
    %2594 = vmatprep.mubr.f32.mxu0 0.0
    %v2595 = vand.u32 %v443, 4294901760
    %v2596 = vsub.f32 %v443, %v2595
    %v2597 = vand.u32 %v2596, 4294901760
    %2598 = vmatmul.mubr.f32.gmra.mrb[0].mxu0 %v2597
    %v2599 = vpop.f32.mrb[0].mxu0
    %v2600 = vadd.f32 %v2042, %v2599
    %v2601 = vpop.f32.mrb[0].mxu0
    %2602 = vmatprep.mubr.f32.mxu0 0.0
    %v2603 = vand.u32 %v444, 4294901760
    %v2604 = vsub.f32 %v444, %v2603
    %v2605 = vand.u32 %v2604, 4294901760
    %2606 = vmatmul.mubr.f32.gmra.mrb[0].mxu0 %v2605
    %v2607 = vpop.f32.mrb[0].mxu0
    %v2608 = vadd.f32 %v2049, %v2607
    %v2609 = vpop.f32.mrb[0].mxu0
    %2610 = vmatprep.mubr.f32.mxu0 0.0
    %v2611 = vand.u32 %v445, 4294901760
    %v2612 = vsub.f32 %v445, %v2611
    %v2613 = vand.u32 %v2612, 4294901760
    %2614 = vmatmul.mubr.f32.gmra.mrb[0].mxu0 %v2613
    %v2615 = vpop.f32.mrb[0].mxu0
    %v2616 = vadd.f32 %v2056, %v2615
    %v2617 = vpop.f32.mrb[0].mxu0
    %2618 = vmatprep.mubr.f32.mxu0 0.0
    %v2619 = vand.u32 %v446, 4294901760
    %v2620 = vsub.f32 %v446, %v2619
    %v2621 = vand.u32 %v2620, 4294901760
    %2622 = vmatmul.mubr.f32.gmra.mrb[0].mxu0 %v2621
    %v2623 = vpop.f32.mrb[0].mxu0
    %v2624 = vadd.f32 %v2063, %v2623
    %v2625 = vpop.f32.mrb[0].mxu0
    %2626 = vmatprep.mubr.f32.mxu0 0.0
    %v2627 = vand.u32 %v447, 4294901760
    %v2628 = vsub.f32 %v447, %v2627
    %v2629 = vand.u32 %v2628, 4294901760
    %2630 = vmatmul.mubr.f32.gmra.mrb[0].mxu0 %v2629
    %v2631 = vpop.f32.mrb[0].mxu0
    %v2632 = vadd.f32 %v2070, %v2631
    %v2633 = vpop.f32.mrb[0].mxu0
    %2634 = vmatprep.mubr.f32.mxu0 0.0
    %v2635 = vand.u32 %v448, 4294901760
    %v2636 = vsub.f32 %v448, %v2635
    %v2637 = vand.u32 %v2636, 4294901760
    %2638 = vmatmul.mubr.f32.gmra.mrb[0].mxu0 %v2637
    %v2639 = vpop.f32.mrb[0].mxu0
    %v2640 = vadd.f32 %v2077, %v2639
    %v2641 = vpop.f32.mrb[0].mxu0
    %2642 = vmatprep.mubr.f32.mxu0 0.0
    %v2643 = vand.u32 %v449, 4294901760
    %v2644 = vsub.f32 %v449, %v2643
    %v2645 = vand.u32 %v2644, 4294901760
    %2646 = vmatmul.mubr.f32.gmra.mrb[0].mxu0 %v2645
    %v2647 = vpop.f32.mrb[0].mxu0
    %v2648 = vadd.f32 %v2084, %v2647
    %v2649 = vpop.f32.mrb[0].mxu0
    %2650 = vmatprep.mubr.f32.mxu0 0.0
    %v2651 = vand.u32 %v450, 4294901760
    %v2652 = vsub.f32 %v450, %v2651
    %v2653 = vand.u32 %v2652, 4294901760
    %2654 = vmatmul.mubr.f32.gmra.mrb[0].mxu0 %v2653
    %v2655 = vpop.f32.mrb[0].mxu0
    %v2656 = vadd.f32 %v2091, %v2655
    %v2657 = vpop.f32.mrb[0].mxu0
    %2658 = vmatprep.mubr.f32.mxu0 0.0
    %v2659 = vand.u32 %v451, 4294901760
    %v2660 = vsub.f32 %v451, %v2659
    %v2661 = vand.u32 %v2660, 4294901760
    %2662 = vmatmul.mubr.f32.gmra.mrb[0].mxu0 %v2661
    %v2663 = vpop.f32.mrb[0].mxu0
    %v2664 = vadd.f32 %v2098, %v2663
    %v2665 = vpop.f32.mrb[0].mxu0
    %2666 = vmatprep.mubr.f32.mxu0 0.0
    %v2667 = vand.u32 %v452, 4294901760
    %v2668 = vsub.f32 %v452, %v2667
    %v2669 = vand.u32 %v2668, 4294901760
    %2670 = vmatmul.mubr.f32.gmra.mrb[0].mxu0 %v2669
    %v2671 = vpop.f32.mrb[0].mxu0
    %v2672 = vadd.f32 %v2105, %v2671
    %v2673 = vpop.f32.mrb[0].mxu0
    %2674 = vmatprep.mubr.f32.mxu0 0.0
    %v2675 = vand.u32 %v453, 4294901760
    %v2676 = vsub.f32 %v453, %v2675
    %v2677 = vand.u32 %v2676, 4294901760
    %2678 = vmatmul.mubr.f32.gmra.mrb[0].mxu0 %v2677
    %v2679 = vpop.f32.mrb[0].mxu0
    %v2680 = vadd.f32 %v2112, %v2679
    %v2681 = vpop.f32.mrb[0].mxu0
    %2682 = vmatprep.mubr.f32.mxu0 0.0
    %v2683 = vand.u32 %v454, 4294901760
    %v2684 = vsub.f32 %v454, %v2683
    %v2685 = vand.u32 %v2684, 4294901760
    %2686 = vmatmul.mubr.f32.gmra.mrb[0].mxu0 %v2685
    %v2687 = vpop.f32.mrb[0].mxu0
    %v2688 = vadd.f32 %v2119, %v2687
    %v2689 = vpop.f32.mrb[0].mxu0
    %2690 = vmatprep.mubr.f32.mxu0 0.0
    %v2691 = vand.u32 %v455, 4294901760
    %v2692 = vsub.f32 %v455, %v2691
    %v2693 = vand.u32 %v2692, 4294901760
    %2694 = vmatmul.mubr.f32.gmra.mrb[0].mxu0 %v2693
    %v2695 = vpop.f32.mrb[0].mxu0
    %v2696 = vadd.f32 %v2126, %v2695
    %v2697 = vpop.f32.mrb[0].mxu0
    %2698 = vmatprep.mubr.f32.mxu0 0.0
    %v2699 = vand.u32 %v456, 4294901760
    %v2700 = vsub.f32 %v456, %v2699
    %v2701 = vand.u32 %v2700, 4294901760
    %2702 = vmatmul.mubr.f32.gmra.mrb[0].mxu0 %v2701
    %v2703 = vpop.f32.mrb[0].mxu0
    %v2704 = vadd.f32 %v2133, %v2703
    %v2705 = vpop.f32.mrb[0].mxu0
    %2706 = vmatprep.mubr.f32.mxu0 0.0
    %v2707 = vand.u32 %v457, 4294901760
    %v2708 = vsub.f32 %v457, %v2707
    %v2709 = vand.u32 %v2708, 4294901760
    %2710 = vmatmul.mubr.f32.gmra.mrb[0].mxu0 %v2709
    %v2711 = vpop.f32.mrb[0].mxu0
    %v2712 = vadd.f32 %v2140, %v2711
    %v2713 = vpop.f32.mrb[0].mxu0
    %2714 = vmatprep.mubr.f32.mxu0 0.0
    %v2715 = vand.u32 %v458, 4294901760
    %v2716 = vsub.f32 %v458, %v2715
    %v2717 = vand.u32 %v2716, 4294901760
    %2718 = vmatmul.mubr.f32.gmra.mrb[0].mxu0 %v2717
    %v2719 = vpop.f32.mrb[0].mxu0
    %v2720 = vadd.f32 %v2147, %v2719
    %v2721 = vpop.f32.mrb[0].mxu0
    %2722 = vmatprep.mubr.f32.mxu0 0.0
    %v2723 = vand.u32 %v459, 4294901760
    %v2724 = vsub.f32 %v459, %v2723
    %v2725 = vand.u32 %v2724, 4294901760
    %2726 = vmatmul.mubr.f32.gmra.mrb[0].mxu0 %v2725
    %v2727 = vpop.f32.mrb[0].mxu0
    %v2728 = vadd.f32 %v2154, %v2727
    %v2729 = vpop.f32.mrb[0].mxu0
    %2730 = vmatprep.mubr.f32.mxu0 0.0
    %v2731 = vand.u32 %v460, 4294901760
    %v2732 = vsub.f32 %v460, %v2731
    %v2733 = vand.u32 %v2732, 4294901760
    %2734 = vmatmul.mubr.f32.gmra.mrb[0].mxu0 %v2733
    %v2735 = vpop.f32.mrb[0].mxu0
    %v2736 = vadd.f32 %v2161, %v2735
    %v2737 = vpop.f32.mrb[0].mxu0
    %2738 = vmatprep.mubr.f32.mxu0 0.0
    %v2739 = vand.u32 %v461, 4294901760
    %v2740 = vsub.f32 %v461, %v2739
    %v2741 = vand.u32 %v2740, 4294901760
    %2742 = vmatmul.mubr.f32.gmra.mrb[0].mxu0 %v2741
    %v2743 = vpop.f32.mrb[0].mxu0
    %v2744 = vadd.f32 %v2168, %v2743
    %v2745 = vpop.f32.mrb[0].mxu0
    %2746 = vmatprep.mubr.f32.mxu0 0.0
    %v2747 = vand.u32 %v462, 4294901760
    %v2748 = vsub.f32 %v462, %v2747
    %v2749 = vand.u32 %v2748, 4294901760
    %2750 = vmatmul.mubr.f32.gmra.mrb[0].mxu0 %v2749
    %v2751 = vpop.f32.mrb[0].mxu0
    %v2752 = vadd.f32 %v2175, %v2751
    %v2753 = vpop.f32.mrb[0].mxu0
    %2754 = vmatprep.mubr.f32.mxu0 0.0
    %v2755 = vand.u32 %v463, 4294901760
    %v2756 = vsub.f32 %v463, %v2755
    %v2757 = vand.u32 %v2756, 4294901760
    %2758 = vmatmul.mubr.f32.gmra.mrb[0].mxu0 %v2757
    %v2759 = vpop.f32.mrb[0].mxu0
    %v2760 = vadd.f32 %v2182, %v2759
    %v2761 = vpop.f32.mrb[0].mxu0
    %2762 = vmatprep.mubr.f32.mxu0 0.0
    %v2763 = vand.u32 %v464, 4294901760
    %v2764 = vsub.f32 %v464, %v2763
    %v2765 = vand.u32 %v2764, 4294901760
    %2766 = vmatmul.mubr.f32.gmra.mrb[0].mxu0 %v2765
    %v2767 = vpop.f32.mrb[0].mxu0
    %v2768 = vadd.f32 %v2189, %v2767
    %v2769 = vpop.f32.mrb[0].mxu0
    %2770 = vmatprep.mubr.f32.mxu0 0.0
    %v2771 = vand.u32 %v465, 4294901760
    %v2772 = vsub.f32 %v465, %v2771
    %v2773 = vand.u32 %v2772, 4294901760
    %2774 = vmatmul.mubr.f32.gmra.mrb[0].mxu0 %v2773
    %v2775 = vpop.f32.mrb[0].mxu0
    %v2776 = vadd.f32 %v2196, %v2775
    %v2777 = vpop.f32.mrb[0].mxu0
    %2778 = vmatprep.mubr.f32.mxu0 0.0
    %v2779 = vand.u32 %v466, 4294901760
    %v2780 = vsub.f32 %v466, %v2779
    %v2781 = vand.u32 %v2780, 4294901760
    %2782 = vmatmul.mubr.f32.gmra.mrb[0].mxu0 %v2781
    %v2783 = vpop.f32.mrb[0].mxu0
    %v2784 = vadd.f32 %v2203, %v2783
    %v2785 = vpop.f32.mrb[0].mxu0
    %2786 = vmatprep.mubr.f32.mxu0 0.0
    %v2787 = vand.u32 %v467, 4294901760
    %v2788 = vsub.f32 %v467, %v2787
    %v2789 = vand.u32 %v2788, 4294901760
    %2790 = vmatmul.mubr.f32.gmra.mrb[0].mxu0 %v2789
    %v2791 = vpop.f32.mrb[0].mxu0
    %v2792 = vadd.f32 %v2210, %v2791
    %v2793 = vpop.f32.mrb[0].mxu0
    %2794 = vmatprep.mubr.f32.mxu0 0.0
    %v2795 = vand.u32 %v468, 4294901760
    %v2796 = vsub.f32 %v468, %v2795
    %v2797 = vand.u32 %v2796, 4294901760
    %2798 = vmatmul.mubr.f32.gmra.mrb[0].mxu0 %v2797
    %v2799 = vpop.f32.mrb[0].mxu0
    %v2800 = vadd.f32 %v2217, %v2799
    %v2801 = vpop.f32.mrb[0].mxu0
    %2802 = vmatprep.mubr.f32.mxu0 0.0
    %v2803 = vand.u32 %v469, 4294901760
    %v2804 = vsub.f32 %v469, %v2803
    %v2805 = vand.u32 %v2804, 4294901760
    %2806 = vmatmul.mubr.f32.gmra.mrb[0].mxu0 %v2805
    %v2807 = vpop.f32.mrb[0].mxu0
    %v2808 = vadd.f32 %v2224, %v2807
    %v2809 = vpop.f32.mrb[0].mxu0
    %2810 = vmatprep.mubr.f32.mxu0 0.0
    %v2811 = vand.u32 %v470, 4294901760
    %v2812 = vsub.f32 %v470, %v2811
    %v2813 = vand.u32 %v2812, 4294901760
    %2814 = vmatmul.mubr.f32.gmra.mrb[0].mxu0 %v2813
    %v2815 = vpop.f32.mrb[0].mxu0
    %v2816 = vadd.f32 %v2231, %v2815
    %v2817 = vpop.f32.mrb[0].mxu0
    %2818 = vmatprep.mubr.f32.mxu0 0.0
    %v2819 = vand.u32 %v471, 4294901760
    %v2820 = vsub.f32 %v471, %v2819
    %v2821 = vand.u32 %v2820, 4294901760
    %2822 = vmatmul.mubr.f32.gmra.mrb[0].mxu0 %v2821
    %v2823 = vpop.f32.mrb[0].mxu0
    %v2824 = vadd.f32 %v2238, %v2823
    %v2825 = vpop.f32.mrb[0].mxu0
    %2826 = vmatprep.mubr.f32.mxu0 0.0
    %v2827 = vand.u32 %v472, 4294901760
    %v2828 = vsub.f32 %v472, %v2827
    %v2829 = vand.u32 %v2828, 4294901760
    %2830 = vmatmul.mubr.f32.gmra.mrb[0].mxu0 %v2829
    %v2831 = vpop.f32.mrb[0].mxu0
    %v2832 = vadd.f32 %v2245, %v2831
    %v2833 = vpop.f32.mrb[0].mxu0
    %2834 = vmatprep.mubr.f32.mxu0 0.0
    %v2835 = vand.u32 %v473, 4294901760
    %v2836 = vsub.f32 %v473, %v2835
    %v2837 = vand.u32 %v2836, 4294901760
    %2838 = vmatmul.mubr.f32.gmra.mrb[0].mxu0 %v2837
    %v2839 = vpop.f32.mrb[0].mxu0
    %v2840 = vadd.f32 %v2252, %v2839
    %v2841 = vpop.f32.mrb[0].mxu0
    %2842 = vmatprep.mubr.f32.mxu0 0.0
    %v2843 = vand.u32 %v474, 4294901760
    %v2844 = vsub.f32 %v474, %v2843
    %v2845 = vand.u32 %v2844, 4294901760
    %2846 = vmatmul.mubr.f32.gmra.mrb[0].mxu0 %v2845
    %v2847 = vpop.f32.mrb[0].mxu0
    %v2848 = vadd.f32 %v2259, %v2847
    %v2849 = vpop.f32.mrb[0].mxu0
    %2850 = vmatprep.mubr.f32.mxu0 0.0
    %v2851 = vand.u32 %v475, 4294901760
    %v2852 = vsub.f32 %v475, %v2851
    %v2853 = vand.u32 %v2852, 4294901760
    %2854 = vmatmul.mubr.f32.gmra.mrb[0].mxu0 %v2853
    %v2855 = vpop.f32.mrb[0].mxu0
    %v2856 = vadd.f32 %v2266, %v2855
    %v2857 = vpop.f32.mrb[0].mxu0
    %2858 = vmatprep.mubr.f32.mxu0 0.0
    %v2859 = vand.u32 %v476, 4294901760
    %v2860 = vsub.f32 %v476, %v2859
    %v2861 = vand.u32 %v2860, 4294901760
    %2862 = vmatmul.mubr.f32.gmra.mrb[0].mxu0 %v2861
    %v2863 = vpop.f32.mrb[0].mxu0
    %v2864 = vadd.f32 %v2273, %v2863
    %v2865 = vpop.f32.mrb[0].mxu0
    %2866 = vmatprep.mubr.f32.mxu0 0.0
    %v2867 = vand.u32 %v477, 4294901760
    %v2868 = vsub.f32 %v477, %v2867
    %v2869 = vand.u32 %v2868, 4294901760
    %2870 = vmatmul.mubr.f32.gmra.mrb[0].mxu0 %v2869
    %v2871 = vpop.f32.mrb[0].mxu0
    %v2872 = vadd.f32 %v2280, %v2871
    %v2873 = vpop.f32.mrb[0].mxu0
    %2874 = vmatprep.mubr.f32.mxu0 0.0
    %v2875 = vand.u32 %v478, 4294901760
    %v2876 = vsub.f32 %v478, %v2875
    %v2877 = vand.u32 %v2876, 4294901760
    %2878 = vmatmul.mubr.f32.gmra.mrb[0].mxu0 %v2877
    %v2879 = vpop.f32.mrb[0].mxu0
    %v2880 = vadd.f32 %v2287, %v2879
    %v2881 = vpop.f32.mrb[0].mxu0
    %2882 = vdwg.mxu0
    %2883 = vmatprep.subr.mxu0 0.0
    %v2884 = vand.u32 %v479, 4294901760
    %v2885 = vsub.f32 %v479, %v2884
    %v2886 = vand.u32 %v2885, 4294901760
    %2887 = vmatpush1.msra.mxu0 %v2886
    %2888 = vmatprep.subr.mxu0 0.0
    %v2889 = vand.u32 %v480, 4294901760
    %v2890 = vsub.f32 %v480, %v2889
    %v2891 = vand.u32 %v2890, 4294901760
    %2892 = vmatpush1.msra.mxu0 %v2891
    %2893 = vmatprep.subr.mxu0 0.0
    %v2894 = vand.u32 %v481, 4294901760
    %v2895 = vsub.f32 %v481, %v2894
    %v2896 = vand.u32 %v2895, 4294901760
    %2897 = vmatpush1.msra.mxu0 %v2896
    %2898 = vmatprep.subr.mxu0 0.0
    %v2899 = vand.u32 %v482, 4294901760
    %v2900 = vsub.f32 %v482, %v2899
    %v2901 = vand.u32 %v2900, 4294901760
    %2902 = vmatpush1.msra.mxu0 %v2901
    %2903 = vmatprep.subr.mxu0 0.0
    %v2904 = vand.u32 %v483, 4294901760
    %v2905 = vsub.f32 %v483, %v2904
    %v2906 = vand.u32 %v2905, 4294901760
    %2907 = vmatpush1.msra.mxu0 %v2906
    %2908 = vmatprep.subr.mxu0 0.0
    %v2909 = vand.u32 %v484, 4294901760
    %v2910 = vsub.f32 %v484, %v2909
    %v2911 = vand.u32 %v2910, 4294901760
    %2912 = vmatpush1.msra.mxu0 %v2911
    %2913 = vmatprep.subr.mxu0 0.0
    %v2914 = vand.u32 %v485, 4294901760
    %v2915 = vsub.f32 %v485, %v2914
    %v2916 = vand.u32 %v2915, 4294901760
    %2917 = vmatpush1.msra.mxu0 %v2916
    %2918 = vmatprep.subr.mxu0 0.0
    %v2919 = vand.u32 %v486, 4294901760
    %v2920 = vsub.f32 %v486, %v2919
    %v2921 = vand.u32 %v2920, 4294901760
    %2922 = vmatpush1.msra.mxu0 %v2921
    %2923 = vmatprep.subr.mxu0 0.0
    %v2924 = vand.u32 %v487, 4294901760
    %v2925 = vsub.f32 %v487, %v2924
    %v2926 = vand.u32 %v2925, 4294901760
    %2927 = vmatpush1.msra.mxu0 %v2926
    %2928 = vmatprep.subr.mxu0 0.0
    %v2929 = vand.u32 %v488, 4294901760
    %v2930 = vsub.f32 %v488, %v2929
    %v2931 = vand.u32 %v2930, 4294901760
    %2932 = vmatpush1.msra.mxu0 %v2931
    %2933 = vmatprep.subr.mxu0 0.0
    %v2934 = vand.u32 %v489, 4294901760
    %v2935 = vsub.f32 %v489, %v2934
    %v2936 = vand.u32 %v2935, 4294901760
    %2937 = vmatpush1.msra.mxu0 %v2936
    %2938 = vmatprep.subr.mxu0 0.0
    %v2939 = vand.u32 %v490, 4294901760
    %v2940 = vsub.f32 %v490, %v2939
    %v2941 = vand.u32 %v2940, 4294901760
    %2942 = vmatpush1.msra.mxu0 %v2941
    %2943 = vmatprep.subr.mxu0 0.0
    %v2944 = vand.u32 %v491, 4294901760
    %v2945 = vsub.f32 %v491, %v2944
    %v2946 = vand.u32 %v2945, 4294901760
    %2947 = vmatpush1.msra.mxu0 %v2946
    %2948 = vmatprep.subr.mxu0 0.0
    %v2949 = vand.u32 %v492, 4294901760
    %v2950 = vsub.f32 %v492, %v2949
    %v2951 = vand.u32 %v2950, 4294901760
    %2952 = vmatpush1.msra.mxu0 %v2951
    %2953 = vmatprep.subr.mxu0 0.0
    %v2954 = vand.u32 %v493, 4294901760
    %v2955 = vsub.f32 %v493, %v2954
    %v2956 = vand.u32 %v2955, 4294901760
    %2957 = vmatpush1.msra.mxu0 %v2956
    %2958 = vmatprep.subr.mxu0 0.0
    %v2959 = vand.u32 %v494, 4294901760
    %v2960 = vsub.f32 %v494, %v2959
    %v2961 = vand.u32 %v2960, 4294901760
    %2962 = vmatpush1.msra.mxu0 %v2961
    %2963 = vmatprep.subr.mxu0 0.0
    %2964 = vmatpush1.msra.mxu0 0.0
    %2965 = vmatprep.subr.mxu0 0.0
    %2966 = vmatpush1.msra.mxu0 0.0
    %2967 = vmatprep.subr.mxu0 0.0
    %2968 = vmatpush1.msra.mxu0 0.0
    %2969 = vmatprep.subr.mxu0 0.0
    %2970 = vmatpush1.msra.mxu0 0.0
    %2971 = vmatprep.subr.mxu0 0.0
    %2972 = vmatpush1.msra.mxu0 0.0
    %2973 = vmatprep.subr.mxu0 0.0
    %2974 = vmatpush1.msra.mxu0 0.0
    %2975 = vmatprep.subr.mxu0 0.0
    %2976 = vmatpush1.msra.mxu0 0.0
    %2977 = vmatprep.subr.mxu0 0.0
    %2978 = vmatpush1.msra.mxu0 0.0
    %2979 = vmatprep.subr.mxu0 0.0
    %2980 = vmatpush1.msra.mxu0 0.0
    %2981 = vmatprep.subr.mxu0 0.0
    %2982 = vmatpush1.msra.mxu0 0.0
    %2983 = vmatprep.subr.mxu0 0.0
    %2984 = vmatpush1.msra.mxu0 0.0
    %2985 = vmatprep.subr.mxu0 0.0
    %2986 = vmatpush1.msra.mxu0 0.0
    %2987 = vmatprep.subr.mxu0 0.0
    %2988 = vmatpush1.msra.mxu0 0.0
    %2989 = vmatprep.subr.mxu0 0.0
    %2990 = vmatpush1.msra.mxu0 0.0
    %2991 = vmatprep.subr.mxu0 0.0
    %2992 = vmatpush1.msra.mxu0 0.0
    %2993 = vmatprep.subr.mxu0 0.0
    %2994 = vmatpush1.msra.mxu0 0.0
    %2995 = vmatprep.mubr.f32.mxu0 0.0
    %v2996 = vand.u32 %v415, 4294901760
    %2997 = vmatmul.mubr.f32.gmra.mrb[0].mxu0 %v2996
    %v2998 = vpop.f32.mrb[0].mxu0
    %v2999 = vadd.f32 %v2376, %v2998
    %v3000 = vpop.f32.mrb[0].mxu0
    %3001 = vmatprep.mubr.f32.mxu0 0.0
    %v3002 = vand.u32 %v416, 4294901760
    %3003 = vmatmul.mubr.f32.gmra.mrb[0].mxu0 %v3002
    %v3004 = vpop.f32.mrb[0].mxu0
    %v3005 = vadd.f32 %v2384, %v3004
    %v3006 = vpop.f32.mrb[0].mxu0
    %3007 = vmatprep.mubr.f32.mxu0 0.0
    %v3008 = vand.u32 %v417, 4294901760
    %3009 = vmatmul.mubr.f32.gmra.mrb[0].mxu0 %v3008
    %v3010 = vpop.f32.mrb[0].mxu0
    %v3011 = vadd.f32 %v2392, %v3010
    %v3012 = vpop.f32.mrb[0].mxu0
    %3013 = vmatprep.mubr.f32.mxu0 0.0
    %v3014 = vand.u32 %v418, 4294901760
    %3015 = vmatmul.mubr.f32.gmra.mrb[0].mxu0 %v3014
    %v3016 = vpop.f32.mrb[0].mxu0
    %v3017 = vadd.f32 %v2400, %v3016
    %v3018 = vpop.f32.mrb[0].mxu0
    %3019 = vmatprep.mubr.f32.mxu0 0.0
    %v3020 = vand.u32 %v419, 4294901760
    %3021 = vmatmul.mubr.f32.gmra.mrb[0].mxu0 %v3020
    %v3022 = vpop.f32.mrb[0].mxu0
    %v3023 = vadd.f32 %v2408, %v3022
    %v3024 = vpop.f32.mrb[0].mxu0
    %3025 = vmatprep.mubr.f32.mxu0 0.0
    %v3026 = vand.u32 %v420, 4294901760
    %3027 = vmatmul.mubr.f32.gmra.mrb[0].mxu0 %v3026
    %v3028 = vpop.f32.mrb[0].mxu0
    %v3029 = vadd.f32 %v2416, %v3028
    %v3030 = vpop.f32.mrb[0].mxu0
    %3031 = vmatprep.mubr.f32.mxu0 0.0
    %v3032 = vand.u32 %v421, 4294901760
    %3033 = vmatmul.mubr.f32.gmra.mrb[0].mxu0 %v3032
    %v3034 = vpop.f32.mrb[0].mxu0
    %v3035 = vadd.f32 %v2424, %v3034
    %v3036 = vpop.f32.mrb[0].mxu0
    %3037 = vmatprep.mubr.f32.mxu0 0.0
    %v3038 = vand.u32 %v422, 4294901760
    %3039 = vmatmul.mubr.f32.gmra.mrb[0].mxu0 %v3038
    %v3040 = vpop.f32.mrb[0].mxu0
    %v3041 = vadd.f32 %v2432, %v3040
    %v3042 = vpop.f32.mrb[0].mxu0
    %3043 = vmatprep.mubr.f32.mxu0 0.0
    %v3044 = vand.u32 %v423, 4294901760
    %3045 = vmatmul.mubr.f32.gmra.mrb[0].mxu0 %v3044
    %v3046 = vpop.f32.mrb[0].mxu0
    %v3047 = vadd.f32 %v2440, %v3046
    %v3048 = vpop.f32.mrb[0].mxu0
    %3049 = vmatprep.mubr.f32.mxu0 0.0
    %v3050 = vand.u32 %v424, 4294901760
    %3051 = vmatmul.mubr.f32.gmra.mrb[0].mxu0 %v3050
    %v3052 = vpop.f32.mrb[0].mxu0
    %v3053 = vadd.f32 %v2448, %v3052
    %v3054 = vpop.f32.mrb[0].mxu0
    %3055 = vmatprep.mubr.f32.mxu0 0.0
    %v3056 = vand.u32 %v425, 4294901760
    %3057 = vmatmul.mubr.f32.gmra.mrb[0].mxu0 %v3056
    %v3058 = vpop.f32.mrb[0].mxu0
    %v3059 = vadd.f32 %v2456, %v3058
    %v3060 = vpop.f32.mrb[0].mxu0
    %3061 = vmatprep.mubr.f32.mxu0 0.0
    %v3062 = vand.u32 %v426, 4294901760
    %3063 = vmatmul.mubr.f32.gmra.mrb[0].mxu0 %v3062
    %v3064 = vpop.f32.mrb[0].mxu0
    %v3065 = vadd.f32 %v2464, %v3064
    %v3066 = vpop.f32.mrb[0].mxu0
    %3067 = vmatprep.mubr.f32.mxu0 0.0
    %v3068 = vand.u32 %v427, 4294901760
    %3069 = vmatmul.mubr.f32.gmra.mrb[0].mxu0 %v3068
    %v3070 = vpop.f32.mrb[0].mxu0
    %v3071 = vadd.f32 %v2472, %v3070
    %v3072 = vpop.f32.mrb[0].mxu0
    %3073 = vmatprep.mubr.f32.mxu0 0.0
    %v3074 = vand.u32 %v428, 4294901760
    %3075 = vmatmul.mubr.f32.gmra.mrb[0].mxu0 %v3074
    %v3076 = vpop.f32.mrb[0].mxu0
    %v3077 = vadd.f32 %v2480, %v3076
    %v3078 = vpop.f32.mrb[0].mxu0
    %3079 = vmatprep.mubr.f32.mxu0 0.0
    %v3080 = vand.u32 %v429, 4294901760
    %3081 = vmatmul.mubr.f32.gmra.mrb[0].mxu0 %v3080
    %v3082 = vpop.f32.mrb[0].mxu0
    %v3083 = vadd.f32 %v2488, %v3082
    %v3084 = vpop.f32.mrb[0].mxu0
    %3085 = vmatprep.mubr.f32.mxu0 0.0
    %v3086 = vand.u32 %v430, 4294901760
    %3087 = vmatmul.mubr.f32.gmra.mrb[0].mxu0 %v3086
    %v3088 = vpop.f32.mrb[0].mxu0
    %v3089 = vadd.f32 %v2496, %v3088
    %v3090 = vpop.f32.mrb[0].mxu0
    %3091 = vmatprep.mubr.f32.mxu0 0.0
    %v3092 = vand.u32 %v431, 4294901760
    %3093 = vmatmul.mubr.f32.gmra.mrb[0].mxu0 %v3092
    %v3094 = vpop.f32.mrb[0].mxu0
    %v3095 = vadd.f32 %v2504, %v3094
    %v3096 = vpop.f32.mrb[0].mxu0
    %3097 = vmatprep.mubr.f32.mxu0 0.0
    %v3098 = vand.u32 %v432, 4294901760
    %3099 = vmatmul.mubr.f32.gmra.mrb[0].mxu0 %v3098
    %v3100 = vpop.f32.mrb[0].mxu0
    %v3101 = vadd.f32 %v2512, %v3100
    %v3102 = vpop.f32.mrb[0].mxu0
    %3103 = vmatprep.mubr.f32.mxu0 0.0
    %v3104 = vand.u32 %v433, 4294901760
    %3105 = vmatmul.mubr.f32.gmra.mrb[0].mxu0 %v3104
    %v3106 = vpop.f32.mrb[0].mxu0
    %v3107 = vadd.f32 %v2520, %v3106
    %v3108 = vpop.f32.mrb[0].mxu0
    %3109 = vmatprep.mubr.f32.mxu0 0.0
    %v3110 = vand.u32 %v434, 4294901760
    %3111 = vmatmul.mubr.f32.gmra.mrb[0].mxu0 %v3110
    %v3112 = vpop.f32.mrb[0].mxu0
    %v3113 = vadd.f32 %v2528, %v3112
    %v3114 = vpop.f32.mrb[0].mxu0
    %3115 = vmatprep.mubr.f32.mxu0 0.0
    %v3116 = vand.u32 %v435, 4294901760
    %3117 = vmatmul.mubr.f32.gmra.mrb[0].mxu0 %v3116
    %v3118 = vpop.f32.mrb[0].mxu0
    %v3119 = vadd.f32 %v2536, %v3118
    %v3120 = vpop.f32.mrb[0].mxu0
    %3121 = vmatprep.mubr.f32.mxu0 0.0
    %v3122 = vand.u32 %v436, 4294901760
    %3123 = vmatmul.mubr.f32.gmra.mrb[0].mxu0 %v3122
    %v3124 = vpop.f32.mrb[0].mxu0
    %v3125 = vadd.f32 %v2544, %v3124
    %v3126 = vpop.f32.mrb[0].mxu0
    %3127 = vmatprep.mubr.f32.mxu0 0.0
    %v3128 = vand.u32 %v437, 4294901760
    %3129 = vmatmul.mubr.f32.gmra.mrb[0].mxu0 %v3128
    %v3130 = vpop.f32.mrb[0].mxu0
    %v3131 = vadd.f32 %v2552, %v3130
    %v3132 = vpop.f32.mrb[0].mxu0
    %3133 = vmatprep.mubr.f32.mxu0 0.0
    %v3134 = vand.u32 %v438, 4294901760
    %3135 = vmatmul.mubr.f32.gmra.mrb[0].mxu0 %v3134
    %v3136 = vpop.f32.mrb[0].mxu0
    %v3137 = vadd.f32 %v2560, %v3136
    %v3138 = vpop.f32.mrb[0].mxu0
    %3139 = vmatprep.mubr.f32.mxu0 0.0
    %v3140 = vand.u32 %v439, 4294901760
    %3141 = vmatmul.mubr.f32.gmra.mrb[0].mxu0 %v3140
    %v3142 = vpop.f32.mrb[0].mxu0
    %v3143 = vadd.f32 %v2568, %v3142
    %v3144 = vpop.f32.mrb[0].mxu0
    %3145 = vmatprep.mubr.f32.mxu0 0.0
    %v3146 = vand.u32 %v440, 4294901760
    %3147 = vmatmul.mubr.f32.gmra.mrb[0].mxu0 %v3146
    %v3148 = vpop.f32.mrb[0].mxu0
    %v3149 = vadd.f32 %v2576, %v3148
    %v3150 = vpop.f32.mrb[0].mxu0
    %3151 = vmatprep.mubr.f32.mxu0 0.0
    %v3152 = vand.u32 %v441, 4294901760
    %3153 = vmatmul.mubr.f32.gmra.mrb[0].mxu0 %v3152
    %v3154 = vpop.f32.mrb[0].mxu0
    %v3155 = vadd.f32 %v2584, %v3154
    %v3156 = vpop.f32.mrb[0].mxu0
    %3157 = vmatprep.mubr.f32.mxu0 0.0
    %v3158 = vand.u32 %v442, 4294901760
    %3159 = vmatmul.mubr.f32.gmra.mrb[0].mxu0 %v3158
    %v3160 = vpop.f32.mrb[0].mxu0
    %v3161 = vadd.f32 %v2592, %v3160
    %v3162 = vpop.f32.mrb[0].mxu0
    %3163 = vmatprep.mubr.f32.mxu0 0.0
    %v3164 = vand.u32 %v443, 4294901760
    %3165 = vmatmul.mubr.f32.gmra.mrb[0].mxu0 %v3164
    %v3166 = vpop.f32.mrb[0].mxu0
    %v3167 = vadd.f32 %v2600, %v3166
    %v3168 = vpop.f32.mrb[0].mxu0
    %3169 = vmatprep.mubr.f32.mxu0 0.0
    %v3170 = vand.u32 %v444, 4294901760
    %3171 = vmatmul.mubr.f32.gmra.mrb[0].mxu0 %v3170
    %v3172 = vpop.f32.mrb[0].mxu0
    %v3173 = vadd.f32 %v2608, %v3172
    %v3174 = vpop.f32.mrb[0].mxu0
    %3175 = vmatprep.mubr.f32.mxu0 0.0
    %v3176 = vand.u32 %v445, 4294901760
    %3177 = vmatmul.mubr.f32.gmra.mrb[0].mxu0 %v3176
    %v3178 = vpop.f32.mrb[0].mxu0
    %v3179 = vadd.f32 %v2616, %v3178
    %v3180 = vpop.f32.mrb[0].mxu0
    %3181 = vmatprep.mubr.f32.mxu0 0.0
    %v3182 = vand.u32 %v446, 4294901760
    %3183 = vmatmul.mubr.f32.gmra.mrb[0].mxu0 %v3182
    %v3184 = vpop.f32.mrb[0].mxu0
    %v3185 = vadd.f32 %v2624, %v3184
    %v3186 = vpop.f32.mrb[0].mxu0
    %3187 = vmatprep.mubr.f32.mxu0 0.0
    %v3188 = vand.u32 %v447, 4294901760
    %3189 = vmatmul.mubr.f32.gmra.mrb[0].mxu0 %v3188
    %v3190 = vpop.f32.mrb[0].mxu0
    %v3191 = vadd.f32 %v2632, %v3190
    %v3192 = vpop.f32.mrb[0].mxu0
    %3193 = vmatprep.mubr.f32.mxu0 0.0
    %v3194 = vand.u32 %v448, 4294901760
    %3195 = vmatmul.mubr.f32.gmra.mrb[0].mxu0 %v3194
    %v3196 = vpop.f32.mrb[0].mxu0
    %v3197 = vadd.f32 %v2640, %v3196
    %v3198 = vpop.f32.mrb[0].mxu0
    %3199 = vmatprep.mubr.f32.mxu0 0.0
    %v3200 = vand.u32 %v449, 4294901760
    %3201 = vmatmul.mubr.f32.gmra.mrb[0].mxu0 %v3200
    %v3202 = vpop.f32.mrb[0].mxu0
    %v3203 = vadd.f32 %v2648, %v3202
    %v3204 = vpop.f32.mrb[0].mxu0
    %3205 = vmatprep.mubr.f32.mxu0 0.0
    %v3206 = vand.u32 %v450, 4294901760
    %3207 = vmatmul.mubr.f32.gmra.mrb[0].mxu0 %v3206
    %v3208 = vpop.f32.mrb[0].mxu0
    %v3209 = vadd.f32 %v2656, %v3208
    %v3210 = vpop.f32.mrb[0].mxu0
    %3211 = vmatprep.mubr.f32.mxu0 0.0
    %v3212 = vand.u32 %v451, 4294901760
    %3213 = vmatmul.mubr.f32.gmra.mrb[0].mxu0 %v3212
    %v3214 = vpop.f32.mrb[0].mxu0
    %v3215 = vadd.f32 %v2664, %v3214
    %v3216 = vpop.f32.mrb[0].mxu0
    %3217 = vmatprep.mubr.f32.mxu0 0.0
    %v3218 = vand.u32 %v452, 4294901760
    %3219 = vmatmul.mubr.f32.gmra.mrb[0].mxu0 %v3218
    %v3220 = vpop.f32.mrb[0].mxu0
    %v3221 = vadd.f32 %v2672, %v3220
    %v3222 = vpop.f32.mrb[0].mxu0
    %3223 = vmatprep.mubr.f32.mxu0 0.0
    %v3224 = vand.u32 %v453, 4294901760
    %3225 = vmatmul.mubr.f32.gmra.mrb[0].mxu0 %v3224
    %v3226 = vpop.f32.mrb[0].mxu0
    %v3227 = vadd.f32 %v2680, %v3226
    %v3228 = vpop.f32.mrb[0].mxu0
    %3229 = vmatprep.mubr.f32.mxu0 0.0
    %v3230 = vand.u32 %v454, 4294901760
    %3231 = vmatmul.mubr.f32.gmra.mrb[0].mxu0 %v3230
    %v3232 = vpop.f32.mrb[0].mxu0
    %v3233 = vadd.f32 %v2688, %v3232
    %v3234 = vpop.f32.mrb[0].mxu0
    %3235 = vmatprep.mubr.f32.mxu0 0.0
    %v3236 = vand.u32 %v455, 4294901760
    %3237 = vmatmul.mubr.f32.gmra.mrb[0].mxu0 %v3236
    %v3238 = vpop.f32.mrb[0].mxu0
    %v3239 = vadd.f32 %v2696, %v3238
    %v3240 = vpop.f32.mrb[0].mxu0
    %3241 = vmatprep.mubr.f32.mxu0 0.0
    %v3242 = vand.u32 %v456, 4294901760
    %3243 = vmatmul.mubr.f32.gmra.mrb[0].mxu0 %v3242
    %v3244 = vpop.f32.mrb[0].mxu0
    %v3245 = vadd.f32 %v2704, %v3244
    %v3246 = vpop.f32.mrb[0].mxu0
    %3247 = vmatprep.mubr.f32.mxu0 0.0
    %v3248 = vand.u32 %v457, 4294901760
    %3249 = vmatmul.mubr.f32.gmra.mrb[0].mxu0 %v3248
    %v3250 = vpop.f32.mrb[0].mxu0
    %v3251 = vadd.f32 %v2712, %v3250
    %v3252 = vpop.f32.mrb[0].mxu0
    %3253 = vmatprep.mubr.f32.mxu0 0.0
    %v3254 = vand.u32 %v458, 4294901760
    %3255 = vmatmul.mubr.f32.gmra.mrb[0].mxu0 %v3254
    %v3256 = vpop.f32.mrb[0].mxu0
    %v3257 = vadd.f32 %v2720, %v3256
    %v3258 = vpop.f32.mrb[0].mxu0
    %3259 = vmatprep.mubr.f32.mxu0 0.0
    %v3260 = vand.u32 %v459, 4294901760
    %3261 = vmatmul.mubr.f32.gmra.mrb[0].mxu0 %v3260
    %v3262 = vpop.f32.mrb[0].mxu0
    %v3263 = vadd.f32 %v2728, %v3262
    %v3264 = vpop.f32.mrb[0].mxu0
    %3265 = vmatprep.mubr.f32.mxu0 0.0
    %v3266 = vand.u32 %v460, 4294901760
    %3267 = vmatmul.mubr.f32.gmra.mrb[0].mxu0 %v3266
    %v3268 = vpop.f32.mrb[0].mxu0
    %v3269 = vadd.f32 %v2736, %v3268
    %v3270 = vpop.f32.mrb[0].mxu0
    %3271 = vmatprep.mubr.f32.mxu0 0.0
    %v3272 = vand.u32 %v461, 4294901760
    %3273 = vmatmul.mubr.f32.gmra.mrb[0].mxu0 %v3272
    %v3274 = vpop.f32.mrb[0].mxu0
    %v3275 = vadd.f32 %v2744, %v3274
    %v3276 = vpop.f32.mrb[0].mxu0
    %3277 = vmatprep.mubr.f32.mxu0 0.0
    %v3278 = vand.u32 %v462, 4294901760
    %3279 = vmatmul.mubr.f32.gmra.mrb[0].mxu0 %v3278
    %v3280 = vpop.f32.mrb[0].mxu0
    %v3281 = vadd.f32 %v2752, %v3280
    %v3282 = vpop.f32.mrb[0].mxu0
    %3283 = vmatprep.mubr.f32.mxu0 0.0
    %v3284 = vand.u32 %v463, 4294901760
    %3285 = vmatmul.mubr.f32.gmra.mrb[0].mxu0 %v3284
    %v3286 = vpop.f32.mrb[0].mxu0
    %v3287 = vadd.f32 %v2760, %v3286
    %v3288 = vpop.f32.mrb[0].mxu0
    %3289 = vmatprep.mubr.f32.mxu0 0.0
    %v3290 = vand.u32 %v464, 4294901760
    %3291 = vmatmul.mubr.f32.gmra.mrb[0].mxu0 %v3290
    %v3292 = vpop.f32.mrb[0].mxu0
    %v3293 = vadd.f32 %v2768, %v3292
    %v3294 = vpop.f32.mrb[0].mxu0
    %3295 = vmatprep.mubr.f32.mxu0 0.0
    %v3296 = vand.u32 %v465, 4294901760
    %3297 = vmatmul.mubr.f32.gmra.mrb[0].mxu0 %v3296
    %v3298 = vpop.f32.mrb[0].mxu0
    %v3299 = vadd.f32 %v2776, %v3298
    %v3300 = vpop.f32.mrb[0].mxu0
    %3301 = vmatprep.mubr.f32.mxu0 0.0
    %v3302 = vand.u32 %v466, 4294901760
    %3303 = vmatmul.mubr.f32.gmra.mrb[0].mxu0 %v3302
    %v3304 = vpop.f32.mrb[0].mxu0
    %v3305 = vadd.f32 %v2784, %v3304
    %v3306 = vpop.f32.mrb[0].mxu0
    %3307 = vmatprep.mubr.f32.mxu0 0.0
    %v3308 = vand.u32 %v467, 4294901760
    %3309 = vmatmul.mubr.f32.gmra.mrb[0].mxu0 %v3308
    %v3310 = vpop.f32.mrb[0].mxu0
    %v3311 = vadd.f32 %v2792, %v3310
    %v3312 = vpop.f32.mrb[0].mxu0
    %3313 = vmatprep.mubr.f32.mxu0 0.0
    %v3314 = vand.u32 %v468, 4294901760
    %3315 = vmatmul.mubr.f32.gmra.mrb[0].mxu0 %v3314
    %v3316 = vpop.f32.mrb[0].mxu0
    %v3317 = vadd.f32 %v2800, %v3316
    %v3318 = vpop.f32.mrb[0].mxu0
    %3319 = vmatprep.mubr.f32.mxu0 0.0
    %v3320 = vand.u32 %v469, 4294901760
    %3321 = vmatmul.mubr.f32.gmra.mrb[0].mxu0 %v3320
    %v3322 = vpop.f32.mrb[0].mxu0
    %v3323 = vadd.f32 %v2808, %v3322
    %v3324 = vpop.f32.mrb[0].mxu0
    %3325 = vmatprep.mubr.f32.mxu0 0.0
    %v3326 = vand.u32 %v470, 4294901760
    %3327 = vmatmul.mubr.f32.gmra.mrb[0].mxu0 %v3326
    %v3328 = vpop.f32.mrb[0].mxu0
    %v3329 = vadd.f32 %v2816, %v3328
    %v3330 = vpop.f32.mrb[0].mxu0
    %3331 = vmatprep.mubr.f32.mxu0 0.0
    %v3332 = vand.u32 %v471, 4294901760
    %3333 = vmatmul.mubr.f32.gmra.mrb[0].mxu0 %v3332
    %v3334 = vpop.f32.mrb[0].mxu0
    %v3335 = vadd.f32 %v2824, %v3334
    %v3336 = vpop.f32.mrb[0].mxu0
    %3337 = vmatprep.mubr.f32.mxu0 0.0
    %v3338 = vand.u32 %v472, 4294901760
    %3339 = vmatmul.mubr.f32.gmra.mrb[0].mxu0 %v3338
    %v3340 = vpop.f32.mrb[0].mxu0
    %v3341 = vadd.f32 %v2832, %v3340
    %v3342 = vpop.f32.mrb[0].mxu0
    %3343 = vmatprep.mubr.f32.mxu0 0.0
    %v3344 = vand.u32 %v473, 4294901760
    %3345 = vmatmul.mubr.f32.gmra.mrb[0].mxu0 %v3344
    %v3346 = vpop.f32.mrb[0].mxu0
    %v3347 = vadd.f32 %v2840, %v3346
    %v3348 = vpop.f32.mrb[0].mxu0
    %3349 = vmatprep.mubr.f32.mxu0 0.0
    %v3350 = vand.u32 %v474, 4294901760
    %3351 = vmatmul.mubr.f32.gmra.mrb[0].mxu0 %v3350
    %v3352 = vpop.f32.mrb[0].mxu0
    %v3353 = vadd.f32 %v2848, %v3352
    %v3354 = vpop.f32.mrb[0].mxu0
    %3355 = vmatprep.mubr.f32.mxu0 0.0
    %v3356 = vand.u32 %v475, 4294901760
    %3357 = vmatmul.mubr.f32.gmra.mrb[0].mxu0 %v3356
    %v3358 = vpop.f32.mrb[0].mxu0
    %v3359 = vadd.f32 %v2856, %v3358
    %v3360 = vpop.f32.mrb[0].mxu0
    %3361 = vmatprep.mubr.f32.mxu0 0.0
    %v3362 = vand.u32 %v476, 4294901760
    %3363 = vmatmul.mubr.f32.gmra.mrb[0].mxu0 %v3362
    %v3364 = vpop.f32.mrb[0].mxu0
    %v3365 = vadd.f32 %v2864, %v3364
    %v3366 = vpop.f32.mrb[0].mxu0
    %3367 = vmatprep.mubr.f32.mxu0 0.0
    %v3368 = vand.u32 %v477, 4294901760
    %3369 = vmatmul.mubr.f32.gmra.mrb[0].mxu0 %v3368
    %v3370 = vpop.f32.mrb[0].mxu0
    %v3371 = vadd.f32 %v2872, %v3370
    %v3372 = vpop.f32.mrb[0].mxu0
    %3373 = vmatprep.mubr.f32.mxu0 0.0
    %v3374 = vand.u32 %v478, 4294901760
    %3375 = vmatmul.mubr.f32.gmra.mrb[0].mxu0 %v3374
    %v3376 = vpop.f32.mrb[0].mxu0
    %v3377 = vadd.f32 %v2880, %v3376
    %v3378 = vpop.f32.mrb[0].mxu0
    %3379 = vdwg.mxu0
    %3380 = vmatprep.subr.mxu0 0.0
    %v3381 = vand.u32 %v479, 4294901760
    %3382 = vmatpush1.msra.mxu0 %v3381
    %3383 = vmatprep.subr.mxu0 0.0
    %v3384 = vand.u32 %v480, 4294901760
    %3385 = vmatpush1.msra.mxu0 %v3384
    %3386 = vmatprep.subr.mxu0 0.0
    %v3387 = vand.u32 %v481, 4294901760
    %3388 = vmatpush1.msra.mxu0 %v3387
    %3389 = vmatprep.subr.mxu0 0.0
    %v3390 = vand.u32 %v482, 4294901760
    %3391 = vmatpush1.msra.mxu0 %v3390
    %3392 = vmatprep.subr.mxu0 0.0
    %v3393 = vand.u32 %v483, 4294901760
    %3394 = vmatpush1.msra.mxu0 %v3393
    %3395 = vmatprep.subr.mxu0 0.0
    %v3396 = vand.u32 %v484, 4294901760
    %3397 = vmatpush1.msra.mxu0 %v3396
    %3398 = vmatprep.subr.mxu0 0.0
    %v3399 = vand.u32 %v485, 4294901760
    %3400 = vmatpush1.msra.mxu0 %v3399
    %3401 = vmatprep.subr.mxu0 0.0
    %v3402 = vand.u32 %v486, 4294901760
    %3403 = vmatpush1.msra.mxu0 %v3402
    %3404 = vmatprep.subr.mxu0 0.0
    %v3405 = vand.u32 %v487, 4294901760
    %3406 = vmatpush1.msra.mxu0 %v3405
    %3407 = vmatprep.subr.mxu0 0.0
    %v3408 = vand.u32 %v488, 4294901760
    %3409 = vmatpush1.msra.mxu0 %v3408
    %3410 = vmatprep.subr.mxu0 0.0
    %v3411 = vand.u32 %v489, 4294901760
    %3412 = vmatpush1.msra.mxu0 %v3411
    %3413 = vmatprep.subr.mxu0 0.0
    %v3414 = vand.u32 %v490, 4294901760
    %3415 = vmatpush1.msra.mxu0 %v3414
    %3416 = vmatprep.subr.mxu0 0.0
    %v3417 = vand.u32 %v491, 4294901760
    %3418 = vmatpush1.msra.mxu0 %v3417
    %3419 = vmatprep.subr.mxu0 0.0
    %v3420 = vand.u32 %v492, 4294901760
    %3421 = vmatpush1.msra.mxu0 %v3420
    %3422 = vmatprep.subr.mxu0 0.0
    %v3423 = vand.u32 %v493, 4294901760
    %3424 = vmatpush1.msra.mxu0 %v3423
    %3425 = vmatprep.subr.mxu0 0.0
    %v3426 = vand.u32 %v494, 4294901760
    %3427 = vmatpush1.msra.mxu0 %v3426
    %3428 = vmatprep.subr.mxu0 0.0
    %3429 = vmatpush1.msra.mxu0 0.0
    %3430 = vmatprep.subr.mxu0 0.0
    %3431 = vmatpush1.msra.mxu0 0.0
    %3432 = vmatprep.subr.mxu0 0.0
    %3433 = vmatpush1.msra.mxu0 0.0
    %3434 = vmatprep.subr.mxu0 0.0
    %3435 = vmatpush1.msra.mxu0 0.0
    %3436 = vmatprep.subr.mxu0 0.0
    %3437 = vmatpush1.msra.mxu0 0.0
    %3438 = vmatprep.subr.mxu0 0.0
    %3439 = vmatpush1.msra.mxu0 0.0
    %3440 = vmatprep.subr.mxu0 0.0
    %3441 = vmatpush1.msra.mxu0 0.0
    %3442 = vmatprep.subr.mxu0 0.0
    %3443 = vmatpush1.msra.mxu0 0.0
    %3444 = vmatprep.subr.mxu0 0.0
    %3445 = vmatpush1.msra.mxu0 0.0
    %3446 = vmatprep.subr.mxu0 0.0
    %3447 = vmatpush1.msra.mxu0 0.0
    %3448 = vmatprep.subr.mxu0 0.0
    %3449 = vmatpush1.msra.mxu0 0.0
    %3450 = vmatprep.subr.mxu0 0.0
    %3451 = vmatpush1.msra.mxu0 0.0
    %3452 = vmatprep.subr.mxu0 0.0
    %3453 = vmatpush1.msra.mxu0 0.0
    %3454 = vmatprep.subr.mxu0 0.0
    %3455 = vmatpush1.msra.mxu0 0.0
    %3456 = vmatprep.subr.mxu0 0.0
    %3457 = vmatpush1.msra.mxu0 0.0
    %3458 = vmatprep.subr.mxu0 0.0
    %3459 = vmatpush1.msra.mxu0 0.0
    %3460 = vmatprep.mubr.f32.mxu0 0.0
    %v3461 = vand.u32 %v415, 4294901760
    %3462 = vmatmul.mubr.f32.gmra.mrb[0].mxu0 %v3461
    %v3463 = vpop.f32.mrb[0].mxu0
    %v3464 = vadd.f32 %v2999, %v3463
    %v3465 = vpop.f32.mrb[0].mxu0
    %3466 = vmatprep.mubr.f32.mxu0 0.0
    %v3467 = vand.u32 %v416, 4294901760
    %3468 = vmatmul.mubr.f32.gmra.mrb[0].mxu0 %v3467
    %v3469 = vpop.f32.mrb[0].mxu0
    %v3470 = vadd.f32 %v3005, %v3469
    %v3471 = vpop.f32.mrb[0].mxu0
    %3472 = vmatprep.mubr.f32.mxu0 0.0
    %v3473 = vand.u32 %v417, 4294901760
    %3474 = vmatmul.mubr.f32.gmra.mrb[0].mxu0 %v3473
    %v3475 = vpop.f32.mrb[0].mxu0
    %v3476 = vadd.f32 %v3011, %v3475
    %v3477 = vpop.f32.mrb[0].mxu0
    %3478 = vmatprep.mubr.f32.mxu0 0.0
    %v3479 = vand.u32 %v418, 4294901760
    %3480 = vmatmul.mubr.f32.gmra.mrb[0].mxu0 %v3479
    %v3481 = vpop.f32.mrb[0].mxu0
    %v3482 = vadd.f32 %v3017, %v3481
    %v3483 = vpop.f32.mrb[0].mxu0
    %3484 = vmatprep.mubr.f32.mxu0 0.0
    %v3485 = vand.u32 %v419, 4294901760
    %3486 = vmatmul.mubr.f32.gmra.mrb[0].mxu0 %v3485
    %v3487 = vpop.f32.mrb[0].mxu0
    %v3488 = vadd.f32 %v3023, %v3487
    %v3489 = vpop.f32.mrb[0].mxu0
    %3490 = vmatprep.mubr.f32.mxu0 0.0
    %v3491 = vand.u32 %v420, 4294901760
    %3492 = vmatmul.mubr.f32.gmra.mrb[0].mxu0 %v3491
    %v3493 = vpop.f32.mrb[0].mxu0
    %v3494 = vadd.f32 %v3029, %v3493
    %v3495 = vpop.f32.mrb[0].mxu0
    %3496 = vmatprep.mubr.f32.mxu0 0.0
    %v3497 = vand.u32 %v421, 4294901760
    %3498 = vmatmul.mubr.f32.gmra.mrb[0].mxu0 %v3497
    %v3499 = vpop.f32.mrb[0].mxu0
    %v3500 = vadd.f32 %v3035, %v3499
    %v3501 = vpop.f32.mrb[0].mxu0
    %3502 = vmatprep.mubr.f32.mxu0 0.0
    %v3503 = vand.u32 %v422, 4294901760
    %3504 = vmatmul.mubr.f32.gmra.mrb[0].mxu0 %v3503
    %v3505 = vpop.f32.mrb[0].mxu0
    %v3506 = vadd.f32 %v3041, %v3505
    %v3507 = vpop.f32.mrb[0].mxu0
    %3508 = vmatprep.mubr.f32.mxu0 0.0
    %v3509 = vand.u32 %v423, 4294901760
    %3510 = vmatmul.mubr.f32.gmra.mrb[0].mxu0 %v3509
    %v3511 = vpop.f32.mrb[0].mxu0
    %v3512 = vadd.f32 %v3047, %v3511
    %v3513 = vpop.f32.mrb[0].mxu0
    %3514 = vmatprep.mubr.f32.mxu0 0.0
    %v3515 = vand.u32 %v424, 4294901760
    %3516 = vmatmul.mubr.f32.gmra.mrb[0].mxu0 %v3515
    %v3517 = vpop.f32.mrb[0].mxu0
    %v3518 = vadd.f32 %v3053, %v3517
    %v3519 = vpop.f32.mrb[0].mxu0
    %3520 = vmatprep.mubr.f32.mxu0 0.0
    %v3521 = vand.u32 %v425, 4294901760
    %3522 = vmatmul.mubr.f32.gmra.mrb[0].mxu0 %v3521
    %v3523 = vpop.f32.mrb[0].mxu0
    %v3524 = vadd.f32 %v3059, %v3523
    %v3525 = vpop.f32.mrb[0].mxu0
    %3526 = vmatprep.mubr.f32.mxu0 0.0
    %v3527 = vand.u32 %v426, 4294901760
    %3528 = vmatmul.mubr.f32.gmra.mrb[0].mxu0 %v3527
    %v3529 = vpop.f32.mrb[0].mxu0
    %v3530 = vadd.f32 %v3065, %v3529
    %v3531 = vpop.f32.mrb[0].mxu0
    %3532 = vmatprep.mubr.f32.mxu0 0.0
    %v3533 = vand.u32 %v427, 4294901760
    %3534 = vmatmul.mubr.f32.gmra.mrb[0].mxu0 %v3533
    %v3535 = vpop.f32.mrb[0].mxu0
    %v3536 = vadd.f32 %v3071, %v3535
    %v3537 = vpop.f32.mrb[0].mxu0
    %3538 = vmatprep.mubr.f32.mxu0 0.0
    %v3539 = vand.u32 %v428, 4294901760
    %3540 = vmatmul.mubr.f32.gmra.mrb[0].mxu0 %v3539
    %v3541 = vpop.f32.mrb[0].mxu0
    %v3542 = vadd.f32 %v3077, %v3541
    %v3543 = vpop.f32.mrb[0].mxu0
    %3544 = vmatprep.mubr.f32.mxu0 0.0
    %v3545 = vand.u32 %v429, 4294901760
    %3546 = vmatmul.mubr.f32.gmra.mrb[0].mxu0 %v3545
    %v3547 = vpop.f32.mrb[0].mxu0
    %v3548 = vadd.f32 %v3083, %v3547
    %v3549 = vpop.f32.mrb[0].mxu0
    %3550 = vmatprep.mubr.f32.mxu0 0.0
    %v3551 = vand.u32 %v430, 4294901760
    %3552 = vmatmul.mubr.f32.gmra.mrb[0].mxu0 %v3551
    %v3553 = vpop.f32.mrb[0].mxu0
    %v3554 = vadd.f32 %v3089, %v3553
    %v3555 = vpop.f32.mrb[0].mxu0
    %3556 = vmatprep.mubr.f32.mxu0 0.0
    %v3557 = vand.u32 %v431, 4294901760
    %3558 = vmatmul.mubr.f32.gmra.mrb[0].mxu0 %v3557
    %v3559 = vpop.f32.mrb[0].mxu0
    %v3560 = vadd.f32 %v3095, %v3559
    %v3561 = vpop.f32.mrb[0].mxu0
    %3562 = vmatprep.mubr.f32.mxu0 0.0
    %v3563 = vand.u32 %v432, 4294901760
    %3564 = vmatmul.mubr.f32.gmra.mrb[0].mxu0 %v3563
    %v3565 = vpop.f32.mrb[0].mxu0
    %v3566 = vadd.f32 %v3101, %v3565
    %v3567 = vpop.f32.mrb[0].mxu0
    %3568 = vmatprep.mubr.f32.mxu0 0.0
    %v3569 = vand.u32 %v433, 4294901760
    %3570 = vmatmul.mubr.f32.gmra.mrb[0].mxu0 %v3569
    %v3571 = vpop.f32.mrb[0].mxu0
    %v3572 = vadd.f32 %v3107, %v3571
    %v3573 = vpop.f32.mrb[0].mxu0
    %3574 = vmatprep.mubr.f32.mxu0 0.0
    %v3575 = vand.u32 %v434, 4294901760
    %3576 = vmatmul.mubr.f32.gmra.mrb[0].mxu0 %v3575
    %v3577 = vpop.f32.mrb[0].mxu0
    %v3578 = vadd.f32 %v3113, %v3577
    %v3579 = vpop.f32.mrb[0].mxu0
    %3580 = vmatprep.mubr.f32.mxu0 0.0
    %v3581 = vand.u32 %v435, 4294901760
    %3582 = vmatmul.mubr.f32.gmra.mrb[0].mxu0 %v3581
    %v3583 = vpop.f32.mrb[0].mxu0
    %v3584 = vadd.f32 %v3119, %v3583
    %v3585 = vpop.f32.mrb[0].mxu0
    %3586 = vmatprep.mubr.f32.mxu0 0.0
    %v3587 = vand.u32 %v436, 4294901760
    %3588 = vmatmul.mubr.f32.gmra.mrb[0].mxu0 %v3587
    %v3589 = vpop.f32.mrb[0].mxu0
    %v3590 = vadd.f32 %v3125, %v3589
    %v3591 = vpop.f32.mrb[0].mxu0
    %3592 = vmatprep.mubr.f32.mxu0 0.0
    %v3593 = vand.u32 %v437, 4294901760
    %3594 = vmatmul.mubr.f32.gmra.mrb[0].mxu0 %v3593
    %v3595 = vpop.f32.mrb[0].mxu0
    %v3596 = vadd.f32 %v3131, %v3595
    %v3597 = vpop.f32.mrb[0].mxu0
    %3598 = vmatprep.mubr.f32.mxu0 0.0
    %v3599 = vand.u32 %v438, 4294901760
    %3600 = vmatmul.mubr.f32.gmra.mrb[0].mxu0 %v3599
    %v3601 = vpop.f32.mrb[0].mxu0
    %v3602 = vadd.f32 %v3137, %v3601
    %v3603 = vpop.f32.mrb[0].mxu0
    %3604 = vmatprep.mubr.f32.mxu0 0.0
    %v3605 = vand.u32 %v439, 4294901760
    %3606 = vmatmul.mubr.f32.gmra.mrb[0].mxu0 %v3605
    %v3607 = vpop.f32.mrb[0].mxu0
    %v3608 = vadd.f32 %v3143, %v3607
    %v3609 = vpop.f32.mrb[0].mxu0
    %3610 = vmatprep.mubr.f32.mxu0 0.0
    %v3611 = vand.u32 %v440, 4294901760
    %3612 = vmatmul.mubr.f32.gmra.mrb[0].mxu0 %v3611
    %v3613 = vpop.f32.mrb[0].mxu0
    %v3614 = vadd.f32 %v3149, %v3613
    %v3615 = vpop.f32.mrb[0].mxu0
    %3616 = vmatprep.mubr.f32.mxu0 0.0
    %v3617 = vand.u32 %v441, 4294901760
    %3618 = vmatmul.mubr.f32.gmra.mrb[0].mxu0 %v3617
    %v3619 = vpop.f32.mrb[0].mxu0
    %v3620 = vadd.f32 %v3155, %v3619
    %v3621 = vpop.f32.mrb[0].mxu0
    %3622 = vmatprep.mubr.f32.mxu0 0.0
    %v3623 = vand.u32 %v442, 4294901760
    %3624 = vmatmul.mubr.f32.gmra.mrb[0].mxu0 %v3623
    %v3625 = vpop.f32.mrb[0].mxu0
    %v3626 = vadd.f32 %v3161, %v3625
    %v3627 = vpop.f32.mrb[0].mxu0
    %3628 = vmatprep.mubr.f32.mxu0 0.0
    %v3629 = vand.u32 %v443, 4294901760
    %3630 = vmatmul.mubr.f32.gmra.mrb[0].mxu0 %v3629
    %v3631 = vpop.f32.mrb[0].mxu0
    %v3632 = vadd.f32 %v3167, %v3631
    %v3633 = vpop.f32.mrb[0].mxu0
    %3634 = vmatprep.mubr.f32.mxu0 0.0
    %v3635 = vand.u32 %v444, 4294901760
    %3636 = vmatmul.mubr.f32.gmra.mrb[0].mxu0 %v3635
    %v3637 = vpop.f32.mrb[0].mxu0
    %v3638 = vadd.f32 %v3173, %v3637
    %v3639 = vpop.f32.mrb[0].mxu0
    %3640 = vmatprep.mubr.f32.mxu0 0.0
    %v3641 = vand.u32 %v445, 4294901760
    %3642 = vmatmul.mubr.f32.gmra.mrb[0].mxu0 %v3641
    %v3643 = vpop.f32.mrb[0].mxu0
    %v3644 = vadd.f32 %v3179, %v3643
    %v3645 = vpop.f32.mrb[0].mxu0
    %3646 = vmatprep.mubr.f32.mxu0 0.0
    %v3647 = vand.u32 %v446, 4294901760
    %3648 = vmatmul.mubr.f32.gmra.mrb[0].mxu0 %v3647
    %v3649 = vpop.f32.mrb[0].mxu0
    %v3650 = vadd.f32 %v3185, %v3649
    %v3651 = vpop.f32.mrb[0].mxu0
    %3652 = vmatprep.mubr.f32.mxu0 0.0
    %v3653 = vand.u32 %v447, 4294901760
    %3654 = vmatmul.mubr.f32.gmra.mrb[0].mxu0 %v3653
    %v3655 = vpop.f32.mrb[0].mxu0
    %v3656 = vadd.f32 %v3191, %v3655
    %v3657 = vpop.f32.mrb[0].mxu0
    %3658 = vmatprep.mubr.f32.mxu0 0.0
    %v3659 = vand.u32 %v448, 4294901760
    %3660 = vmatmul.mubr.f32.gmra.mrb[0].mxu0 %v3659
    %v3661 = vpop.f32.mrb[0].mxu0
    %v3662 = vadd.f32 %v3197, %v3661
    %v3663 = vpop.f32.mrb[0].mxu0
    %3664 = vmatprep.mubr.f32.mxu0 0.0
    %v3665 = vand.u32 %v449, 4294901760
    %3666 = vmatmul.mubr.f32.gmra.mrb[0].mxu0 %v3665
    %v3667 = vpop.f32.mrb[0].mxu0
    %v3668 = vadd.f32 %v3203, %v3667
    %v3669 = vpop.f32.mrb[0].mxu0
    %3670 = vmatprep.mubr.f32.mxu0 0.0
    %v3671 = vand.u32 %v450, 4294901760
    %3672 = vmatmul.mubr.f32.gmra.mrb[0].mxu0 %v3671
    %v3673 = vpop.f32.mrb[0].mxu0
    %v3674 = vadd.f32 %v3209, %v3673
    %v3675 = vpop.f32.mrb[0].mxu0
    %3676 = vmatprep.mubr.f32.mxu0 0.0
    %v3677 = vand.u32 %v451, 4294901760
    %3678 = vmatmul.mubr.f32.gmra.mrb[0].mxu0 %v3677
    %v3679 = vpop.f32.mrb[0].mxu0
    %v3680 = vadd.f32 %v3215, %v3679
    %v3681 = vpop.f32.mrb[0].mxu0
    %3682 = vmatprep.mubr.f32.mxu0 0.0
    %v3683 = vand.u32 %v452, 4294901760
    %3684 = vmatmul.mubr.f32.gmra.mrb[0].mxu0 %v3683
    %v3685 = vpop.f32.mrb[0].mxu0
    %v3686 = vadd.f32 %v3221, %v3685
    %v3687 = vpop.f32.mrb[0].mxu0
    %3688 = vmatprep.mubr.f32.mxu0 0.0
    %v3689 = vand.u32 %v453, 4294901760
    %3690 = vmatmul.mubr.f32.gmra.mrb[0].mxu0 %v3689
    %v3691 = vpop.f32.mrb[0].mxu0
    %v3692 = vadd.f32 %v3227, %v3691
    %v3693 = vpop.f32.mrb[0].mxu0
    %3694 = vmatprep.mubr.f32.mxu0 0.0
    %v3695 = vand.u32 %v454, 4294901760
    %3696 = vmatmul.mubr.f32.gmra.mrb[0].mxu0 %v3695
    %v3697 = vpop.f32.mrb[0].mxu0
    %v3698 = vadd.f32 %v3233, %v3697
    %v3699 = vpop.f32.mrb[0].mxu0
    %3700 = vmatprep.mubr.f32.mxu0 0.0
    %v3701 = vand.u32 %v455, 4294901760
    %3702 = vmatmul.mubr.f32.gmra.mrb[0].mxu0 %v3701
    %v3703 = vpop.f32.mrb[0].mxu0
    %v3704 = vadd.f32 %v3239, %v3703
    %v3705 = vpop.f32.mrb[0].mxu0
    %3706 = vmatprep.mubr.f32.mxu0 0.0
    %v3707 = vand.u32 %v456, 4294901760
    %3708 = vmatmul.mubr.f32.gmra.mrb[0].mxu0 %v3707
    %v3709 = vpop.f32.mrb[0].mxu0
    %v3710 = vadd.f32 %v3245, %v3709
    %v3711 = vpop.f32.mrb[0].mxu0
    %3712 = vmatprep.mubr.f32.mxu0 0.0
    %v3713 = vand.u32 %v457, 4294901760
    %3714 = vmatmul.mubr.f32.gmra.mrb[0].mxu0 %v3713
    %v3715 = vpop.f32.mrb[0].mxu0
    %v3716 = vadd.f32 %v3251, %v3715
    %v3717 = vpop.f32.mrb[0].mxu0
    %3718 = vmatprep.mubr.f32.mxu0 0.0
    %v3719 = vand.u32 %v458, 4294901760
    %3720 = vmatmul.mubr.f32.gmra.mrb[0].mxu0 %v3719
    %v3721 = vpop.f32.mrb[0].mxu0
    %v3722 = vadd.f32 %v3257, %v3721
    %v3723 = vpop.f32.mrb[0].mxu0
    %3724 = vmatprep.mubr.f32.mxu0 0.0
    %v3725 = vand.u32 %v459, 4294901760
    %3726 = vmatmul.mubr.f32.gmra.mrb[0].mxu0 %v3725
    %v3727 = vpop.f32.mrb[0].mxu0
    %v3728 = vadd.f32 %v3263, %v3727
    %v3729 = vpop.f32.mrb[0].mxu0
    %3730 = vmatprep.mubr.f32.mxu0 0.0
    %v3731 = vand.u32 %v460, 4294901760
    %3732 = vmatmul.mubr.f32.gmra.mrb[0].mxu0 %v3731
    %v3733 = vpop.f32.mrb[0].mxu0
    %v3734 = vadd.f32 %v3269, %v3733
    %v3735 = vpop.f32.mrb[0].mxu0
    %3736 = vmatprep.mubr.f32.mxu0 0.0
    %v3737 = vand.u32 %v461, 4294901760
    %3738 = vmatmul.mubr.f32.gmra.mrb[0].mxu0 %v3737
    %v3739 = vpop.f32.mrb[0].mxu0
    %v3740 = vadd.f32 %v3275, %v3739
    %v3741 = vpop.f32.mrb[0].mxu0
    %3742 = vmatprep.mubr.f32.mxu0 0.0
    %v3743 = vand.u32 %v462, 4294901760
    %3744 = vmatmul.mubr.f32.gmra.mrb[0].mxu0 %v3743
    %v3745 = vpop.f32.mrb[0].mxu0
    %v3746 = vadd.f32 %v3281, %v3745
    %v3747 = vpop.f32.mrb[0].mxu0
    %3748 = vmatprep.mubr.f32.mxu0 0.0
    %v3749 = vand.u32 %v463, 4294901760
    %3750 = vmatmul.mubr.f32.gmra.mrb[0].mxu0 %v3749
    %v3751 = vpop.f32.mrb[0].mxu0
    %v3752 = vadd.f32 %v3287, %v3751
    %v3753 = vpop.f32.mrb[0].mxu0
    %3754 = vmatprep.mubr.f32.mxu0 0.0
    %v3755 = vand.u32 %v464, 4294901760
    %3756 = vmatmul.mubr.f32.gmra.mrb[0].mxu0 %v3755
    %v3757 = vpop.f32.mrb[0].mxu0
    %v3758 = vadd.f32 %v3293, %v3757
    %v3759 = vpop.f32.mrb[0].mxu0
    %3760 = vmatprep.mubr.f32.mxu0 0.0
    %v3761 = vand.u32 %v465, 4294901760
    %3762 = vmatmul.mubr.f32.gmra.mrb[0].mxu0 %v3761
    %v3763 = vpop.f32.mrb[0].mxu0
    %v3764 = vadd.f32 %v3299, %v3763
    %v3765 = vpop.f32.mrb[0].mxu0
    %3766 = vmatprep.mubr.f32.mxu0 0.0
    %v3767 = vand.u32 %v466, 4294901760
    %3768 = vmatmul.mubr.f32.gmra.mrb[0].mxu0 %v3767
    %v3769 = vpop.f32.mrb[0].mxu0
    %v3770 = vadd.f32 %v3305, %v3769
    %v3771 = vpop.f32.mrb[0].mxu0
    %3772 = vmatprep.mubr.f32.mxu0 0.0
    %v3773 = vand.u32 %v467, 4294901760
    %3774 = vmatmul.mubr.f32.gmra.mrb[0].mxu0 %v3773
    %v3775 = vpop.f32.mrb[0].mxu0
    %v3776 = vadd.f32 %v3311, %v3775
    %v3777 = vpop.f32.mrb[0].mxu0
    %3778 = vmatprep.mubr.f32.mxu0 0.0
    %v3779 = vand.u32 %v468, 4294901760
    %3780 = vmatmul.mubr.f32.gmra.mrb[0].mxu0 %v3779
    %v3781 = vpop.f32.mrb[0].mxu0
    %v3782 = vadd.f32 %v3317, %v3781
    %v3783 = vpop.f32.mrb[0].mxu0
    %3784 = vmatprep.mubr.f32.mxu0 0.0
    %v3785 = vand.u32 %v469, 4294901760
    %3786 = vmatmul.mubr.f32.gmra.mrb[0].mxu0 %v3785
    %v3787 = vpop.f32.mrb[0].mxu0
    %v3788 = vadd.f32 %v3323, %v3787
    %v3789 = vpop.f32.mrb[0].mxu0
    %3790 = vmatprep.mubr.f32.mxu0 0.0
    %v3791 = vand.u32 %v470, 4294901760
    %3792 = vmatmul.mubr.f32.gmra.mrb[0].mxu0 %v3791
    %v3793 = vpop.f32.mrb[0].mxu0
    %v3794 = vadd.f32 %v3329, %v3793
    %v3795 = vpop.f32.mrb[0].mxu0
    %3796 = vmatprep.mubr.f32.mxu0 0.0
    %v3797 = vand.u32 %v471, 4294901760
    %3798 = vmatmul.mubr.f32.gmra.mrb[0].mxu0 %v3797
    %v3799 = vpop.f32.mrb[0].mxu0
    %v3800 = vadd.f32 %v3335, %v3799
    %v3801 = vpop.f32.mrb[0].mxu0
    %3802 = vmatprep.mubr.f32.mxu0 0.0
    %v3803 = vand.u32 %v472, 4294901760
    %3804 = vmatmul.mubr.f32.gmra.mrb[0].mxu0 %v3803
    %v3805 = vpop.f32.mrb[0].mxu0
    %v3806 = vadd.f32 %v3341, %v3805
    %v3807 = vpop.f32.mrb[0].mxu0
    %3808 = vmatprep.mubr.f32.mxu0 0.0
    %v3809 = vand.u32 %v473, 4294901760
    %3810 = vmatmul.mubr.f32.gmra.mrb[0].mxu0 %v3809
    %v3811 = vpop.f32.mrb[0].mxu0
    %v3812 = vadd.f32 %v3347, %v3811
    %v3813 = vpop.f32.mrb[0].mxu0
    %3814 = vmatprep.mubr.f32.mxu0 0.0
    %v3815 = vand.u32 %v474, 4294901760
    %3816 = vmatmul.mubr.f32.gmra.mrb[0].mxu0 %v3815
    %v3817 = vpop.f32.mrb[0].mxu0
    %v3818 = vadd.f32 %v3353, %v3817
    %v3819 = vpop.f32.mrb[0].mxu0
    %3820 = vmatprep.mubr.f32.mxu0 0.0
    %v3821 = vand.u32 %v475, 4294901760
    %3822 = vmatmul.mubr.f32.gmra.mrb[0].mxu0 %v3821
    %v3823 = vpop.f32.mrb[0].mxu0
    %v3824 = vadd.f32 %v3359, %v3823
    %v3825 = vpop.f32.mrb[0].mxu0
    %3826 = vmatprep.mubr.f32.mxu0 0.0
    %v3827 = vand.u32 %v476, 4294901760
    %3828 = vmatmul.mubr.f32.gmra.mrb[0].mxu0 %v3827
    %v3829 = vpop.f32.mrb[0].mxu0
    %v3830 = vadd.f32 %v3365, %v3829
    %v3831 = vpop.f32.mrb[0].mxu0
    %3832 = vmatprep.mubr.f32.mxu0 0.0
    %v3833 = vand.u32 %v477, 4294901760
    %3834 = vmatmul.mubr.f32.gmra.mrb[0].mxu0 %v3833
    %v3835 = vpop.f32.mrb[0].mxu0
    %v3836 = vadd.f32 %v3371, %v3835
    %v3837 = vpop.f32.mrb[0].mxu0
    %3838 = vmatprep.mubr.f32.mxu0 0.0
    %v3839 = vand.u32 %v478, 4294901760
    %3840 = vmatmul.mubr.f32.gmra.mrb[0].mxu0 %v3839
    %v3841 = vpop.f32.mrb[0].mxu0
    %v3842 = vadd.f32 %v3377, %v3841
    %v3843 = vpop.f32.mrb[0].mxu0
    %3844 = vdwg.mxu0
    %v3845 = vld [vmem:[%s2] sm:$0xff]
    %v3846 = vld [vmem:[%s2 + $0x8] sm:$0xff]
    %v3847 = vld [vmem:[%s2 + $0x10] sm:$0xff]
    %v3848 = vld [vmem:[%s2 + $0x18] sm:$0xff]
    %v3849 = vld [vmem:[%s2 + $0x20] sm:$0xff]
    %v3850 = vld [vmem:[%s2 + $0x28] sm:$0xff]
    %v3851 = vld [vmem:[%s2 + $0x30] sm:$0xff]
    %v3852 = vld [vmem:[%s2 + $0x38] sm:$0xff]
    %v3853 = vld [vmem:[%s2 + $0x40] sm:$0xff]
    %v3854 = vld [vmem:[%s2 + $0x48] sm:$0xff]
    %v3855 = vld [vmem:[%s2 + $0x50] sm:$0xff]
    %v3856 = vld [vmem:[%s2 + $0x58] sm:$0xff]
    %v3857 = vld [vmem:[%s2 + $0x60] sm:$0xff]
    %v3858 = vld [vmem:[%s2 + $0x68] sm:$0xff]
    %v3859 = vld [vmem:[%s2 + $0x70] sm:$0xff]
    %v3860 = vld [vmem:[%s2 + $0x78] sm:$0xff]
    %v3861 = vld [vmem:[%s2 + $0x80] sm:$0xff]
    %v3862 = vld [vmem:[%s2 + $0x88] sm:$0xff]
    %v3863 = vld [vmem:[%s2 + $0x90] sm:$0xff]
    %v3864 = vld [vmem:[%s2 + $0x98] sm:$0xff]
    %v3865 = vld [vmem:[%s2 + $0xa0] sm:$0xff]
    %v3866 = vld [vmem:[%s2 + $0xa8] sm:$0xff]
    %v3867 = vld [vmem:[%s2 + $0xb0] sm:$0xff]
    %v3868 = vld [vmem:[%s2 + $0xb8] sm:$0xff]
    %v3869 = vld [vmem:[%s2 + $0xc0] sm:$0xff]
    %v3870 = vld [vmem:[%s2 + $0xc8] sm:$0xff]
    %v3871 = vld [vmem:[%s2 + $0xd0] sm:$0xff]
    %v3872 = vld [vmem:[%s2 + $0xd8] sm:$0xff]
    %v3873 = vld [vmem:[%s2 + $0xe0] sm:$0xff]
    %v3874 = vld [vmem:[%s2 + $0xe8] sm:$0xff]
    %v3875 = vld [vmem:[%s2 + $0xf0] sm:$0xff]
    %v3876 = vld [vmem:[%s2 + $0xf8] sm:$0xff]
    %v3877 = vld [vmem:[%s2 + $0x100] sm:$0xff]
    %v3878 = vld [vmem:[%s2 + $0x108] sm:$0xff]
    %v3879 = vld [vmem:[%s2 + $0x110] sm:$0xff]
    %v3880 = vld [vmem:[%s2 + $0x118] sm:$0xff]
    %v3881 = vld [vmem:[%s2 + $0x120] sm:$0xff]
    %v3882 = vld [vmem:[%s2 + $0x128] sm:$0xff]
    %v3883 = vld [vmem:[%s2 + $0x130] sm:$0xff]
    %v3884 = vld [vmem:[%s2 + $0x138] sm:$0xff]
    %v3885 = vld [vmem:[%s2 + $0x140] sm:$0xff]
    %v3886 = vld [vmem:[%s2 + $0x148] sm:$0xff]
    %v3887 = vld [vmem:[%s2 + $0x150] sm:$0xff]
    %v3888 = vld [vmem:[%s2 + $0x158] sm:$0xff]
    %v3889 = vld [vmem:[%s2 + $0x160] sm:$0xff]
    %v3890 = vld [vmem:[%s2 + $0x168] sm:$0xff]
    %v3891 = vld [vmem:[%s2 + $0x170] sm:$0xff]
    %v3892 = vld [vmem:[%s2 + $0x178] sm:$0xff]
    %v3893 = vld [vmem:[%s2 + $0x180] sm:$0xff]
    %v3894 = vld [vmem:[%s2 + $0x188] sm:$0xff]
    %v3895 = vld [vmem:[%s2 + $0x190] sm:$0xff]
    %v3896 = vld [vmem:[%s2 + $0x198] sm:$0xff]
    %v3897 = vld [vmem:[%s2 + $0x1a0] sm:$0xff]
    %v3898 = vld [vmem:[%s2 + $0x1a8] sm:$0xff]
    %v3899 = vld [vmem:[%s2 + $0x1b0] sm:$0xff]
    %v3900 = vld [vmem:[%s2 + $0x1b8] sm:$0xff]
    %v3901 = vld [vmem:[%s2 + $0x1c0] sm:$0xff]
    %v3902 = vld [vmem:[%s2 + $0x1c8] sm:$0xff]
    %v3903 = vld [vmem:[%s2 + $0x1d0] sm:$0xff]
    %v3904 = vld [vmem:[%s2 + $0x1d8] sm:$0xff]
    %v3905 = vld [vmem:[%s2 + $0x1e0] sm:$0xff]
    %v3906 = vld [vmem:[%s2 + $0x1e8] sm:$0xff]
    %v3907 = vld [vmem:[%s2 + $0x1f0] sm:$0xff]
    %v3908 = vld [vmem:[%s2 + $0x1f8] sm:$0xff]
    %vm3909 = vcmp.ge.f32.partialorder %v3845, 0.25
    %vm3910 = vcmp.ge.f32.partialorder %v3846, 0.25
    %vm3911 = vcmp.ge.f32.partialorder %v3847, 0.25
    %vm3912 = vcmp.ge.f32.partialorder %v3848, 0.25
    %vm3913 = vcmp.ge.f32.partialorder %v3849, 0.25
    %vm3914 = vcmp.ge.f32.partialorder %v3850, 0.25
    %vm3915 = vcmp.ge.f32.partialorder %v3851, 0.25
    %vm3916 = vcmp.ge.f32.partialorder %v3852, 0.25
    %vm3917 = vcmp.ge.f32.partialorder %v3853, 0.25
    %vm3918 = vcmp.ge.f32.partialorder %v3854, 0.25
    %vm3919 = vcmp.ge.f32.partialorder %v3855, 0.25
    %vm3920 = vcmp.ge.f32.partialorder %v3856, 0.25
    %vm3921 = vcmp.ge.f32.partialorder %v3857, 0.25
    %vm3922 = vcmp.ge.f32.partialorder %v3858, 0.25
    %vm3923 = vcmp.ge.f32.partialorder %v3859, 0.25
    %vm3924 = vcmp.ge.f32.partialorder %v3860, 0.25
    %vm3925 = vcmp.ge.f32.partialorder %v3861, 0.25
    %vm3926 = vcmp.ge.f32.partialorder %v3862, 0.25
    %vm3927 = vcmp.ge.f32.partialorder %v3863, 0.25
    %vm3928 = vcmp.ge.f32.partialorder %v3864, 0.25
    %vm3929 = vcmp.ge.f32.partialorder %v3865, 0.25
    %vm3930 = vcmp.ge.f32.partialorder %v3866, 0.25
    %vm3931 = vcmp.ge.f32.partialorder %v3867, 0.25
    %vm3932 = vcmp.ge.f32.partialorder %v3868, 0.25
    %vm3933 = vcmp.ge.f32.partialorder %v3869, 0.25
    %vm3934 = vcmp.ge.f32.partialorder %v3870, 0.25
    %vm3935 = vcmp.ge.f32.partialorder %v3871, 0.25
    %vm3936 = vcmp.ge.f32.partialorder %v3872, 0.25
    %vm3937 = vcmp.ge.f32.partialorder %v3873, 0.25
    %vm3938 = vcmp.ge.f32.partialorder %v3874, 0.25
    %vm3939 = vcmp.ge.f32.partialorder %v3875, 0.25
    %vm3940 = vcmp.ge.f32.partialorder %v3876, 0.25
    %vm3941 = vcmp.ge.f32.partialorder %v3877, 0.25
    %vm3942 = vcmp.ge.f32.partialorder %v3878, 0.25
    %vm3943 = vcmp.ge.f32.partialorder %v3879, 0.25
    %vm3944 = vcmp.ge.f32.partialorder %v3880, 0.25
    %vm3945 = vcmp.ge.f32.partialorder %v3881, 0.25
    %vm3946 = vcmp.ge.f32.partialorder %v3882, 0.25
    %vm3947 = vcmp.ge.f32.partialorder %v3883, 0.25
    %vm3948 = vcmp.ge.f32.partialorder %v3884, 0.25
    %vm3949 = vcmp.ge.f32.partialorder %v3885, 0.25
    %vm3950 = vcmp.ge.f32.partialorder %v3886, 0.25
    %vm3951 = vcmp.ge.f32.partialorder %v3887, 0.25
    %vm3952 = vcmp.ge.f32.partialorder %v3888, 0.25
    %vm3953 = vcmp.ge.f32.partialorder %v3889, 0.25
    %vm3954 = vcmp.ge.f32.partialorder %v3890, 0.25
    %vm3955 = vcmp.ge.f32.partialorder %v3891, 0.25
    %vm3956 = vcmp.ge.f32.partialorder %v3892, 0.25
    %vm3957 = vcmp.ge.f32.partialorder %v3893, 0.25
    %vm3958 = vcmp.ge.f32.partialorder %v3894, 0.25
    %vm3959 = vcmp.ge.f32.partialorder %v3895, 0.25
    %vm3960 = vcmp.ge.f32.partialorder %v3896, 0.25
    %vm3961 = vcmp.ge.f32.partialorder %v3897, 0.25
    %vm3962 = vcmp.ge.f32.partialorder %v3898, 0.25
    %vm3963 = vcmp.ge.f32.partialorder %v3899, 0.25
    %vm3964 = vcmp.ge.f32.partialorder %v3900, 0.25
    %vm3965 = vcmp.ge.f32.partialorder %v3901, 0.25
    %vm3966 = vcmp.ge.f32.partialorder %v3902, 0.25
    %vm3967 = vcmp.ge.f32.partialorder %v3903, 0.25
    %vm3968 = vcmp.ge.f32.partialorder %v3904, 0.25
    %vm3969 = vcmp.ge.f32.partialorder %v3905, 0.25
    %vm3970 = vcmp.ge.f32.partialorder %v3906, 0.25
    %vm3971 = vcmp.ge.f32.partialorder %v3907, 0.25
    %vm3972 = vcmp.ge.f32.partialorder %v3908, 0.25
    %v3973 = vmul.f32 %v3464, 1.3333334
    %v3974 = vmul.f32 %v3470, 1.3333334
    %v3975 = vmul.f32 %v3476, 1.3333334
    %v3976 = vmul.f32 %v3482, 1.3333334
    %v3977 = vmul.f32 %v3488, 1.3333334
    %v3978 = vmul.f32 %v3494, 1.3333334
    %v3979 = vmul.f32 %v3500, 1.3333334
    %v3980 = vmul.f32 %v3506, 1.3333334
    %v3981 = vmul.f32 %v3512, 1.3333334
    %v3982 = vmul.f32 %v3518, 1.3333334
    %v3983 = vmul.f32 %v3524, 1.3333334
    %v3984 = vmul.f32 %v3530, 1.3333334
    %v3985 = vmul.f32 %v3536, 1.3333334
    %v3986 = vmul.f32 %v3542, 1.3333334
    %v3987 = vmul.f32 %v3548, 1.3333334
    %v3988 = vmul.f32 %v3554, 1.3333334
    %v3989 = vmul.f32 %v3560, 1.3333334
    %v3990 = vmul.f32 %v3566, 1.3333334
    %v3991 = vmul.f32 %v3572, 1.3333334
    %v3992 = vmul.f32 %v3578, 1.3333334
    %v3993 = vmul.f32 %v3584, 1.3333334
    %v3994 = vmul.f32 %v3590, 1.3333334
    %v3995 = vmul.f32 %v3596, 1.3333334
    %v3996 = vmul.f32 %v3602, 1.3333334
    %v3997 = vmul.f32 %v3608, 1.3333334
    %v3998 = vmul.f32 %v3614, 1.3333334
    %v3999 = vmul.f32 %v3620, 1.3333334
    %v4000 = vmul.f32 %v3626, 1.3333334
    %v4001 = vmul.f32 %v3632, 1.3333334
    %v4002 = vmul.f32 %v3638, 1.3333334
    %v4003 = vmul.f32 %v3644, 1.3333334
    %v4004 = vmul.f32 %v3650, 1.3333334
    %v4005 = vmul.f32 %v3656, 1.3333334
    %v4006 = vmul.f32 %v3662, 1.3333334
    %v4007 = vmul.f32 %v3668, 1.3333334
    %v4008 = vmul.f32 %v3674, 1.3333334
    %v4009 = vmul.f32 %v3680, 1.3333334
    %v4010 = vmul.f32 %v3686, 1.3333334
    %v4011 = vmul.f32 %v3692, 1.3333334
    %v4012 = vmul.f32 %v3698, 1.3333334
    %v4013 = vmul.f32 %v3704, 1.3333334
    %v4014 = vmul.f32 %v3710, 1.3333334
    %v4015 = vmul.f32 %v3716, 1.3333334
    %v4016 = vmul.f32 %v3722, 1.3333334
    %v4017 = vmul.f32 %v3728, 1.3333334
    %v4018 = vmul.f32 %v3734, 1.3333334
    %v4019 = vmul.f32 %v3740, 1.3333334
    %v4020 = vmul.f32 %v3746, 1.3333334
    %v4021 = vmul.f32 %v3752, 1.3333334
    %v4022 = vmul.f32 %v3758, 1.3333334
    %v4023 = vmul.f32 %v3764, 1.3333334
    %v4024 = vmul.f32 %v3770, 1.3333334
    %v4025 = vmul.f32 %v3776, 1.3333334
    %v4026 = vmul.f32 %v3782, 1.3333334
    %v4027 = vmul.f32 %v3788, 1.3333334
    %v4028 = vmul.f32 %v3794, 1.3333334
    %v4029 = vmul.f32 %v3800, 1.3333334
    %v4030 = vmul.f32 %v3806, 1.3333334
    %v4031 = vmul.f32 %v3812, 1.3333334
    %v4032 = vmul.f32 %v3818, 1.3333334
    %v4033 = vmul.f32 %v3824, 1.3333334
    %v4034 = vmul.f32 %v3830, 1.3333334
    %v4035 = vmul.f32 %v3836, 1.3333334
    %v4036 = vmul.f32 %v3842, 1.3333334
    %v4037 = vsel %vm3909, %v3973, 0.0
    %v4038 = vsel %vm3910, %v3974, 0.0
    %v4039 = vsel %vm3911, %v3975, 0.0
    %v4040 = vsel %vm3912, %v3976, 0.0
    %v4041 = vsel %vm3913, %v3977, 0.0
    %v4042 = vsel %vm3914, %v3978, 0.0
    %v4043 = vsel %vm3915, %v3979, 0.0
    %v4044 = vsel %vm3916, %v3980, 0.0
    %v4045 = vsel %vm3917, %v3981, 0.0
    %v4046 = vsel %vm3918, %v3982, 0.0
    %v4047 = vsel %vm3919, %v3983, 0.0
    %v4048 = vsel %vm3920, %v3984, 0.0
    %v4049 = vsel %vm3921, %v3985, 0.0
    %v4050 = vsel %vm3922, %v3986, 0.0
    %v4051 = vsel %vm3923, %v3987, 0.0
    %v4052 = vsel %vm3924, %v3988, 0.0
    %v4053 = vsel %vm3925, %v3989, 0.0
    %v4054 = vsel %vm3926, %v3990, 0.0
    %v4055 = vsel %vm3927, %v3991, 0.0
    %v4056 = vsel %vm3928, %v3992, 0.0
    %v4057 = vsel %vm3929, %v3993, 0.0
    %v4058 = vsel %vm3930, %v3994, 0.0
    %v4059 = vsel %vm3931, %v3995, 0.0
    %v4060 = vsel %vm3932, %v3996, 0.0
    %v4061 = vsel %vm3933, %v3997, 0.0
    %v4062 = vsel %vm3934, %v3998, 0.0
    %v4063 = vsel %vm3935, %v3999, 0.0
    %v4064 = vsel %vm3936, %v4000, 0.0
    %v4065 = vsel %vm3937, %v4001, 0.0
    %v4066 = vsel %vm3938, %v4002, 0.0
    %v4067 = vsel %vm3939, %v4003, 0.0
    %v4068 = vsel %vm3940, %v4004, 0.0
    %v4069 = vsel %vm3941, %v4005, 0.0
    %v4070 = vsel %vm3942, %v4006, 0.0
    %v4071 = vsel %vm3943, %v4007, 0.0
    %v4072 = vsel %vm3944, %v4008, 0.0
    %v4073 = vsel %vm3945, %v4009, 0.0
    %v4074 = vsel %vm3946, %v4010, 0.0
    %v4075 = vsel %vm3947, %v4011, 0.0
    %v4076 = vsel %vm3948, %v4012, 0.0
    %v4077 = vsel %vm3949, %v4013, 0.0
    %v4078 = vsel %vm3950, %v4014, 0.0
    %v4079 = vsel %vm3951, %v4015, 0.0
    %v4080 = vsel %vm3952, %v4016, 0.0
    %v4081 = vsel %vm3953, %v4017, 0.0
    %v4082 = vsel %vm3954, %v4018, 0.0
    %v4083 = vsel %vm3955, %v4019, 0.0
    %v4084 = vsel %vm3956, %v4020, 0.0
    %v4085 = vsel %vm3957, %v4021, 0.0
    %v4086 = vsel %vm3958, %v4022, 0.0
    %v4087 = vsel %vm3959, %v4023, 0.0
    %v4088 = vsel %vm3960, %v4024, 0.0
    %v4089 = vsel %vm3961, %v4025, 0.0
    %v4090 = vsel %vm3962, %v4026, 0.0
    %v4091 = vsel %vm3963, %v4027, 0.0
    %v4092 = vsel %vm3964, %v4028, 0.0
    %v4093 = vsel %vm3965, %v4029, 0.0
    %v4094 = vsel %vm3966, %v4030, 0.0
    %v4095 = vsel %vm3967, %v4031, 0.0
    %v4096 = vsel %vm3968, %v4032, 0.0
    %v4097 = vsel %vm3969, %v4033, 0.0
    %v4098 = vsel %vm3970, %v4034, 0.0
    %v4099 = vsel %vm3971, %v4035, 0.0
    %v4100 = vsel %vm3972, %v4036, 0.0
    %4101 = vst [vmem:[#allocation5] sm:$0xff] %v4037
    %4102 = vst [vmem:[#allocation5 + $0x8] sm:$0xff] %v4038
    %4103 = vst [vmem:[#allocation5 + $0x10] sm:$0xff] %v4039
    %4104 = vst [vmem:[#allocation5 + $0x18] sm:$0xff] %v4040
    %4105 = vst [vmem:[#allocation5 + $0x20] sm:$0xff] %v4041
    %4106 = vst [vmem:[#allocation5 + $0x28] sm:$0xff] %v4042
    %4107 = vst [vmem:[#allocation5 + $0x30] sm:$0xff] %v4043
    %4108 = vst [vmem:[#allocation5 + $0x38] sm:$0xff] %v4044
    %4109 = vst [vmem:[#allocation5 + $0x40] sm:$0xff] %v4045
    %4110 = vst [vmem:[#allocation5 + $0x48] sm:$0xff] %v4046
    %4111 = vst [vmem:[#allocation5 + $0x50] sm:$0xff] %v4047
    %4112 = vst [vmem:[#allocation5 + $0x58] sm:$0xff] %v4048
    %4113 = vst [vmem:[#allocation5 + $0x60] sm:$0xff] %v4049
    %4114 = vst [vmem:[#allocation5 + $0x68] sm:$0xff] %v4050
    %4115 = vst [vmem:[#allocation5 + $0x70] sm:$0xff] %v4051
    %4116 = vst [vmem:[#allocation5 + $0x78] sm:$0xff] %v4052
    %4117 = vst [vmem:[#allocation5 + $0x80] sm:$0xff] %v4053
    %4118 = vst [vmem:[#allocation5 + $0x88] sm:$0xff] %v4054
    %4119 = vst [vmem:[#allocation5 + $0x90] sm:$0xff] %v4055
    %4120 = vst [vmem:[#allocation5 + $0x98] sm:$0xff] %v4056
    %4121 = vst [vmem:[#allocation5 + $0xa0] sm:$0xff] %v4057
    %4122 = vst [vmem:[#allocation5 + $0xa8] sm:$0xff] %v4058
    %4123 = vst [vmem:[#allocation5 + $0xb0] sm:$0xff] %v4059
    %4124 = vst [vmem:[#allocation5 + $0xb8] sm:$0xff] %v4060
    %4125 = vst [vmem:[#allocation5 + $0xc0] sm:$0xff] %v4061
    %4126 = vst [vmem:[#allocation5 + $0xc8] sm:$0xff] %v4062
    %4127 = vst [vmem:[#allocation5 + $0xd0] sm:$0xff] %v4063
    %4128 = vst [vmem:[#allocation5 + $0xd8] sm:$0xff] %v4064
    %4129 = vst [vmem:[#allocation5 + $0xe0] sm:$0xff] %v4065
    %4130 = vst [vmem:[#allocation5 + $0xe8] sm:$0xff] %v4066
    %4131 = vst [vmem:[#allocation5 + $0xf0] sm:$0xff] %v4067
    %4132 = vst [vmem:[#allocation5 + $0xf8] sm:$0xff] %v4068
    %4133 = vst [vmem:[#allocation5 + $0x100] sm:$0xff] %v4069
    %4134 = vst [vmem:[#allocation5 + $0x108] sm:$0xff] %v4070
    %4135 = vst [vmem:[#allocation5 + $0x110] sm:$0xff] %v4071
    %4136 = vst [vmem:[#allocation5 + $0x118] sm:$0xff] %v4072
    %4137 = vst [vmem:[#allocation5 + $0x120] sm:$0xff] %v4073
    %4138 = vst [vmem:[#allocation5 + $0x128] sm:$0xff] %v4074
    %4139 = vst [vmem:[#allocation5 + $0x130] sm:$0xff] %v4075
    %4140 = vst [vmem:[#allocation5 + $0x138] sm:$0xff] %v4076
    %4141 = vst [vmem:[#allocation5 + $0x140] sm:$0xff] %v4077
    %4142 = vst [vmem:[#allocation5 + $0x148] sm:$0xff] %v4078
    %4143 = vst [vmem:[#allocation5 + $0x150] sm:$0xff] %v4079
    %4144 = vst [vmem:[#allocation5 + $0x158] sm:$0xff] %v4080
    %4145 = vst [vmem:[#allocation5 + $0x160] sm:$0xff] %v4081
    %4146 = vst [vmem:[#allocation5 + $0x168] sm:$0xff] %v4082
    %4147 = vst [vmem:[#allocation5 + $0x170] sm:$0xff] %v4083
    %4148 = vst [vmem:[#allocation5 + $0x178] sm:$0xff] %v4084
    %4149 = vst [vmem:[#allocation5 + $0x180] sm:$0xff] %v4085
    %4150 = vst [vmem:[#allocation5 + $0x188] sm:$0xff] %v4086
    %4151 = vst [vmem:[#allocation5 + $0x190] sm:$0xff] %v4087
    %4152 = vst [vmem:[#allocation5 + $0x198] sm:$0xff] %v4088
    %4153 = vst [vmem:[#allocation5 + $0x1a0] sm:$0xff] %v4089
    %4154 = vst [vmem:[#allocation5 + $0x1a8] sm:$0xff] %v4090
    %4155 = vst [vmem:[#allocation5 + $0x1b0] sm:$0xff] %v4091
    %4156 = vst [vmem:[#allocation5 + $0x1b8] sm:$0xff] %v4092
    %4157 = vst [vmem:[#allocation5 + $0x1c0] sm:$0xff] %v4093
    %4158 = vst [vmem:[#allocation5 + $0x1c8] sm:$0xff] %v4094
    %4159 = vst [vmem:[#allocation5 + $0x1d0] sm:$0xff] %v4095
    %4160 = vst [vmem:[#allocation5 + $0x1d8] sm:$0xff] %v4096
    %4161 = vst [vmem:[#allocation5 + $0x1e0] sm:$0xff] %v4097
    %4162 = vst [vmem:[#allocation5 + $0x1e8] sm:$0xff] %v4098
    %4163 = vst [vmem:[#allocation5 + $0x1f0] sm:$0xff] %v4099
    %4164 = vst [vmem:[#allocation5 + $0x1f8] sm:$0xff] %v4100
    // Predicated region
    $region18: #{tpu_custom_call.1} parent=1 // pred_check
      _
    $region19: #{tpu_custom_call.1} parent=1 // pred_check_branch
      %4166 = sbr.rel (0) target = $region21
    $region20: #{tpu_custom_call.1} parent=1 // pred_region
      %s4168 = ssub.s32 8192, 8192
      %4169 = vsyncadd [#allocation4], %s4168
      %s4170 = sshll.u32 [#allocation5], 4
      %s4171 = int_to_ptr.vmem [resolvable:$true] %s4170
      %4176 = dma.vmem_to_hbm [thread:$0]  %s4171, 8192, %s3, [#allocation4], 128, 128, 8
    $region21: #{tpu_custom_call.1} parent=1 // pred_fallthru
      _
    // Predicated region
    $region22: #{tpu_custom_call.1} parent=1 // pred_check
      _
    $region23: #{tpu_custom_call.1} parent=1 // pred_check_branch
      %4178 = sbr.rel (0) target = $region25
    $region24: #{tpu_custom_call.1} parent=1 // pred_region
      %4179 = dma.done [#allocation4], 8192
    $region25: #{tpu_custom_call.1} parent=1 // pred_fallthru
      _
    %4180 = vsyncpa [#allocation3], 1
    %4181 = vsyncpa [#allocation4], 1

</llo_original>
